<compile_context>
chip_gen: v6e
topology: v6e:2x2x1
jax: 0.10.0
libtpu: 0.0.40
codegen_flags: <defaults>
</compile_context>

<pallas_src>
import functools

import numpy as np
import jax
import jax.numpy as jnp
from jax.experimental import pallas as pl
from jax.experimental.pallas import tpu as pltpu

LANE = 128  # pad channel dims to this so stores/matmuls are lane-dense


def _out_len(n, k, s, p=0):
    return (n - k + 2 * p) // s + 1


def _round_up(x, m):
    return ((x + m - 1) // m) * m


def _pad2(a, rows, cols, dtype):
    a = jnp.asarray(a, jnp.float32)
    out = jnp.zeros((rows, cols), jnp.float32).at[: a.shape[0], : a.shape[1]].set(a)
    return out.astype(dtype)


# ----------------------------------------------------------------------------
# Fused whole-network kernel: one grid step == one batch element.
# ----------------------------------------------------------------------------
def _fcombined_kernel(p1_ref, q_ref,
                      w1_ref, b1_ref,
                      s2_ref, w2_ref, b2_ref,
                      s3_ref, w3_ref, b3_ref,
                      wi2f_ref, bi2f_ref,
                      wfcc_ref, wfcf_ref, bfc_ref,
                      o_ref):
    f32, bf16 = jnp.float32, jnp.bfloat16

    # ---- conv1: im2col patches (M1P, 256) @ (256, 128), bias + ReLU in f32.
    a1 = jnp.dot(p1_ref[0], w1_ref[...], preferred_element_type=f32)
    a1 = jnp.maximum(a1 + b1_ref[...], 0.0).astype(bf16)          # (M1P, 128)

    # ---- conv2: gather patches from VMEM-resident a1 via a 0/1 selection
    # matmul, then one matmul per kernel tap (4x4 = 16 taps).
    taps2 = w2_ref.shape[0]
    p2 = jnp.dot(s2_ref[...], a1, preferred_element_type=f32).astype(bf16)
    m2 = p2.shape[0] // taps2
    acc2 = jnp.dot(p2[0:m2], w2_ref[0], preferred_element_type=f32)
    for t in range(1, taps2):
        acc2 = acc2 + jnp.dot(p2[t * m2:(t + 1) * m2], w2_ref[t],
                              preferred_element_type=f32)
    a2 = jnp.maximum(acc2 + b2_ref[...], 0.0).astype(bf16)        # (M2, 128)

    # ---- conv3: same trick, 3x3 = 9 taps.
    taps3 = w3_ref.shape[0]
    p3 = jnp.dot(s3_ref[...], a2, preferred_element_type=f32).astype(bf16)
    m3 = p3.shape[0] // taps3
    acc3 = jnp.dot(p3[0:m3], w3_ref[0], preferred_element_type=f32)
    for t in range(1, taps3):
        acc3 = acc3 + jnp.dot(p3[t * m3:(t + 1) * m3], w3_ref[t],
                              preferred_element_type=f32)
    a3 = jnp.maximum(acc3 + b3_ref[...], 0.0).astype(bf16)        # (M3, 128)

    # ---- one-hot branch: f = relu(input2 @ Wi2f + b)  (padded to 128 lanes)
    f = jnp.dot(q_ref[0], wi2f_ref[...], preferred_element_type=f32)
    f = jnp.maximum(f + bi2f_ref[...], 0.0).astype(bf16)          # (1, 128)

    # ---- final FC on cat([flatten(conv3), f]).  The PyTorch NCHW flatten
    # ordering is pre-folded into wfcc (one 128x128 slab per spatial pos).
    acc = jnp.dot(f, wfcf_ref[...], preferred_element_type=f32)
    for p in range(m3):
        acc = acc + jnp.dot(a3[p:p + 1], wfcc_ref[p], preferred_element_type=f32)
    # The reference module relu's the head as well.
    o_ref[0] = jnp.maximum(acc + bfc_ref[...], 0.0)               # (1, 128) lane-dense


# ----------------------------------------------------------------------------
# Parameter init (PyTorch-default-style uniform) and one-time preparation.
# ----------------------------------------------------------------------------
def _uniform(key, shape, fan_in):
    bound = 1.0 / float(fan_in) ** 0.5
    return jax.random.uniform(key, shape, jnp.float32, -bound, bound)


def init_params(key, sizes, n_actions, n_qstates):
    convw = _out_len(_out_len(_out_len(sizes[1], 8, 4), 4, 2), 3, 1)
    convh = _out_len(_out_len(_out_len(sizes[0], 8, 4), 4, 2), 3, 1)
    fc_size = convw * convh * 64
    ks = jax.random.split(key, 10)
    return {
        "conv1_w": _uniform(ks[0], (32, 4, 8, 8), 4 * 8 * 8),
        "conv1_b": _uniform(ks[1], (32,), 4 * 8 * 8),
        "conv2_w": _uniform(ks[2], (64, 32, 4, 4), 32 * 4 * 4),
        "conv2_b": _uniform(ks[3], (64,), 32 * 4 * 4),
        "conv3_w": _uniform(ks[4], (64, 64, 3, 3), 64 * 3 * 3),
        "conv3_b": _uniform(ks[5], (64,), 64 * 3 * 3),
        "i2f_w": _uniform(ks[6], (32, n_qstates), n_qstates),
        "i2f_b": _uniform(ks[7], (32,), n_qstates),
        "fc_w": _uniform(ks[8], (n_actions, fc_size + 32), fc_size + 32),
        "fc_b": _uniform(ks[9], (n_actions,), fc_size + 32),
    }


def prepare_params(params, sizes, n_actions, n_qstates):
    """One-time: transpose/pad/bf16-cast weights, build selection matrices."""
    h, w = sizes
    oh1, ow1 = _out_len(h, 8, 4), _out_len(w, 8, 4)
    oh2, ow2 = _out_len(oh1, 4, 2), _out_len(ow1, 4, 2)
    oh3, ow3 = _out_len(oh2, 3, 1), _out_len(ow2, 3, 1)
    m1, m2, m3 = oh1 * ow1, oh2 * ow2, oh3 * ow3
    m1p = _round_up(m1, LANE)            # pad conv1 rows -> lane-dense S2
    k1 = 4 * 8 * 8
    fc_size = 64 * m3
    bf16 = jnp.bfloat16

    # conv1: (OC,C,KH,KW) -> (C*KH*KW, OC) padded to 128 output lanes.
    w1p = _pad2(params["conv1_w"].reshape(32, k1).T, k1, LANE, bf16)
    b1p = _pad2(params["conv1_b"][None, :], 1, LANE, jnp.float32)

    # conv2: selection matrix (16*M2, M1P) + per-tap weight slabs (16,128,128).
    s2 = np.zeros((16 * m2, m1p), np.float32)
    for i in range(4):
        for j in range(4):
            tap = i * 4 + j
            for oy in range(oh2):
                for ox in range(ow2):
                    s2[tap * m2 + oy * ow2 + ox,
                       (2 * oy + i) * ow1 + (2 * ox + j)] = 1.0
    s2 = jnp.asarray(s2).astype(bf16)
    w2 = jnp.transpose(params["conv2_w"], (2, 3, 1, 0)).reshape(16, 32, 64)
    w2p = jnp.zeros((16, LANE, LANE), jnp.float32).at[:, :32, :64].set(w2).astype(bf16)
    b2p = _pad2(params["conv2_b"][None, :], 1, LANE, jnp.float32)

    # conv3: selection matrix (9*M3, M2) + per-tap weight slabs (9,128,128).
    s3 = np.zeros((9 * m3, m2), np.float32)
    for i in range(3):
        for j in range(3):
            tap = i * 3 + j
            for oy in range(oh3):
                for ox in range(ow3):
                    s3[tap * m3 + oy * ow3 + ox,
                       (oy + i) * ow2 + (ox + j)] = 1.0
    s3 = jnp.asarray(s3).astype(bf16)
    w3 = jnp.transpose(params["conv3_w"], (2, 3, 1, 0)).reshape(9, 64, 64)
    w3p = jnp.zeros((9, LANE, LANE), jnp.float32).at[:, :64, :64].set(w3).astype(bf16)
    b3p = _pad2(params["conv3_b"][None, :], 1, LANE, jnp.float32)

    # one-hot branch FC: (32, n_qstates) -> (n_qstates, 32) padded to 128x128.
    wi2f = _pad2(params["i2f_w"].T, LANE, LANE, bf16)
    bi2f = _pad2(params["i2f_b"][None, :], 1, LANE, jnp.float32)

    # final FC, pre-transposed/split once; NCHW flatten folded into slabs:
    # wfcc[p, c, a] = fc_w[a, c*M3 + p]   (conv part),  wfcf[k, a] = fc_w[a, fc_size + k].
    fc_w = params["fc_w"]
    fc_conv = jnp.transpose(fc_w[:, :fc_size].reshape(n_actions, 64, m3), (2, 1, 0))
    wfcc = jnp.zeros((m3, LANE, LANE), jnp.float32).at[:, :64, :n_actions].set(
        fc_conv).astype(bf16)
    wfcf = _pad2(fc_w[:, fc_size:].T, LANE, LANE, bf16)
    bfc = _pad2(params["fc_b"][None, :], 1, LANE, jnp.float32)

    cfg = dict(oh1=oh1, ow1=ow1, m1=m1, m1p=m1p, k1=k1, m2=m2, m3=m3,
               n_actions=n_actions, n_qstates=n_qstates)
    return {"cfg": cfg,
            "w1": w1p, "b1": b1p,
            "s2": s2, "w2": w2p, "b2": b2p,
            "s3": s3, "w3": w3p, "b3": b3p,
            "wi2f": wi2f, "bi2f": bi2f,
            "wfcc": wfcc, "wfcf": wfcf, "bfc": bfc}


# ----------------------------------------------------------------------------
# Wrapper-side input layout glue (pure reshape/slice/concat, no Python loops).
# ----------------------------------------------------------------------------
def _conv1_patches(x, oh1, ow1, m1p):
    """im2col for conv1 (kernel 8, stride 4): space-to-depth + 4 static slices.
    Row ordering: oy*OW+ox.  Column ordering: c*64 + i*8 + j  (PyTorch layout)."""
    n, c, _, _ = x.shape
    hc, wc = 4 * oh1 + 4, 4 * ow1 + 4
    xb = x[:, :, :hc, :wc].reshape(n, c, hc // 4, 4, wc // 4, 4)
    xb = xb.transpose(0, 2, 4, 1, 3, 5)                    # (N, BH, BW, C, 4, 4)
    p00 = xb[:, 0:oh1, 0:ow1]
    p01 = xb[:, 0:oh1, 1:ow1 + 1]
    p10 = xb[:, 1:oh1 + 1, 0:ow1]
    p11 = xb[:, 1:oh1 + 1, 1:ow1 + 1]
    top = jnp.concatenate([p00, p01], axis=-1)             # kernel cols 0..7
    bot = jnp.concatenate([p10, p11], axis=-1)
    pat = jnp.concatenate([top, bot], axis=-2)             # kernel rows 0..7
    pat = pat.reshape(n, oh1 * ow1, c * 64)
    pat = jnp.pad(pat, ((0, 0), (0, m1p - oh1 * ow1), (0, 0)))
    return pat.astype(jnp.bfloat16)


def _pad_input2(q, n_qstates):
    n = q.shape[0]
    qp = jnp.zeros((n, 1, LANE), jnp.float32).at[:, 0, :n_qstates].set(
        q.astype(jnp.float32))
    return qp.astype(jnp.bfloat16)


_CONST_ORDER = ("w1", "b1", "s2", "w2", "b2", "s3", "w3", "b3",
                "wi2f", "bi2f", "wfcc", "wfcf", "bfc")


def _const_spec(a):
    if a.ndim == 2:
        return pl.BlockSpec(a.shape, lambda b: (0, 0))
    return pl.BlockSpec(a.shape, lambda b: (0, 0, 0))


def fcombined_forward(prep, x, input2):
    """x: (N, 4, H, W) f32, input2: (N, n_qstates) f32 -> (N, n_actions) f32."""
    cfg = prep["cfg"]
    n = x.shape[0]
    patches = _conv1_patches(x, cfg["oh1"], cfg["ow1"], cfg["m1p"])
    q = _pad_input2(input2, cfg["n_qstates"])
    consts = [prep[k] for k in _CONST_ORDER]

    out = pl.pallas_call(
        _fcombined_kernel,
        out_shape=jax.ShapeDtypeStruct((n, 1, LANE), jnp.float32),
        grid=(n,),
        in_specs=[
            pl.BlockSpec((1, cfg["m1p"], cfg["k1"]), lambda b: (b, 0, 0)),
            pl.BlockSpec((1, 1, LANE), lambda b: (b, 0, 0)),
        ] + [_const_spec(c) for c in consts],                # weights stay resident
        out_specs=pl.BlockSpec((1, 1, LANE), lambda b: (b, 0, 0)),
        compiler_params=pltpu.CompilerParams(
            dimension_semantics=("parallel",)),              # v7x: split batch on 2 TCs
    )(patches, q, *consts)
    return out[:, 0, :cfg["n_actions"]]


if __name__ == "__main__":
    sizes = (44, 44)          # small H,W that survives the three strided convs
    n_actions = 6
    n_qstates = 5
    batch = 2

    key = jax.random.PRNGKey(0)
    kp, kx, kq = jax.random.split(key, 3)
    params = init_params(kp, sizes, n_actions, n_qstates)
    prep = prepare_params(params, sizes, n_actions, n_qstates)

    x = jax.random.normal(kx, (batch, 4, sizes[0], sizes[1]), jnp.float32)
    qstate_ids = jax.random.randint(kq, (batch,), 0, n_qstates)
    input2 = jax.nn.one_hot(qstate_ids, n_qstates, dtype=jnp.float32)

    fwd = jax.jit(functools.partial(fcombined_forward, prep))
    out = jax.block_until_ready(fwd(x, input2))

    assert out.shape == (batch, n_actions), out.shape
    assert bool(jnp.all(out >= 0.0))   # reference module relu's the final Linear
    print("KERNEL_OK")
</pallas_src>

<mosaic_0001>
module attributes {stable_mosaic.version = 11 : i64} {
  func.func @_fcombined_kernel(%arg0: i32, %arg1: memref<1x128x256xbf16, #tpu.memory_space<vmem>>, %arg2: memref<1x1x128xbf16, #tpu.memory_space<vmem>>, %arg3: memref<256x128xbf16, #tpu.memory_space<vmem>>, %arg4: memref<1x128xf32, #tpu.memory_space<vmem>>, %arg5: memref<256x128xbf16, #tpu.memory_space<vmem>>, %arg6: memref<16x128x128xbf16, #tpu.memory_space<vmem>>, %arg7: memref<1x128xf32, #tpu.memory_space<vmem>>, %arg8: memref<36x16xbf16, #tpu.memory_space<vmem>>, %arg9: memref<9x128x128xbf16, #tpu.memory_space<vmem>>, %arg10: memref<1x128xf32, #tpu.memory_space<vmem>>, %arg11: memref<128x128xbf16, #tpu.memory_space<vmem>>, %arg12: memref<1x128xf32, #tpu.memory_space<vmem>>, %arg13: memref<4x128x128xbf16, #tpu.memory_space<vmem>>, %arg14: memref<128x128xbf16, #tpu.memory_space<vmem>>, %arg15: memref<1x128xf32, #tpu.memory_space<vmem>>, %arg16: memref<1x1x128xf32, #tpu.memory_space<vmem>>) attributes {dimension_semantics = [#tpu.dimension_semantics<parallel>], iteration_bounds = array<i64: 2>, scalar_prefetch = 0 : i64, scratch_operands = 0 : i64, tpu.core_type = #tpu.core_type<tc>, window_params = [{transform_indices = @transform_0, window_bounds = array<i64: 1, 128, 256>}, {transform_indices = @transform_1, window_bounds = array<i64: 1, 1, 128>}, {pipeline_mode = #tpu.pipeline_mode<synchronous>, transform_indices = @transform_2, window_bounds = array<i64: 256, 128>}, {pipeline_mode = #tpu.pipeline_mode<synchronous>, transform_indices = @transform_3, window_bounds = array<i64: 1, 128>}, {pipeline_mode = #tpu.pipeline_mode<synchronous>, transform_indices = @transform_4, window_bounds = array<i64: 256, 128>}, {pipeline_mode = #tpu.pipeline_mode<synchronous>, transform_indices = @transform_5, window_bounds = array<i64: 16, 128, 128>}, {pipeline_mode = #tpu.pipeline_mode<synchronous>, transform_indices = @transform_6, window_bounds = array<i64: 1, 128>}, {pipeline_mode = #tpu.pipeline_mode<synchronous>, transform_indices = @transform_7, window_bounds = array<i64: 36, 16>}, {pipeline_mode = #tpu.pipeline_mode<synchronous>, transform_indices = @transform_8, window_bounds = array<i64: 9, 128, 128>}, {pipeline_mode = #tpu.pipeline_mode<synchronous>, transform_indices = @transform_9, window_bounds = array<i64: 1, 128>}, {pipeline_mode = #tpu.pipeline_mode<synchronous>, transform_indices = @transform_10, window_bounds = array<i64: 128, 128>}, {pipeline_mode = #tpu.pipeline_mode<synchronous>, transform_indices = @transform_11, window_bounds = array<i64: 1, 128>}, {pipeline_mode = #tpu.pipeline_mode<synchronous>, transform_indices = @transform_12, window_bounds = array<i64: 4, 128, 128>}, {pipeline_mode = #tpu.pipeline_mode<synchronous>, transform_indices = @transform_13, window_bounds = array<i64: 128, 128>}, {pipeline_mode = #tpu.pipeline_mode<synchronous>, transform_indices = @transform_14, window_bounds = array<i64: 1, 128>}, {transform_indices = @transform_15, window_bounds = array<i64: 1, 1, 128>}]} {
    %c0 = arith.constant 0 : index
    %c0_0 = arith.constant 0 : index
    %c0_1 = arith.constant 0 : index
    %0 = vector.load %arg1[%c0, %c0_0, %c0_1] : memref<1x128x256xbf16, #tpu.memory_space<vmem>>, vector<1x128x256xbf16>
    %1 = vector.shape_cast %0 : vector<1x128x256xbf16> to vector<128x256xbf16>
    %c0_2 = arith.constant 0 : index
    %c0_3 = arith.constant 0 : index
    %2 = vector.load %arg3[%c0_2, %c0_3] : memref<256x128xbf16, #tpu.memory_space<vmem>>, vector<256x128xbf16>
    %cst = arith.constant dense<0.000000e+00> : vector<128x128xf32>
    %3 = tpu.matmul %1, %2, %cst {dimension_numbers = #tpu.dot_dimension_numbers<[1], [0], [0], [1], [0, 0, 1, 1], [], []>} : vector<128x256xbf16>, vector<256x128xbf16>, vector<128x128xf32> -> vector<128x128xf32>
    %c0_4 = arith.constant 0 : index
    %c0_5 = arith.constant 0 : index
    %4 = vector.load %arg4[%c0_4, %c0_5] : memref<1x128xf32, #tpu.memory_space<vmem>>, vector<1x128xf32>
    %5 = vector.broadcast %4 : vector<1x128xf32> to vector<128x128xf32>
    %6 = arith.addf %3, %5 : vector<128x128xf32>
    %cst_6 = arith.constant 0.000000e+00 : f32
    %7 = vector.broadcast %cst_6 : f32 to vector<128x128xf32>
    %8 = arith.maximumf %6, %7 : vector<128x128xf32>
    %9 = arith.truncf %8 : vector<128x128xf32> to vector<128x128xbf16>
    %c0_7 = arith.constant 0 : index
    %c0_8 = arith.constant 0 : index
    %10 = vector.load %arg5[%c0_7, %c0_8] : memref<256x128xbf16, #tpu.memory_space<vmem>>, vector<256x128xbf16>
    %cst_9 = arith.constant dense<0.000000e+00> : vector<256x128xf32>
    %11 = tpu.matmul %10, %9, %cst_9 {dimension_numbers = #tpu.dot_dimension_numbers<[1], [0], [0], [1], [0, 0, 1, 1], [], []>} : vector<256x128xbf16>, vector<128x128xbf16>, vector<256x128xf32> -> vector<256x128xf32>
    %12 = arith.truncf %11 : vector<256x128xf32> to vector<256x128xbf16>
    %13 = vector.extract_strided_slice %12 {offsets = [0, 0], sizes = [16, 128], strides = [1, 1]} : vector<256x128xbf16> to vector<16x128xbf16>
    %c0_10 = arith.constant 0 : index
    %c0_11 = arith.constant 0 : index
    %c0_12 = arith.constant 0 : index
    %14 = vector.load %arg6[%c0_10, %c0_11, %c0_12] : memref<16x128x128xbf16, #tpu.memory_space<vmem>>, vector<1x128x128xbf16>
    %15 = vector.shape_cast %14 : vector<1x128x128xbf16> to vector<128x128xbf16>
    %cst_13 = arith.constant dense<0.000000e+00> : vector<16x128xf32>
    %16 = tpu.matmul %13, %15, %cst_13 {dimension_numbers = #tpu.dot_dimension_numbers<[1], [0], [0], [1], [0, 0, 1, 1], [], []>} : vector<16x128xbf16>, vector<128x128xbf16>, vector<16x128xf32> -> vector<16x128xf32>
    %17 = vector.extract_strided_slice %12 {offsets = [16, 0], sizes = [16, 128], strides = [1, 1]} : vector<256x128xbf16> to vector<16x128xbf16>
    %c1 = arith.constant 1 : index
    %c0_14 = arith.constant 0 : index
    %c0_15 = arith.constant 0 : index
    %18 = vector.load %arg6[%c1, %c0_14, %c0_15] : memref<16x128x128xbf16, #tpu.memory_space<vmem>>, vector<1x128x128xbf16>
    %19 = vector.shape_cast %18 : vector<1x128x128xbf16> to vector<128x128xbf16>
    %cst_16 = arith.constant dense<0.000000e+00> : vector<16x128xf32>
    %20 = tpu.matmul %17, %19, %cst_16 {dimension_numbers = #tpu.dot_dimension_numbers<[1], [0], [0], [1], [0, 0, 1, 1], [], []>} : vector<16x128xbf16>, vector<128x128xbf16>, vector<16x128xf32> -> vector<16x128xf32>
    %21 = arith.addf %16, %20 : vector<16x128xf32>
    %22 = vector.extract_strided_slice %12 {offsets = [32, 0], sizes = [16, 128], strides = [1, 1]} : vector<256x128xbf16> to vector<16x128xbf16>
    %c2 = arith.constant 2 : index
    %c0_17 = arith.constant 0 : index
    %c0_18 = arith.constant 0 : index
    %23 = vector.load %arg6[%c2, %c0_17, %c0_18] : memref<16x128x128xbf16, #tpu.memory_space<vmem>>, vector<1x128x128xbf16>
    %24 = vector.shape_cast %23 : vector<1x128x128xbf16> to vector<128x128xbf16>
    %cst_19 = arith.constant dense<0.000000e+00> : vector<16x128xf32>
    %25 = tpu.matmul %22, %24, %cst_19 {dimension_numbers = #tpu.dot_dimension_numbers<[1], [0], [0], [1], [0, 0, 1, 1], [], []>} : vector<16x128xbf16>, vector<128x128xbf16>, vector<16x128xf32> -> vector<16x128xf32>
    %26 = arith.addf %21, %25 : vector<16x128xf32>
    %27 = vector.extract_strided_slice %12 {offsets = [48, 0], sizes = [16, 128], strides = [1, 1]} : vector<256x128xbf16> to vector<16x128xbf16>
    %c3 = arith.constant 3 : index
    %c0_20 = arith.constant 0 : index
    %c0_21 = arith.constant 0 : index
    %28 = vector.load %arg6[%c3, %c0_20, %c0_21] : memref<16x128x128xbf16, #tpu.memory_space<vmem>>, vector<1x128x128xbf16>
    %29 = vector.shape_cast %28 : vector<1x128x128xbf16> to vector<128x128xbf16>
    %cst_22 = arith.constant dense<0.000000e+00> : vector<16x128xf32>
    %30 = tpu.matmul %27, %29, %cst_22 {dimension_numbers = #tpu.dot_dimension_numbers<[1], [0], [0], [1], [0, 0, 1, 1], [], []>} : vector<16x128xbf16>, vector<128x128xbf16>, vector<16x128xf32> -> vector<16x128xf32>
    %31 = arith.addf %26, %30 : vector<16x128xf32>
    %32 = vector.extract_strided_slice %12 {offsets = [64, 0], sizes = [16, 128], strides = [1, 1]} : vector<256x128xbf16> to vector<16x128xbf16>
    %c4 = arith.constant 4 : index
    %c0_23 = arith.constant 0 : index
    %c0_24 = arith.constant 0 : index
    %33 = vector.load %arg6[%c4, %c0_23, %c0_24] : memref<16x128x128xbf16, #tpu.memory_space<vmem>>, vector<1x128x128xbf16>
    %34 = vector.shape_cast %33 : vector<1x128x128xbf16> to vector<128x128xbf16>
    %cst_25 = arith.constant dense<0.000000e+00> : vector<16x128xf32>
    %35 = tpu.matmul %32, %34, %cst_25 {dimension_numbers = #tpu.dot_dimension_numbers<[1], [0], [0], [1], [0, 0, 1, 1], [], []>} : vector<16x128xbf16>, vector<128x128xbf16>, vector<16x128xf32> -> vector<16x128xf32>
    %36 = arith.addf %31, %35 : vector<16x128xf32>
    %37 = vector.extract_strided_slice %12 {offsets = [80, 0], sizes = [16, 128], strides = [1, 1]} : vector<256x128xbf16> to vector<16x128xbf16>
    %c5 = arith.constant 5 : index
    %c0_26 = arith.constant 0 : index
    %c0_27 = arith.constant 0 : index
    %38 = vector.load %arg6[%c5, %c0_26, %c0_27] : memref<16x128x128xbf16, #tpu.memory_space<vmem>>, vector<1x128x128xbf16>
    %39 = vector.shape_cast %38 : vector<1x128x128xbf16> to vector<128x128xbf16>
    %cst_28 = arith.constant dense<0.000000e+00> : vector<16x128xf32>
    %40 = tpu.matmul %37, %39, %cst_28 {dimension_numbers = #tpu.dot_dimension_numbers<[1], [0], [0], [1], [0, 0, 1, 1], [], []>} : vector<16x128xbf16>, vector<128x128xbf16>, vector<16x128xf32> -> vector<16x128xf32>
    %41 = arith.addf %36, %40 : vector<16x128xf32>
    %42 = vector.extract_strided_slice %12 {offsets = [96, 0], sizes = [16, 128], strides = [1, 1]} : vector<256x128xbf16> to vector<16x128xbf16>
    %c6 = arith.constant 6 : index
    %c0_29 = arith.constant 0 : index
    %c0_30 = arith.constant 0 : index
    %43 = vector.load %arg6[%c6, %c0_29, %c0_30] : memref<16x128x128xbf16, #tpu.memory_space<vmem>>, vector<1x128x128xbf16>
    %44 = vector.shape_cast %43 : vector<1x128x128xbf16> to vector<128x128xbf16>
    %cst_31 = arith.constant dense<0.000000e+00> : vector<16x128xf32>
    %45 = tpu.matmul %42, %44, %cst_31 {dimension_numbers = #tpu.dot_dimension_numbers<[1], [0], [0], [1], [0, 0, 1, 1], [], []>} : vector<16x128xbf16>, vector<128x128xbf16>, vector<16x128xf32> -> vector<16x128xf32>
    %46 = arith.addf %41, %45 : vector<16x128xf32>
    %47 = vector.extract_strided_slice %12 {offsets = [112, 0], sizes = [16, 128], strides = [1, 1]} : vector<256x128xbf16> to vector<16x128xbf16>
    %c7 = arith.constant 7 : index
    %c0_32 = arith.constant 0 : index
    %c0_33 = arith.constant 0 : index
    %48 = vector.load %arg6[%c7, %c0_32, %c0_33] : memref<16x128x128xbf16, #tpu.memory_space<vmem>>, vector<1x128x128xbf16>
    %49 = vector.shape_cast %48 : vector<1x128x128xbf16> to vector<128x128xbf16>
    %cst_34 = arith.constant dense<0.000000e+00> : vector<16x128xf32>
    %50 = tpu.matmul %47, %49, %cst_34 {dimension_numbers = #tpu.dot_dimension_numbers<[1], [0], [0], [1], [0, 0, 1, 1], [], []>} : vector<16x128xbf16>, vector<128x128xbf16>, vector<16x128xf32> -> vector<16x128xf32>
    %51 = arith.addf %46, %50 : vector<16x128xf32>
    %52 = vector.extract_strided_slice %12 {offsets = [128, 0], sizes = [16, 128], strides = [1, 1]} : vector<256x128xbf16> to vector<16x128xbf16>
    %c8 = arith.constant 8 : index
    %c0_35 = arith.constant 0 : index
    %c0_36 = arith.constant 0 : index
    %53 = vector.load %arg6[%c8, %c0_35, %c0_36] : memref<16x128x128xbf16, #tpu.memory_space<vmem>>, vector<1x128x128xbf16>
    %54 = vector.shape_cast %53 : vector<1x128x128xbf16> to vector<128x128xbf16>
    %cst_37 = arith.constant dense<0.000000e+00> : vector<16x128xf32>
    %55 = tpu.matmul %52, %54, %cst_37 {dimension_numbers = #tpu.dot_dimension_numbers<[1], [0], [0], [1], [0, 0, 1, 1], [], []>} : vector<16x128xbf16>, vector<128x128xbf16>, vector<16x128xf32> -> vector<16x128xf32>
    %56 = arith.addf %51, %55 : vector<16x128xf32>
    %57 = vector.extract_strided_slice %12 {offsets = [144, 0], sizes = [16, 128], strides = [1, 1]} : vector<256x128xbf16> to vector<16x128xbf16>
    %c9 = arith.constant 9 : index
    %c0_38 = arith.constant 0 : index
    %c0_39 = arith.constant 0 : index
    %58 = vector.load %arg6[%c9, %c0_38, %c0_39] : memref<16x128x128xbf16, #tpu.memory_space<vmem>>, vector<1x128x128xbf16>
    %59 = vector.shape_cast %58 : vector<1x128x128xbf16> to vector<128x128xbf16>
    %cst_40 = arith.constant dense<0.000000e+00> : vector<16x128xf32>
    %60 = tpu.matmul %57, %59, %cst_40 {dimension_numbers = #tpu.dot_dimension_numbers<[1], [0], [0], [1], [0, 0, 1, 1], [], []>} : vector<16x128xbf16>, vector<128x128xbf16>, vector<16x128xf32> -> vector<16x128xf32>
    %61 = arith.addf %56, %60 : vector<16x128xf32>
    %62 = vector.extract_strided_slice %12 {offsets = [160, 0], sizes = [16, 128], strides = [1, 1]} : vector<256x128xbf16> to vector<16x128xbf16>
    %c10 = arith.constant 10 : index
    %c0_41 = arith.constant 0 : index
    %c0_42 = arith.constant 0 : index
    %63 = vector.load %arg6[%c10, %c0_41, %c0_42] : memref<16x128x128xbf16, #tpu.memory_space<vmem>>, vector<1x128x128xbf16>
    %64 = vector.shape_cast %63 : vector<1x128x128xbf16> to vector<128x128xbf16>
    %cst_43 = arith.constant dense<0.000000e+00> : vector<16x128xf32>
    %65 = tpu.matmul %62, %64, %cst_43 {dimension_numbers = #tpu.dot_dimension_numbers<[1], [0], [0], [1], [0, 0, 1, 1], [], []>} : vector<16x128xbf16>, vector<128x128xbf16>, vector<16x128xf32> -> vector<16x128xf32>
    %66 = arith.addf %61, %65 : vector<16x128xf32>
    %67 = vector.extract_strided_slice %12 {offsets = [176, 0], sizes = [16, 128], strides = [1, 1]} : vector<256x128xbf16> to vector<16x128xbf16>
    %c11 = arith.constant 11 : index
    %c0_44 = arith.constant 0 : index
    %c0_45 = arith.constant 0 : index
    %68 = vector.load %arg6[%c11, %c0_44, %c0_45] : memref<16x128x128xbf16, #tpu.memory_space<vmem>>, vector<1x128x128xbf16>
    %69 = vector.shape_cast %68 : vector<1x128x128xbf16> to vector<128x128xbf16>
    %cst_46 = arith.constant dense<0.000000e+00> : vector<16x128xf32>
    %70 = tpu.matmul %67, %69, %cst_46 {dimension_numbers = #tpu.dot_dimension_numbers<[1], [0], [0], [1], [0, 0, 1, 1], [], []>} : vector<16x128xbf16>, vector<128x128xbf16>, vector<16x128xf32> -> vector<16x128xf32>
    %71 = arith.addf %66, %70 : vector<16x128xf32>
    %72 = vector.extract_strided_slice %12 {offsets = [192, 0], sizes = [16, 128], strides = [1, 1]} : vector<256x128xbf16> to vector<16x128xbf16>
    %c12 = arith.constant 12 : index
    %c0_47 = arith.constant 0 : index
    %c0_48 = arith.constant 0 : index
    %73 = vector.load %arg6[%c12, %c0_47, %c0_48] : memref<16x128x128xbf16, #tpu.memory_space<vmem>>, vector<1x128x128xbf16>
    %74 = vector.shape_cast %73 : vector<1x128x128xbf16> to vector<128x128xbf16>
    %cst_49 = arith.constant dense<0.000000e+00> : vector<16x128xf32>
    %75 = tpu.matmul %72, %74, %cst_49 {dimension_numbers = #tpu.dot_dimension_numbers<[1], [0], [0], [1], [0, 0, 1, 1], [], []>} : vector<16x128xbf16>, vector<128x128xbf16>, vector<16x128xf32> -> vector<16x128xf32>
    %76 = arith.addf %71, %75 : vector<16x128xf32>
    %77 = vector.extract_strided_slice %12 {offsets = [208, 0], sizes = [16, 128], strides = [1, 1]} : vector<256x128xbf16> to vector<16x128xbf16>
    %c13 = arith.constant 13 : index
    %c0_50 = arith.constant 0 : index
    %c0_51 = arith.constant 0 : index
    %78 = vector.load %arg6[%c13, %c0_50, %c0_51] : memref<16x128x128xbf16, #tpu.memory_space<vmem>>, vector<1x128x128xbf16>
    %79 = vector.shape_cast %78 : vector<1x128x128xbf16> to vector<128x128xbf16>
    %cst_52 = arith.constant dense<0.000000e+00> : vector<16x128xf32>
    %80 = tpu.matmul %77, %79, %cst_52 {dimension_numbers = #tpu.dot_dimension_numbers<[1], [0], [0], [1], [0, 0, 1, 1], [], []>} : vector<16x128xbf16>, vector<128x128xbf16>, vector<16x128xf32> -> vector<16x128xf32>
    %81 = arith.addf %76, %80 : vector<16x128xf32>
    %82 = vector.extract_strided_slice %12 {offsets = [224, 0], sizes = [16, 128], strides = [1, 1]} : vector<256x128xbf16> to vector<16x128xbf16>
    %c14 = arith.constant 14 : index
    %c0_53 = arith.constant 0 : index
    %c0_54 = arith.constant 0 : index
    %83 = vector.load %arg6[%c14, %c0_53, %c0_54] : memref<16x128x128xbf16, #tpu.memory_space<vmem>>, vector<1x128x128xbf16>
    %84 = vector.shape_cast %83 : vector<1x128x128xbf16> to vector<128x128xbf16>
    %cst_55 = arith.constant dense<0.000000e+00> : vector<16x128xf32>
    %85 = tpu.matmul %82, %84, %cst_55 {dimension_numbers = #tpu.dot_dimension_numbers<[1], [0], [0], [1], [0, 0, 1, 1], [], []>} : vector<16x128xbf16>, vector<128x128xbf16>, vector<16x128xf32> -> vector<16x128xf32>
    %86 = arith.addf %81, %85 : vector<16x128xf32>
    %87 = vector.extract_strided_slice %12 {offsets = [240, 0], sizes = [16, 128], strides = [1, 1]} : vector<256x128xbf16> to vector<16x128xbf16>
    %c15 = arith.constant 15 : index
    %c0_56 = arith.constant 0 : index
    %c0_57 = arith.constant 0 : index
    %88 = vector.load %arg6[%c15, %c0_56, %c0_57] : memref<16x128x128xbf16, #tpu.memory_space<vmem>>, vector<1x128x128xbf16>
    %89 = vector.shape_cast %88 : vector<1x128x128xbf16> to vector<128x128xbf16>
    %cst_58 = arith.constant dense<0.000000e+00> : vector<16x128xf32>
    %90 = tpu.matmul %87, %89, %cst_58 {dimension_numbers = #tpu.dot_dimension_numbers<[1], [0], [0], [1], [0, 0, 1, 1], [], []>} : vector<16x128xbf16>, vector<128x128xbf16>, vector<16x128xf32> -> vector<16x128xf32>
    %91 = arith.addf %86, %90 : vector<16x128xf32>
    %c0_59 = arith.constant 0 : index
    %c0_60 = arith.constant 0 : index
    %92 = vector.load %arg7[%c0_59, %c0_60] : memref<1x128xf32, #tpu.memory_space<vmem>>, vector<1x128xf32>
    %93 = vector.broadcast %92 : vector<1x128xf32> to vector<16x128xf32>
    %94 = arith.addf %91, %93 : vector<16x128xf32>
    %cst_61 = arith.constant 0.000000e+00 : f32
    %95 = vector.broadcast %cst_61 : f32 to vector<16x128xf32>
    %96 = arith.maximumf %94, %95 : vector<16x128xf32>
    %97 = arith.truncf %96 : vector<16x128xf32> to vector<16x128xbf16>
    %c0_62 = arith.constant 0 : index
    %c0_63 = arith.constant 0 : index
    %98 = vector.load %arg8[%c0_62, %c0_63] : memref<36x16xbf16, #tpu.memory_space<vmem>>, vector<36x16xbf16>
    %cst_64 = arith.constant dense<0.000000e+00> : vector<36x128xf32>
    %99 = tpu.matmul %98, %97, %cst_64 {dimension_numbers = #tpu.dot_dimension_numbers<[1], [0], [0], [1], [0, 0, 1, 1], [], []>} : vector<36x16xbf16>, vector<16x128xbf16>, vector<36x128xf32> -> vector<36x128xf32>
    %100 = arith.truncf %99 : vector<36x128xf32> to vector<36x128xbf16>
    %101 = vector.extract_strided_slice %100 {offsets = [0, 0], sizes = [4, 128], strides = [1, 1]} : vector<36x128xbf16> to vector<4x128xbf16>
    %c0_65 = arith.constant 0 : index
    %c0_66 = arith.constant 0 : index
    %c0_67 = arith.constant 0 : index
    %102 = vector.load %arg9[%c0_65, %c0_66, %c0_67] : memref<9x128x128xbf16, #tpu.memory_space<vmem>>, vector<1x128x128xbf16>
    %103 = vector.shape_cast %102 : vector<1x128x128xbf16> to vector<128x128xbf16>
    %cst_68 = arith.constant dense<0.000000e+00> : vector<4x128xf32>
    %104 = tpu.matmul %101, %103, %cst_68 {dimension_numbers = #tpu.dot_dimension_numbers<[1], [0], [0], [1], [0, 0, 1, 1], [], []>} : vector<4x128xbf16>, vector<128x128xbf16>, vector<4x128xf32> -> vector<4x128xf32>
    %105 = vector.extract_strided_slice %100 {offsets = [4, 0], sizes = [4, 128], strides = [1, 1]} : vector<36x128xbf16> to vector<4x128xbf16>
    %c1_69 = arith.constant 1 : index
    %c0_70 = arith.constant 0 : index
    %c0_71 = arith.constant 0 : index
    %106 = vector.load %arg9[%c1_69, %c0_70, %c0_71] : memref<9x128x128xbf16, #tpu.memory_space<vmem>>, vector<1x128x128xbf16>
    %107 = vector.shape_cast %106 : vector<1x128x128xbf16> to vector<128x128xbf16>
    %cst_72 = arith.constant dense<0.000000e+00> : vector<4x128xf32>
    %108 = tpu.matmul %105, %107, %cst_72 {dimension_numbers = #tpu.dot_dimension_numbers<[1], [0], [0], [1], [0, 0, 1, 1], [], []>} : vector<4x128xbf16>, vector<128x128xbf16>, vector<4x128xf32> -> vector<4x128xf32>
    %109 = arith.addf %104, %108 : vector<4x128xf32>
    %110 = vector.extract_strided_slice %100 {offsets = [8, 0], sizes = [4, 128], strides = [1, 1]} : vector<36x128xbf16> to vector<4x128xbf16>
    %c2_73 = arith.constant 2 : index
    %c0_74 = arith.constant 0 : index
    %c0_75 = arith.constant 0 : index
    %111 = vector.load %arg9[%c2_73, %c0_74, %c0_75] : memref<9x128x128xbf16, #tpu.memory_space<vmem>>, vector<1x128x128xbf16>
    %112 = vector.shape_cast %111 : vector<1x128x128xbf16> to vector<128x128xbf16>
    %cst_76 = arith.constant dense<0.000000e+00> : vector<4x128xf32>
    %113 = tpu.matmul %110, %112, %cst_76 {dimension_numbers = #tpu.dot_dimension_numbers<[1], [0], [0], [1], [0, 0, 1, 1], [], []>} : vector<4x128xbf16>, vector<128x128xbf16>, vector<4x128xf32> -> vector<4x128xf32>
    %114 = arith.addf %109, %113 : vector<4x128xf32>
    %115 = vector.extract_strided_slice %100 {offsets = [12, 0], sizes = [4, 128], strides = [1, 1]} : vector<36x128xbf16> to vector<4x128xbf16>
    %c3_77 = arith.constant 3 : index
    %c0_78 = arith.constant 0 : index
    %c0_79 = arith.constant 0 : index
    %116 = vector.load %arg9[%c3_77, %c0_78, %c0_79] : memref<9x128x128xbf16, #tpu.memory_space<vmem>>, vector<1x128x128xbf16>
    %117 = vector.shape_cast %116 : vector<1x128x128xbf16> to vector<128x128xbf16>
    %cst_80 = arith.constant dense<0.000000e+00> : vector<4x128xf32>
    %118 = tpu.matmul %115, %117, %cst_80 {dimension_numbers = #tpu.dot_dimension_numbers<[1], [0], [0], [1], [0, 0, 1, 1], [], []>} : vector<4x128xbf16>, vector<128x128xbf16>, vector<4x128xf32> -> vector<4x128xf32>
    %119 = arith.addf %114, %118 : vector<4x128xf32>
    %120 = vector.extract_strided_slice %100 {offsets = [16, 0], sizes = [4, 128], strides = [1, 1]} : vector<36x128xbf16> to vector<4x128xbf16>
    %c4_81 = arith.constant 4 : index
    %c0_82 = arith.constant 0 : index
    %c0_83 = arith.constant 0 : index
    %121 = vector.load %arg9[%c4_81, %c0_82, %c0_83] : memref<9x128x128xbf16, #tpu.memory_space<vmem>>, vector<1x128x128xbf16>
    %122 = vector.shape_cast %121 : vector<1x128x128xbf16> to vector<128x128xbf16>
    %cst_84 = arith.constant dense<0.000000e+00> : vector<4x128xf32>
    %123 = tpu.matmul %120, %122, %cst_84 {dimension_numbers = #tpu.dot_dimension_numbers<[1], [0], [0], [1], [0, 0, 1, 1], [], []>} : vector<4x128xbf16>, vector<128x128xbf16>, vector<4x128xf32> -> vector<4x128xf32>
    %124 = arith.addf %119, %123 : vector<4x128xf32>
    %125 = vector.extract_strided_slice %100 {offsets = [20, 0], sizes = [4, 128], strides = [1, 1]} : vector<36x128xbf16> to vector<4x128xbf16>
    %c5_85 = arith.constant 5 : index
    %c0_86 = arith.constant 0 : index
    %c0_87 = arith.constant 0 : index
    %126 = vector.load %arg9[%c5_85, %c0_86, %c0_87] : memref<9x128x128xbf16, #tpu.memory_space<vmem>>, vector<1x128x128xbf16>
    %127 = vector.shape_cast %126 : vector<1x128x128xbf16> to vector<128x128xbf16>
    %cst_88 = arith.constant dense<0.000000e+00> : vector<4x128xf32>
    %128 = tpu.matmul %125, %127, %cst_88 {dimension_numbers = #tpu.dot_dimension_numbers<[1], [0], [0], [1], [0, 0, 1, 1], [], []>} : vector<4x128xbf16>, vector<128x128xbf16>, vector<4x128xf32> -> vector<4x128xf32>
    %129 = arith.addf %124, %128 : vector<4x128xf32>
    %130 = vector.extract_strided_slice %100 {offsets = [24, 0], sizes = [4, 128], strides = [1, 1]} : vector<36x128xbf16> to vector<4x128xbf16>
    %c6_89 = arith.constant 6 : index
    %c0_90 = arith.constant 0 : index
    %c0_91 = arith.constant 0 : index
    %131 = vector.load %arg9[%c6_89, %c0_90, %c0_91] : memref<9x128x128xbf16, #tpu.memory_space<vmem>>, vector<1x128x128xbf16>
    %132 = vector.shape_cast %131 : vector<1x128x128xbf16> to vector<128x128xbf16>
    %cst_92 = arith.constant dense<0.000000e+00> : vector<4x128xf32>
    %133 = tpu.matmul %130, %132, %cst_92 {dimension_numbers = #tpu.dot_dimension_numbers<[1], [0], [0], [1], [0, 0, 1, 1], [], []>} : vector<4x128xbf16>, vector<128x128xbf16>, vector<4x128xf32> -> vector<4x128xf32>
    %134 = arith.addf %129, %133 : vector<4x128xf32>
    %135 = vector.extract_strided_slice %100 {offsets = [28, 0], sizes = [4, 128], strides = [1, 1]} : vector<36x128xbf16> to vector<4x128xbf16>
    %c7_93 = arith.constant 7 : index
    %c0_94 = arith.constant 0 : index
    %c0_95 = arith.constant 0 : index
    %136 = vector.load %arg9[%c7_93, %c0_94, %c0_95] : memref<9x128x128xbf16, #tpu.memory_space<vmem>>, vector<1x128x128xbf16>
    %137 = vector.shape_cast %136 : vector<1x128x128xbf16> to vector<128x128xbf16>
    %cst_96 = arith.constant dense<0.000000e+00> : vector<4x128xf32>
    %138 = tpu.matmul %135, %137, %cst_96 {dimension_numbers = #tpu.dot_dimension_numbers<[1], [0], [0], [1], [0, 0, 1, 1], [], []>} : vector<4x128xbf16>, vector<128x128xbf16>, vector<4x128xf32> -> vector<4x128xf32>
    %139 = arith.addf %134, %138 : vector<4x128xf32>
    %140 = vector.extract_strided_slice %100 {offsets = [32, 0], sizes = [4, 128], strides = [1, 1]} : vector<36x128xbf16> to vector<4x128xbf16>
    %c8_97 = arith.constant 8 : index
    %c0_98 = arith.constant 0 : index
    %c0_99 = arith.constant 0 : index
    %141 = vector.load %arg9[%c8_97, %c0_98, %c0_99] : memref<9x128x128xbf16, #tpu.memory_space<vmem>>, vector<1x128x128xbf16>
    %142 = vector.shape_cast %141 : vector<1x128x128xbf16> to vector<128x128xbf16>
    %cst_100 = arith.constant dense<0.000000e+00> : vector<4x128xf32>
    %143 = tpu.matmul %140, %142, %cst_100 {dimension_numbers = #tpu.dot_dimension_numbers<[1], [0], [0], [1], [0, 0, 1, 1], [], []>} : vector<4x128xbf16>, vector<128x128xbf16>, vector<4x128xf32> -> vector<4x128xf32>
    %144 = arith.addf %139, %143 : vector<4x128xf32>
    %c0_101 = arith.constant 0 : index
    %c0_102 = arith.constant 0 : index
    %145 = vector.load %arg10[%c0_101, %c0_102] : memref<1x128xf32, #tpu.memory_space<vmem>>, vector<1x128xf32>
    %146 = vector.broadcast %145 : vector<1x128xf32> to vector<4x128xf32>
    %147 = arith.addf %144, %146 : vector<4x128xf32>
    %cst_103 = arith.constant 0.000000e+00 : f32
    %148 = vector.broadcast %cst_103 : f32 to vector<4x128xf32>
    %149 = arith.maximumf %147, %148 : vector<4x128xf32>
    %150 = arith.truncf %149 : vector<4x128xf32> to vector<4x128xbf16>
    %c0_104 = arith.constant 0 : index
    %c0_105 = arith.constant 0 : index
    %c0_106 = arith.constant 0 : index
    %151 = vector.load %arg2[%c0_104, %c0_105, %c0_106] : memref<1x1x128xbf16, #tpu.memory_space<vmem>>, vector<1x1x128xbf16>
    %152 = vector.shape_cast %151 : vector<1x1x128xbf16> to vector<1x128xbf16>
    %c0_107 = arith.constant 0 : index
    %c0_108 = arith.constant 0 : index
    %153 = vector.load %arg11[%c0_107, %c0_108] : memref<128x128xbf16, #tpu.memory_space<vmem>>, vector<128x128xbf16>
    %cst_109 = arith.constant dense<0.000000e+00> : vector<1x128xf32>
    %154 = tpu.matmul %152, %153, %cst_109 {dimension_numbers = #tpu.dot_dimension_numbers<[1], [0], [0], [1], [0, 0, 1, 1], [], []>} : vector<1x128xbf16>, vector<128x128xbf16>, vector<1x128xf32> -> vector<1x128xf32>
    %c0_110 = arith.constant 0 : index
    %c0_111 = arith.constant 0 : index
    %155 = vector.load %arg12[%c0_110, %c0_111] : memref<1x128xf32, #tpu.memory_space<vmem>>, vector<1x128xf32>
    %156 = arith.addf %154, %155 : vector<1x128xf32>
    %cst_112 = arith.constant 0.000000e+00 : f32
    %157 = vector.broadcast %cst_112 : f32 to vector<1x128xf32>
    %158 = arith.maximumf %156, %157 : vector<1x128xf32>
    %159 = arith.truncf %158 : vector<1x128xf32> to vector<1x128xbf16>
    %c0_113 = arith.constant 0 : index
    %c0_114 = arith.constant 0 : index
    %160 = vector.load %arg14[%c0_113, %c0_114] : memref<128x128xbf16, #tpu.memory_space<vmem>>, vector<128x128xbf16>
    %cst_115 = arith.constant dense<0.000000e+00> : vector<1x128xf32>
    %161 = tpu.matmul %159, %160, %cst_115 {dimension_numbers = #tpu.dot_dimension_numbers<[1], [0], [0], [1], [0, 0, 1, 1], [], []>} : vector<1x128xbf16>, vector<128x128xbf16>, vector<1x128xf32> -> vector<1x128xf32>
    %162 = vector.extract_strided_slice %150 {offsets = [0, 0], sizes = [1, 128], strides = [1, 1]} : vector<4x128xbf16> to vector<1x128xbf16>
    %c0_116 = arith.constant 0 : index
    %c0_117 = arith.constant 0 : index
    %c0_118 = arith.constant 0 : index
    %163 = vector.load %arg13[%c0_116, %c0_117, %c0_118] : memref<4x128x128xbf16, #tpu.memory_space<vmem>>, vector<1x128x128xbf16>
    %164 = vector.shape_cast %163 : vector<1x128x128xbf16> to vector<128x128xbf16>
    %cst_119 = arith.constant dense<0.000000e+00> : vector<1x128xf32>
    %165 = tpu.matmul %162, %164, %cst_119 {dimension_numbers = #tpu.dot_dimension_numbers<[1], [0], [0], [1], [0, 0, 1, 1], [], []>} : vector<1x128xbf16>, vector<128x128xbf16>, vector<1x128xf32> -> vector<1x128xf32>
    %166 = arith.addf %161, %165 : vector<1x128xf32>
    %167 = vector.extract_strided_slice %150 {offsets = [1, 0], sizes = [1, 128], strides = [1, 1]} : vector<4x128xbf16> to vector<1x128xbf16>
    %c1_120 = arith.constant 1 : index
    %c0_121 = arith.constant 0 : index
    %c0_122 = arith.constant 0 : index
    %168 = vector.load %arg13[%c1_120, %c0_121, %c0_122] : memref<4x128x128xbf16, #tpu.memory_space<vmem>>, vector<1x128x128xbf16>
    %169 = vector.shape_cast %168 : vector<1x128x128xbf16> to vector<128x128xbf16>
    %cst_123 = arith.constant dense<0.000000e+00> : vector<1x128xf32>
    %170 = tpu.matmul %167, %169, %cst_123 {dimension_numbers = #tpu.dot_dimension_numbers<[1], [0], [0], [1], [0, 0, 1, 1], [], []>} : vector<1x128xbf16>, vector<128x128xbf16>, vector<1x128xf32> -> vector<1x128xf32>
    %171 = arith.addf %166, %170 : vector<1x128xf32>
    %172 = vector.extract_strided_slice %150 {offsets = [2, 0], sizes = [1, 128], strides = [1, 1]} : vector<4x128xbf16> to vector<1x128xbf16>
    %c2_124 = arith.constant 2 : index
    %c0_125 = arith.constant 0 : index
    %c0_126 = arith.constant 0 : index
    %173 = vector.load %arg13[%c2_124, %c0_125, %c0_126] : memref<4x128x128xbf16, #tpu.memory_space<vmem>>, vector<1x128x128xbf16>
    %174 = vector.shape_cast %173 : vector<1x128x128xbf16> to vector<128x128xbf16>
    %cst_127 = arith.constant dense<0.000000e+00> : vector<1x128xf32>
    %175 = tpu.matmul %172, %174, %cst_127 {dimension_numbers = #tpu.dot_dimension_numbers<[1], [0], [0], [1], [0, 0, 1, 1], [], []>} : vector<1x128xbf16>, vector<128x128xbf16>, vector<1x128xf32> -> vector<1x128xf32>
    %176 = arith.addf %171, %175 : vector<1x128xf32>
    %177 = vector.extract_strided_slice %150 {offsets = [3, 0], sizes = [1, 128], strides = [1, 1]} : vector<4x128xbf16> to vector<1x128xbf16>
    %c3_128 = arith.constant 3 : index
    %c0_129 = arith.constant 0 : index
    %c0_130 = arith.constant 0 : index
    %178 = vector.load %arg13[%c3_128, %c0_129, %c0_130] : memref<4x128x128xbf16, #tpu.memory_space<vmem>>, vector<1x128x128xbf16>
    %179 = vector.shape_cast %178 : vector<1x128x128xbf16> to vector<128x128xbf16>
    %cst_131 = arith.constant dense<0.000000e+00> : vector<1x128xf32>
    %180 = tpu.matmul %177, %179, %cst_131 {dimension_numbers = #tpu.dot_dimension_numbers<[1], [0], [0], [1], [0, 0, 1, 1], [], []>} : vector<1x128xbf16>, vector<128x128xbf16>, vector<1x128xf32> -> vector<1x128xf32>
    %181 = arith.addf %176, %180 : vector<1x128xf32>
    %c0_132 = arith.constant 0 : index
    %c0_133 = arith.constant 0 : index
    %182 = vector.load %arg15[%c0_132, %c0_133] : memref<1x128xf32, #tpu.memory_space<vmem>>, vector<1x128xf32>
    %183 = arith.addf %181, %182 : vector<1x128xf32>
    %cst_134 = arith.constant 0.000000e+00 : f32
    %184 = vector.broadcast %cst_134 : f32 to vector<1x128xf32>
    %185 = arith.maximumf %183, %184 : vector<1x128xf32>
    %c0_135 = arith.constant 0 : index
    %c0_136 = arith.constant 0 : index
    %c0_137 = arith.constant 0 : index
    %186 = vector.load %arg16[%c0_135, %c0_136, %c0_137] : memref<1x1x128xf32, #tpu.memory_space<vmem>>, vector<1x1x128xf32>
    %187 = vector.shape_cast %186 : vector<1x1x128xf32> to vector<1x128xf32>
    %188 = vector.shape_cast %185 : vector<1x128xf32> to vector<1x1x128xf32>
    tpu.vector_store %arg16[%c0_135, %c0_136, %c0_137], %188 {strides = array<i32>} : memref<1x1x128xf32, #tpu.memory_space<vmem>>, vector<1x1x128xf32>,
    return
  }
  func.func @transform_0(%arg0: i32) -> (i32, i32, i32) {
    %c0_i32 = arith.constant 0 : i32
    %c0_i32_0 = arith.constant 0 : i32
    %c0_i32_1 = arith.constant 0 : i32
    return %arg0, %c0_i32, %c0_i32_0 : i32, i32, i32
  }
  func.func @transform_1(%arg0: i32) -> (i32, i32, i32) {
    %c0_i32 = arith.constant 0 : i32
    %c0_i32_0 = arith.constant 0 : i32
    %c0_i32_1 = arith.constant 0 : i32
    return %arg0, %c0_i32, %c0_i32_0 : i32, i32, i32
  }
  func.func @transform_2(%arg0: i32) -> (i32, i32) {
    %c0_i32 = arith.constant 0 : i32
    %c0_i32_0 = arith.constant 0 : i32
    %c0_i32_1 = arith.constant 0 : i32
    return %c0_i32, %c0_i32_0 : i32, i32
  }
  func.func @transform_3(%arg0: i32) -> (i32, i32) {
    %c0_i32 = arith.constant 0 : i32
    %c0_i32_0 = arith.constant 0 : i32
    %c0_i32_1 = arith.constant 0 : i32
    return %c0_i32, %c0_i32_0 : i32, i32
  }
  func.func @transform_4(%arg0: i32) -> (i32, i32) {
    %c0_i32 = arith.constant 0 : i32
    %c0_i32_0 = arith.constant 0 : i32
    %c0_i32_1 = arith.constant 0 : i32
    return %c0_i32, %c0_i32_0 : i32, i32
  }
  func.func @transform_5(%arg0: i32) -> (i32, i32, i32) {
    %c0_i32 = arith.constant 0 : i32
    %c0_i32_0 = arith.constant 0 : i32
    %c0_i32_1 = arith.constant 0 : i32
    %c0_i32_2 = arith.constant 0 : i32
    return %c0_i32, %c0_i32_0, %c0_i32_1 : i32, i32, i32
  }
  func.func @transform_6(%arg0: i32) -> (i32, i32) {
    %c0_i32 = arith.constant 0 : i32
    %c0_i32_0 = arith.constant 0 : i32
    %c0_i32_1 = arith.constant 0 : i32
    return %c0_i32, %c0_i32_0 : i32, i32
  }
  func.func @transform_7(%arg0: i32) -> (i32, i32) {
    %c0_i32 = arith.constant 0 : i32
    %c0_i32_0 = arith.constant 0 : i32
    %c0_i32_1 = arith.constant 0 : i32
    return %c0_i32, %c0_i32_0 : i32, i32
  }
  func.func @transform_8(%arg0: i32) -> (i32, i32, i32) {
    %c0_i32 = arith.constant 0 : i32
    %c0_i32_0 = arith.constant 0 : i32
    %c0_i32_1 = arith.constant 0 : i32
    %c0_i32_2 = arith.constant 0 : i32
    return %c0_i32, %c0_i32_0, %c0_i32_1 : i32, i32, i32
  }
  func.func @transform_9(%arg0: i32) -> (i32, i32) {
    %c0_i32 = arith.constant 0 : i32
    %c0_i32_0 = arith.constant 0 : i32
    %c0_i32_1 = arith.constant 0 : i32
    return %c0_i32, %c0_i32_0 : i32, i32
  }
  func.func @transform_10(%arg0: i32) -> (i32, i32) {
    %c0_i32 = arith.constant 0 : i32
    %c0_i32_0 = arith.constant 0 : i32
    %c0_i32_1 = arith.constant 0 : i32
    return %c0_i32, %c0_i32_0 : i32, i32
  }
  func.func @transform_11(%arg0: i32) -> (i32, i32) {
    %c0_i32 = arith.constant 0 : i32
    %c0_i32_0 = arith.constant 0 : i32
    %c0_i32_1 = arith.constant 0 : i32
    return %c0_i32, %c0_i32_0 : i32, i32
  }
  func.func @transform_12(%arg0: i32) -> (i32, i32, i32) {
    %c0_i32 = arith.constant 0 : i32
    %c0_i32_0 = arith.constant 0 : i32
    %c0_i32_1 = arith.constant 0 : i32
    %c0_i32_2 = arith.constant 0 : i32
    return %c0_i32, %c0_i32_0, %c0_i32_1 : i32, i32, i32
  }
  func.func @transform_13(%arg0: i32) -> (i32, i32) {
    %c0_i32 = arith.constant 0 : i32
    %c0_i32_0 = arith.constant 0 : i32
    %c0_i32_1 = arith.constant 0 : i32
    return %c0_i32, %c0_i32_0 : i32, i32
  }
  func.func @transform_14(%arg0: i32) -> (i32, i32) {
    %c0_i32 = arith.constant 0 : i32
    %c0_i32_0 = arith.constant 0 : i32
    %c0_i32_1 = arith.constant 0 : i32
    return %c0_i32, %c0_i32_0 : i32, i32
  }
  func.func @transform_15(%arg0: i32) -> (i32, i32, i32) {
    %c0_i32 = arith.constant 0 : i32
    %c0_i32_0 = arith.constant 0 : i32
    %c0_i32_1 = arith.constant 0 : i32
    return %arg0, %c0_i32, %c0_i32_0 : i32, i32, i32
  }
}

</mosaic_0001>

<llo_original>
// kernel: fcombined_forward.1
$region0: #{fcombined_forward.1}
  #allocation0 [shape = 'u32[]', space=smem, size = 0x4, offset = 0x4, fixed_abs, tag = 'smem constant byte address 0x4 - core index']
  #allocation1 [shape = 'u32[144,128]{1,0:T(1,128)}', space=vmem, size = 0x12000, scoped, tag = 'internal scratch']
  %s0 = inlined_call_operand.vmem [shape: bf16[2,128,256], index: 0, kind: input, shape index: {}]
  %s1 = inlined_call_operand.vmem [shape: bf16[2,1,128], index: 1, kind: input, shape index: {}]
  %s2 = inlined_call_operand.vmem [shape: bf16[256,128], index: 2, kind: input, shape index: {}]
  %s3 = inlined_call_operand.vmem [shape: f32[1,128], index: 3, kind: input, shape index: {}]
  %s4 = inlined_call_operand.vmem [shape: bf16[256,128], index: 4, kind: input, shape index: {}]
  %s5 = inlined_call_operand.vmem [shape: bf16[16,128,128], index: 5, kind: input, shape index: {}]
  %s6 = inlined_call_operand.vmem [shape: f32[1,128], index: 6, kind: input, shape index: {}]
  %s7 = inlined_call_operand.vmem [shape: bf16[36,16], index: 7, kind: input, shape index: {}]
  %s8 = inlined_call_operand.vmem [shape: bf16[9,128,128], index: 8, kind: input, shape index: {}]
  %s9 = inlined_call_operand.vmem [shape: f32[1,128], index: 9, kind: input, shape index: {}]
  %s10 = inlined_call_operand.vmem [shape: bf16[128,128], index: 10, kind: input, shape index: {}]
  %s11 = inlined_call_operand.vmem [shape: f32[1,128], index: 11, kind: input, shape index: {}]
  %s12 = inlined_call_operand.vmem [shape: bf16[4,128,128], index: 12, kind: input, shape index: {}]
  %s13 = inlined_call_operand.vmem [shape: bf16[128,128], index: 13, kind: input, shape index: {}]
  %s14 = inlined_call_operand.vmem [shape: f32[1,128], index: 14, kind: input, shape index: {}]
  %s15 = inlined_call_operand.hbm [shape: f32[2,1,128], index: 15, kind: output, shape index: {}]
  %s16 = sld [smem:[#allocation0]]
  $region93: #{fcombined_forward.1} parent=0
    _
  %s18 = ssub.s32 1, %s16
  %s19 = scalar_select 0, %s18, %s16
  $region1: #{fcombined_forward.1} parent=0
    #allocation2 [shape = 'u8[1024]{0}', space=vmem, size = 0x400, scoped, tag = 'output window, operand 0']
    #allocation3 [shape = 's32[2]{0}', space=sflag, size = 0x8, scoped, tag = 'scoped memory for fcombined_forward.1']
    %20 = vsyncpa [#allocation3], 0
    %s21 = scalar_lea.sflag [#allocation3], 1
    %22 = vsyncpa %s21, 0
    loop: start=0, step=1, limit=4
    $region2: #{fcombined_forward.1} parent=1 // loop_pre_header
      _
    $region3: #{fcombined_forward.1} parent=1 // loop_header
      %s24 = sphi 0, %s28
      %p25 = scmp.ge.s32.totalorder %s24, 4
      %s34 = sphi 0, %s36
      %s37 = sphi 0, %s34
      %s38 = sphi 0, %s37
      %s54 = sphi 0, %s38
      %s60 = sphi 0, %s62
      %s63 = sphi 0, %s60
      %s64 = sphi 0, %s63
      %s80 = sphi 0, %s64
      %s84 = sphi 0, %s84
      %s86 = sphi 0, %s84
      %s87 = sphi 0, %s86
      %s101 = sphi 0, %s87
      %s105 = sphi 0, %s105
      %s107 = sphi 0, %s105
      %s108 = sphi 0, %s107
      %s122 = sphi 0, %s108
      %s126 = sphi 0, %s126
      %s128 = sphi 0, %s126
      %s129 = sphi 0, %s128
      %s143 = sphi 0, %s129
      %s147 = sphi 0, %s147
      %s149 = sphi 0, %s147
      %s150 = sphi 0, %s149
      %s164 = sphi 0, %s150
      %s168 = sphi 0, %s168
      %s170 = sphi 0, %s168
      %s171 = sphi 0, %s170
      %s185 = sphi 0, %s171
      %s189 = sphi 0, %s189
      %s191 = sphi 0, %s189
      %s192 = sphi 0, %s191
      %s206 = sphi 0, %s192
      %s210 = sphi 0, %s210
      %s212 = sphi 0, %s210
      %s213 = sphi 0, %s212
      %s227 = sphi 0, %s213
      %s231 = sphi 0, %s231
      %s233 = sphi 0, %s231
      %s234 = sphi 0, %s233
      %s248 = sphi 0, %s234
      %s252 = sphi 0, %s252
      %s254 = sphi 0, %s252
      %s255 = sphi 0, %s254
      %s269 = sphi 0, %s255
      %s273 = sphi 0, %s273
      %s275 = sphi 0, %s273
      %s276 = sphi 0, %s275
      %s290 = sphi 0, %s276
      %s294 = sphi 0, %s294
      %s296 = sphi 0, %s294
      %s297 = sphi 0, %s296
      %s311 = sphi 0, %s297
      %s315 = sphi 0, %s315
      %s317 = sphi 0, %s315
      %s318 = sphi 0, %s317
      %s332 = sphi 0, %s318
      %s336 = sphi 0, %s336
      %s338 = sphi 0, %s336
      %s339 = sphi 0, %s338
      %s353 = sphi 0, %s339
      %s359 = sphi 0, %s361
      %s362 = sphi 0, %s359
      %s363 = sphi 0, %s362
      %s379 = sphi 0, %s363
    $region4: #{fcombined_forward.1} parent=1 // loop_header_branch
      %27 = sbr.rel (%p25) target = $region8
    $region5: #{fcombined_forward.1} parent=1 // loop_body
      %s29 = ssub.s32 %s24, 1
      %s30 = ssub.s32 %s24, 2
      %s31 = sadd.s32 %s24, 1
      %s32 = ssub.s32 %s24, %s31
      %p33 = scmp.eq.s32.totalorder %s32, 0
      %s35 = sadd.s32 %s34, 1
      %s36 = scalar_select %p33, %s34, %s35
      %p39 = pneg %p33
      %p40 = scmp.eq.s32.totalorder %s24, 1
      %p41 = por %p39, %p40
      %p42 = scmp.ne.s32.totalorder %s34, %s37
      %p43 = scmp.eq.s32.totalorder %s24, 0
      %p44 = por %p42, %p43
      %p45 = scmp.ne.s32.totalorder %s34, %s37
      %p46 = scmp.eq.s32.totalorder %s29, 1
      %p47 = por %p45, %p46
      %p48 = scmp.ne.s32.totalorder %s37, %s38
      %p49 = scmp.eq.s32.totalorder %s29, 0
      %p50 = por %p48, %p49
      %p51 = scmp.ne.s32.totalorder %s37, %s38
      %p52 = scmp.eq.s32.totalorder %s30, 1
      %p53 = por %p51, %p52
      %p55 = scmp.ne.s32.totalorder %s38, %s54
      %p56 = scmp.eq.s32.totalorder %s30, 0
      %p57 = por %p55, %p56
      %s58 = ssub.s32 %s24, %s31
      %p59 = scmp.eq.s32.totalorder %s58, 0
      %s61 = sadd.s32 %s60, 1
      %s62 = scalar_select %p59, %s60, %s61
      %p65 = pneg %p59
      %p66 = scmp.eq.s32.totalorder %s24, 1
      %p67 = por %p65, %p66
      %p68 = scmp.ne.s32.totalorder %s60, %s63
      %p69 = scmp.eq.s32.totalorder %s24, 0
      %p70 = por %p68, %p69
      %p71 = scmp.ne.s32.totalorder %s60, %s63
      %p72 = scmp.eq.s32.totalorder %s29, 1
      %p73 = por %p71, %p72
      %p74 = scmp.ne.s32.totalorder %s63, %s64
      %p75 = scmp.eq.s32.totalorder %s29, 0
      %p76 = por %p74, %p75
      %p77 = scmp.ne.s32.totalorder %s63, %s64
      %p78 = scmp.eq.s32.totalorder %s30, 1
      %p79 = por %p77, %p78
      %p81 = scmp.ne.s32.totalorder %s64, %s80
      %p82 = scmp.eq.s32.totalorder %s30, 0
      %p83 = por %p81, %p82
      %s85 = sadd.s32 %s84, 1
      %p88 = scmp.eq.s32.totalorder %s24, 1
      %p89 = scmp.ne.s32.totalorder %s84, %s86
      %p90 = scmp.eq.s32.totalorder %s24, 0
      %p91 = por %p89, %p90
      %p92 = scmp.ne.s32.totalorder %s84, %s86
      %p93 = scmp.eq.s32.totalorder %s29, 1
      %p94 = por %p92, %p93
      %p95 = scmp.ne.s32.totalorder %s86, %s87
      %p96 = scmp.eq.s32.totalorder %s29, 0
      %p97 = por %p95, %p96
      %p98 = scmp.ne.s32.totalorder %s86, %s87
      %p99 = scmp.eq.s32.totalorder %s30, 1
      %p100 = por %p98, %p99
      %p102 = scmp.ne.s32.totalorder %s87, %s101
      %p103 = scmp.eq.s32.totalorder %s30, 0
      %p104 = por %p102, %p103
      %s106 = sadd.s32 %s105, 1
      %p109 = scmp.eq.s32.totalorder %s24, 1
      %p110 = scmp.ne.s32.totalorder %s105, %s107
      %p111 = scmp.eq.s32.totalorder %s24, 0
      %p112 = por %p110, %p111
      %p113 = scmp.ne.s32.totalorder %s105, %s107
      %p114 = scmp.eq.s32.totalorder %s29, 1
      %p115 = por %p113, %p114
      %p116 = scmp.ne.s32.totalorder %s107, %s108
      %p117 = scmp.eq.s32.totalorder %s29, 0
      %p118 = por %p116, %p117
      %p119 = scmp.ne.s32.totalorder %s107, %s108
      %p120 = scmp.eq.s32.totalorder %s30, 1
      %p121 = por %p119, %p120
      %p123 = scmp.ne.s32.totalorder %s108, %s122
      %p124 = scmp.eq.s32.totalorder %s30, 0
      %p125 = por %p123, %p124
      %s127 = sadd.s32 %s126, 1
      %p130 = scmp.eq.s32.totalorder %s24, 1
      %p131 = scmp.ne.s32.totalorder %s126, %s128
      %p132 = scmp.eq.s32.totalorder %s24, 0
      %p133 = por %p131, %p132
      %p134 = scmp.ne.s32.totalorder %s126, %s128
      %p135 = scmp.eq.s32.totalorder %s29, 1
      %p136 = por %p134, %p135
      %p137 = scmp.ne.s32.totalorder %s128, %s129
      %p138 = scmp.eq.s32.totalorder %s29, 0
      %p139 = por %p137, %p138
      %p140 = scmp.ne.s32.totalorder %s128, %s129
      %p141 = scmp.eq.s32.totalorder %s30, 1
      %p142 = por %p140, %p141
      %p144 = scmp.ne.s32.totalorder %s129, %s143
      %p145 = scmp.eq.s32.totalorder %s30, 0
      %p146 = por %p144, %p145
      %s148 = sadd.s32 %s147, 1
      %p151 = scmp.eq.s32.totalorder %s24, 1
      %p152 = scmp.ne.s32.totalorder %s147, %s149
      %p153 = scmp.eq.s32.totalorder %s24, 0
      %p154 = por %p152, %p153
      %p155 = scmp.ne.s32.totalorder %s147, %s149
      %p156 = scmp.eq.s32.totalorder %s29, 1
      %p157 = por %p155, %p156
      %p158 = scmp.ne.s32.totalorder %s149, %s150
      %p159 = scmp.eq.s32.totalorder %s29, 0
      %p160 = por %p158, %p159
      %p161 = scmp.ne.s32.totalorder %s149, %s150
      %p162 = scmp.eq.s32.totalorder %s30, 1
      %p163 = por %p161, %p162
      %p165 = scmp.ne.s32.totalorder %s150, %s164
      %p166 = scmp.eq.s32.totalorder %s30, 0
      %p167 = por %p165, %p166
      %s169 = sadd.s32 %s168, 1
      %p172 = scmp.eq.s32.totalorder %s24, 1
      %p173 = scmp.ne.s32.totalorder %s168, %s170
      %p174 = scmp.eq.s32.totalorder %s24, 0
      %p175 = por %p173, %p174
      %p176 = scmp.ne.s32.totalorder %s168, %s170
      %p177 = scmp.eq.s32.totalorder %s29, 1
      %p178 = por %p176, %p177
      %p179 = scmp.ne.s32.totalorder %s170, %s171
      %p180 = scmp.eq.s32.totalorder %s29, 0
      %p181 = por %p179, %p180
      %p182 = scmp.ne.s32.totalorder %s170, %s171
      %p183 = scmp.eq.s32.totalorder %s30, 1
      %p184 = por %p182, %p183
      %p186 = scmp.ne.s32.totalorder %s171, %s185
      %p187 = scmp.eq.s32.totalorder %s30, 0
      %p188 = por %p186, %p187
      %s190 = sadd.s32 %s189, 1
      %p193 = scmp.eq.s32.totalorder %s24, 1
      %p194 = scmp.ne.s32.totalorder %s189, %s191
      %p195 = scmp.eq.s32.totalorder %s24, 0
      %p196 = por %p194, %p195
      %p197 = scmp.ne.s32.totalorder %s189, %s191
      %p198 = scmp.eq.s32.totalorder %s29, 1
      %p199 = por %p197, %p198
      %p200 = scmp.ne.s32.totalorder %s191, %s192
      %p201 = scmp.eq.s32.totalorder %s29, 0
      %p202 = por %p200, %p201
      %p203 = scmp.ne.s32.totalorder %s191, %s192
      %p204 = scmp.eq.s32.totalorder %s30, 1
      %p205 = por %p203, %p204
      %p207 = scmp.ne.s32.totalorder %s192, %s206
      %p208 = scmp.eq.s32.totalorder %s30, 0
      %p209 = por %p207, %p208
      %s211 = sadd.s32 %s210, 1
      %p214 = scmp.eq.s32.totalorder %s24, 1
      %p215 = scmp.ne.s32.totalorder %s210, %s212
      %p216 = scmp.eq.s32.totalorder %s24, 0
      %p217 = por %p215, %p216
      %p218 = scmp.ne.s32.totalorder %s210, %s212
      %p219 = scmp.eq.s32.totalorder %s29, 1
      %p220 = por %p218, %p219
      %p221 = scmp.ne.s32.totalorder %s212, %s213
      %p222 = scmp.eq.s32.totalorder %s29, 0
      %p223 = por %p221, %p222
      %p224 = scmp.ne.s32.totalorder %s212, %s213
      %p225 = scmp.eq.s32.totalorder %s30, 1
      %p226 = por %p224, %p225
      %p228 = scmp.ne.s32.totalorder %s213, %s227
      %p229 = scmp.eq.s32.totalorder %s30, 0
      %p230 = por %p228, %p229
      %s232 = sadd.s32 %s231, 1
      %p235 = scmp.eq.s32.totalorder %s24, 1
      %p236 = scmp.ne.s32.totalorder %s231, %s233
      %p237 = scmp.eq.s32.totalorder %s24, 0
      %p238 = por %p236, %p237
      %p239 = scmp.ne.s32.totalorder %s231, %s233
      %p240 = scmp.eq.s32.totalorder %s29, 1
      %p241 = por %p239, %p240
      %p242 = scmp.ne.s32.totalorder %s233, %s234
      %p243 = scmp.eq.s32.totalorder %s29, 0
      %p244 = por %p242, %p243
      %p245 = scmp.ne.s32.totalorder %s233, %s234
      %p246 = scmp.eq.s32.totalorder %s30, 1
      %p247 = por %p245, %p246
      %p249 = scmp.ne.s32.totalorder %s234, %s248
      %p250 = scmp.eq.s32.totalorder %s30, 0
      %p251 = por %p249, %p250
      %s253 = sadd.s32 %s252, 1
      %p256 = scmp.eq.s32.totalorder %s24, 1
      %p257 = scmp.ne.s32.totalorder %s252, %s254
      %p258 = scmp.eq.s32.totalorder %s24, 0
      %p259 = por %p257, %p258
      %p260 = scmp.ne.s32.totalorder %s252, %s254
      %p261 = scmp.eq.s32.totalorder %s29, 1
      %p262 = por %p260, %p261
      %p263 = scmp.ne.s32.totalorder %s254, %s255
      %p264 = scmp.eq.s32.totalorder %s29, 0
      %p265 = por %p263, %p264
      %p266 = scmp.ne.s32.totalorder %s254, %s255
      %p267 = scmp.eq.s32.totalorder %s30, 1
      %p268 = por %p266, %p267
      %p270 = scmp.ne.s32.totalorder %s255, %s269
      %p271 = scmp.eq.s32.totalorder %s30, 0
      %p272 = por %p270, %p271
      %s274 = sadd.s32 %s273, 1
      %p277 = scmp.eq.s32.totalorder %s24, 1
      %p278 = scmp.ne.s32.totalorder %s273, %s275
      %p279 = scmp.eq.s32.totalorder %s24, 0
      %p280 = por %p278, %p279
      %p281 = scmp.ne.s32.totalorder %s273, %s275
      %p282 = scmp.eq.s32.totalorder %s29, 1
      %p283 = por %p281, %p282
      %p284 = scmp.ne.s32.totalorder %s275, %s276
      %p285 = scmp.eq.s32.totalorder %s29, 0
      %p286 = por %p284, %p285
      %p287 = scmp.ne.s32.totalorder %s275, %s276
      %p288 = scmp.eq.s32.totalorder %s30, 1
      %p289 = por %p287, %p288
      %p291 = scmp.ne.s32.totalorder %s276, %s290
      %p292 = scmp.eq.s32.totalorder %s30, 0
      %p293 = por %p291, %p292
      %s295 = sadd.s32 %s294, 1
      %p298 = scmp.eq.s32.totalorder %s24, 1
      %p299 = scmp.ne.s32.totalorder %s294, %s296
      %p300 = scmp.eq.s32.totalorder %s24, 0
      %p301 = por %p299, %p300
      %p302 = scmp.ne.s32.totalorder %s294, %s296
      %p303 = scmp.eq.s32.totalorder %s29, 1
      %p304 = por %p302, %p303
      %p305 = scmp.ne.s32.totalorder %s296, %s297
      %p306 = scmp.eq.s32.totalorder %s29, 0
      %p307 = por %p305, %p306
      %p308 = scmp.ne.s32.totalorder %s296, %s297
      %p309 = scmp.eq.s32.totalorder %s30, 1
      %p310 = por %p308, %p309
      %p312 = scmp.ne.s32.totalorder %s297, %s311
      %p313 = scmp.eq.s32.totalorder %s30, 0
      %p314 = por %p312, %p313
      %s316 = sadd.s32 %s315, 1
      %p319 = scmp.eq.s32.totalorder %s24, 1
      %p320 = scmp.ne.s32.totalorder %s315, %s317
      %p321 = scmp.eq.s32.totalorder %s24, 0
      %p322 = por %p320, %p321
      %p323 = scmp.ne.s32.totalorder %s315, %s317
      %p324 = scmp.eq.s32.totalorder %s29, 1
      %p325 = por %p323, %p324
      %p326 = scmp.ne.s32.totalorder %s317, %s318
      %p327 = scmp.eq.s32.totalorder %s29, 0
      %p328 = por %p326, %p327
      %p329 = scmp.ne.s32.totalorder %s317, %s318
      %p330 = scmp.eq.s32.totalorder %s30, 1
      %p331 = por %p329, %p330
      %p333 = scmp.ne.s32.totalorder %s318, %s332
      %p334 = scmp.eq.s32.totalorder %s30, 0
      %p335 = por %p333, %p334
      %s337 = sadd.s32 %s336, 1
      %p340 = scmp.eq.s32.totalorder %s24, 1
      %p341 = scmp.ne.s32.totalorder %s336, %s338
      %p342 = scmp.eq.s32.totalorder %s24, 0
      %p343 = por %p341, %p342
      %p344 = scmp.ne.s32.totalorder %s336, %s338
      %p345 = scmp.eq.s32.totalorder %s29, 1
      %p346 = por %p344, %p345
      %p347 = scmp.ne.s32.totalorder %s338, %s339
      %p348 = scmp.eq.s32.totalorder %s29, 0
      %p349 = por %p347, %p348
      %p350 = scmp.ne.s32.totalorder %s338, %s339
      %p351 = scmp.eq.s32.totalorder %s30, 1
      %p352 = por %p350, %p351
      %p354 = scmp.ne.s32.totalorder %s339, %s353
      %p355 = scmp.eq.s32.totalorder %s30, 0
      %p356 = por %p354, %p355
      %s357 = ssub.s32 %s24, %s31
      %p358 = scmp.eq.s32.totalorder %s357, 0
      %s360 = sadd.s32 %s359, 1
      %s361 = scalar_select %p358, %s359, %s360
      %p364 = pneg %p358
      %p365 = scmp.eq.s32.totalorder %s24, 1
      %p366 = por %p364, %p365
      %p367 = scmp.ne.s32.totalorder %s359, %s362
      %p368 = scmp.eq.s32.totalorder %s24, 0
      %p369 = por %p367, %p368
      %p370 = scmp.ne.s32.totalorder %s359, %s362
      %p371 = scmp.eq.s32.totalorder %s29, 1
      %p372 = por %p370, %p371
      %p373 = scmp.ne.s32.totalorder %s362, %s363
      %p374 = scmp.eq.s32.totalorder %s29, 0
      %p375 = por %p373, %p374
      %p376 = scmp.ne.s32.totalorder %s362, %s363
      %p377 = scmp.eq.s32.totalorder %s30, 1
      %p378 = por %p376, %p377
      %p380 = scmp.ne.s32.totalorder %s363, %s379
      %p381 = scmp.eq.s32.totalorder %s30, 0
      %p382 = por %p380, %p381
      %p383 = scmp.le.s32.totalorder 1, %s24
      %p384 = scmp.lt.s32.totalorder %s24, 3
      %p385 = pnand %p383, %p384
      %p386 = pneg %p385
      // Predicated region
      $region9: #{fcombined_forward.1} parent=5 // pred_check
        _
      $region10: #{fcombined_forward.1} parent=5 // pred_check_branch
        %388 = sbr.rel (%p385) target = $region12
      $region11: #{fcombined_forward.1} parent=5 // pred_region
        %s389 = ssub.s32 %s24, 1
        // Predicated region
        $region13: #{fcombined_forward.1} parent=11 // pred_check
          %p390 = pneg %p97
        $region14: #{fcombined_forward.1} parent=11 // pred_check_branch
          %392 = sbr.rel (%p390) target = $region16
        $region15: #{fcombined_forward.1} parent=11 // pred_region
          _
        $region16: #{fcombined_forward.1} parent=11 // pred_fallthru
          _
        // Predicated region
        $region17: #{fcombined_forward.1} parent=11 // pred_check
          %p393 = pneg %p118
        $region18: #{fcombined_forward.1} parent=11 // pred_check_branch
          %395 = sbr.rel (%p393) target = $region20
        $region19: #{fcombined_forward.1} parent=11 // pred_region
          _
        $region20: #{fcombined_forward.1} parent=11 // pred_fallthru
          _
        // Predicated region
        $region21: #{fcombined_forward.1} parent=11 // pred_check
          %p396 = pneg %p139
        $region22: #{fcombined_forward.1} parent=11 // pred_check_branch
          %398 = sbr.rel (%p396) target = $region24
        $region23: #{fcombined_forward.1} parent=11 // pred_region
          _
        $region24: #{fcombined_forward.1} parent=11 // pred_fallthru
          _
        // Predicated region
        $region25: #{fcombined_forward.1} parent=11 // pred_check
          %p399 = pneg %p160
        $region26: #{fcombined_forward.1} parent=11 // pred_check_branch
          %401 = sbr.rel (%p399) target = $region28
        $region27: #{fcombined_forward.1} parent=11 // pred_region
          _
        $region28: #{fcombined_forward.1} parent=11 // pred_fallthru
          _
        // Predicated region
        $region29: #{fcombined_forward.1} parent=11 // pred_check
          %p402 = pneg %p181
        $region30: #{fcombined_forward.1} parent=11 // pred_check_branch
          %404 = sbr.rel (%p402) target = $region32
        $region31: #{fcombined_forward.1} parent=11 // pred_region
          _
        $region32: #{fcombined_forward.1} parent=11 // pred_fallthru
          _
        // Predicated region
        $region33: #{fcombined_forward.1} parent=11 // pred_check
          %p405 = pneg %p202
        $region34: #{fcombined_forward.1} parent=11 // pred_check_branch
          %407 = sbr.rel (%p405) target = $region36
        $region35: #{fcombined_forward.1} parent=11 // pred_region
          _
        $region36: #{fcombined_forward.1} parent=11 // pred_fallthru
          _
        // Predicated region
        $region37: #{fcombined_forward.1} parent=11 // pred_check
          %p408 = pneg %p223
        $region38: #{fcombined_forward.1} parent=11 // pred_check_branch
          %410 = sbr.rel (%p408) target = $region40
        $region39: #{fcombined_forward.1} parent=11 // pred_region
          _
        $region40: #{fcombined_forward.1} parent=11 // pred_fallthru
          _
        // Predicated region
        $region41: #{fcombined_forward.1} parent=11 // pred_check
          %p411 = pneg %p244
        $region42: #{fcombined_forward.1} parent=11 // pred_check_branch
          %413 = sbr.rel (%p411) target = $region44
        $region43: #{fcombined_forward.1} parent=11 // pred_region
          _
        $region44: #{fcombined_forward.1} parent=11 // pred_fallthru
          _
        // Predicated region
        $region45: #{fcombined_forward.1} parent=11 // pred_check
          %p414 = pneg %p265
        $region46: #{fcombined_forward.1} parent=11 // pred_check_branch
          %416 = sbr.rel (%p414) target = $region48
        $region47: #{fcombined_forward.1} parent=11 // pred_region
          _
        $region48: #{fcombined_forward.1} parent=11 // pred_fallthru
          _
        // Predicated region
        $region49: #{fcombined_forward.1} parent=11 // pred_check
          %p417 = pneg %p286
        $region50: #{fcombined_forward.1} parent=11 // pred_check_branch
          %419 = sbr.rel (%p417) target = $region52
        $region51: #{fcombined_forward.1} parent=11 // pred_region
          _
        $region52: #{fcombined_forward.1} parent=11 // pred_fallthru
          _
        // Predicated region
        $region53: #{fcombined_forward.1} parent=11 // pred_check
          %p420 = pneg %p307
        $region54: #{fcombined_forward.1} parent=11 // pred_check_branch
          %422 = sbr.rel (%p420) target = $region56
        $region55: #{fcombined_forward.1} parent=11 // pred_region
          _
        $region56: #{fcombined_forward.1} parent=11 // pred_fallthru
          _
        // Predicated region
        $region57: #{fcombined_forward.1} parent=11 // pred_check
          %p423 = pneg %p328
        $region58: #{fcombined_forward.1} parent=11 // pred_check_branch
          %425 = sbr.rel (%p423) target = $region60
        $region59: #{fcombined_forward.1} parent=11 // pred_region
          _
        $region60: #{fcombined_forward.1} parent=11 // pred_fallthru
          _
        // Predicated region
        $region61: #{fcombined_forward.1} parent=11 // pred_check
          %p426 = pneg %p349
        $region62: #{fcombined_forward.1} parent=11 // pred_check_branch
          %428 = sbr.rel (%p426) target = $region64
        $region63: #{fcombined_forward.1} parent=11 // pred_region
          _
        $region64: #{fcombined_forward.1} parent=11 // pred_fallthru
          _
      $region12: #{fcombined_forward.1} parent=5 // pred_fallthru
        _
      %p429 = scmp.lt.s32.totalorder %s24, 2
      // Predicated region
      $region65: #{fcombined_forward.1} parent=5 // pred_check
        %p430 = pneg %p429
      $region66: #{fcombined_forward.1} parent=5 // pred_check_branch
        %432 = sbr.rel (%p430) target = $region68
      $region67: #{fcombined_forward.1} parent=5 // pred_region
        // Predicated region
        $region69: #{fcombined_forward.1} parent=67 // pred_check
          %p433 = pneg %p44
        $region70: #{fcombined_forward.1} parent=67 // pred_check_branch
          %435 = sbr.rel (%p433) target = $region72
        $region71: #{fcombined_forward.1} parent=67 // pred_region
          %p436 = scmp.lt.s32.totalorder %s24, 1
          %s437 = scalar_select %p436, %s24, 1
          %s438 = smul.addr %s437, 32
          %s439 = smul.addr %s438, 4
          %s440 = scalar_lea.vmem %s0, %s439
        $region72: #{fcombined_forward.1} parent=67 // pred_fallthru
          _
        // Predicated region
        $region73: #{fcombined_forward.1} parent=67 // pred_check
          %p441 = pneg %p70
        $region74: #{fcombined_forward.1} parent=67 // pred_check_branch
          %443 = sbr.rel (%p441) target = $region76
        $region75: #{fcombined_forward.1} parent=67 // pred_region
          %p444 = scmp.lt.s32.totalorder %s24, 1
          %s445 = scalar_select %p444, %s24, 1
          %s446 = scalar_lea.vmem %s1, %s445
        $region76: #{fcombined_forward.1} parent=67 // pred_fallthru
          _
      $region68: #{fcombined_forward.1} parent=5 // pred_fallthru
        _
      %p447 = scmp.le.s32.totalorder 1, %s24
      %p448 = scmp.lt.s32.totalorder %s24, 3
      %p449 = pnand %p447, %p448
      %p450 = pneg %p449
      // Predicated region
      $region77: #{fcombined_forward.1} parent=5 // pred_check
        _
      $region78: #{fcombined_forward.1} parent=5 // pred_check_branch
        %452 = sbr.rel (%p449) target = $region80
      $region79: #{fcombined_forward.1} parent=5 // pred_region
        %s453 = ssub.s32 %s24, 1
        %p454 = scmp.lt.s32.totalorder %s29, 1
        %s455 = scalar_select %p454, %s29, 1
        %s456 = smul.addr %s455, 32
        %s457 = smul.addr %s456, 4
        %s458 = scalar_lea.vmem %s0, %s457
        %p459 = pneg %p50
        %p460 = pneg %p47
        %p461 = scmp.lt.s32.totalorder %s29, 1
        %s462 = scalar_select %p461, %s29, 1
        %s463 = scalar_lea.vmem %s1, %s462
        %p464 = pneg %p76
        %p465 = pneg %p73
        %p466 = pneg %p97
        %p467 = pneg %p94
        %p468 = pneg %p118
        %p469 = pneg %p115
        %p470 = pneg %p139
        %p471 = pneg %p136
        %p472 = pneg %p160
        %p473 = pneg %p157
        %p474 = pneg %p181
        %p475 = pneg %p178
        %p476 = pneg %p202
        %p477 = pneg %p199
        %p478 = pneg %p223
        %p479 = pneg %p220
        %p480 = pneg %p244
        %p481 = pneg %p241
        %p482 = pneg %p265
        %p483 = pneg %p262
        %p484 = pneg %p286
        %p485 = pneg %p283
        %p486 = pneg %p307
        %p487 = pneg %p304
        %p488 = pneg %p328
        %p489 = pneg %p325
        %p490 = pneg %p349
        %p491 = pneg %p346
        %p492 = pneg %p375
        %p493 = pneg %p372
        %s494 = sand.u32 %s362, 1
        %s495 = scalar_lea.sflag [#allocation3], %s494
        %s496 = sand.u32 %s362, 1
        %s497 = scalar_lea.vmem [#allocation2], %s496
        %p498 = scmp.lt.s32.totalorder %s29, 1
        %s499 = scalar_select %p498, %s29, 1
        %s500 = smul.addr %s499, 32
        %s501 = smul.addr %s500, 4
        %s502 = scalar_lea.vmem %s0, %s501
        %p503 = scmp.lt.s32.totalorder %s29, 1
        %s504 = scalar_select %p503, %s29, 1
        %s505 = scalar_lea.vmem %s1, %s504
        %v507 = vld [vmem:[%s502] sm:$0xff]
        %v508 = vld [vmem:[%s502 + $0x8] sm:$0xff]
        %v509 = vld [vmem:[%s502 + $0x10] sm:$0xff]
        %v510 = vld [vmem:[%s502 + $0x18] sm:$0xff]
        %v511 = vld [vmem:[%s502 + $0x20] sm:$0xff]
        %v512 = vld [vmem:[%s502 + $0x28] sm:$0xff]
        %v513 = vld [vmem:[%s502 + $0x30] sm:$0xff]
        %v514 = vld [vmem:[%s502 + $0x38] sm:$0xff]
        %v515 = vld [vmem:[%s502 + $0x40] sm:$0xff]
        %v516 = vld [vmem:[%s502 + $0x48] sm:$0xff]
        %v517 = vld [vmem:[%s502 + $0x50] sm:$0xff]
        %v518 = vld [vmem:[%s502 + $0x58] sm:$0xff]
        %v519 = vld [vmem:[%s502 + $0x60] sm:$0xff]
        %v520 = vld [vmem:[%s502 + $0x68] sm:$0xff]
        %v521 = vld [vmem:[%s502 + $0x70] sm:$0xff]
        %v522 = vld [vmem:[%s502 + $0x78] sm:$0xff]
        %v523 = vld [vmem:[%s2] sm:$0xf]
        %v524 = vld [vmem:[%s2 + $0x4] sm:$0xf]
        %v525 = vld [vmem:[%s2 + $0x8] sm:$0xf]
        %v526 = vld [vmem:[%s2 + $0xc] sm:$0xf]
        %v527 = vld [vmem:[%s2 + $0x10] sm:$0xf]
        %v528 = vld [vmem:[%s2 + $0x14] sm:$0xf]
        %v529 = vld [vmem:[%s2 + $0x18] sm:$0xf]
        %v530 = vld [vmem:[%s2 + $0x1c] sm:$0xf]
        %v531 = vld [vmem:[%s2 + $0x20] sm:$0xf]
        %v532 = vld [vmem:[%s2 + $0x24] sm:$0xf]
        %v533 = vld [vmem:[%s2 + $0x28] sm:$0xf]
        %v534 = vld [vmem:[%s2 + $0x2c] sm:$0xf]
        %v535 = vld [vmem:[%s2 + $0x30] sm:$0xf]
        %v536 = vld [vmem:[%s2 + $0x34] sm:$0xf]
        %v537 = vld [vmem:[%s2 + $0x38] sm:$0xf]
        %v538 = vld [vmem:[%s2 + $0x3c] sm:$0xf]
        %v539 = vld [vmem:[%s2 + $0x40] sm:$0xf]
        %v540 = vld [vmem:[%s2 + $0x44] sm:$0xf]
        %v541 = vld [vmem:[%s2 + $0x48] sm:$0xf]
        %v542 = vld [vmem:[%s2 + $0x4c] sm:$0xf]
        %v543 = vld [vmem:[%s2 + $0x50] sm:$0xf]
        %v544 = vld [vmem:[%s2 + $0x54] sm:$0xf]
        %v545 = vld [vmem:[%s2 + $0x58] sm:$0xf]
        %v546 = vld [vmem:[%s2 + $0x5c] sm:$0xf]
        %v547 = vld [vmem:[%s2 + $0x60] sm:$0xf]
        %v548 = vld [vmem:[%s2 + $0x64] sm:$0xf]
        %v549 = vld [vmem:[%s2 + $0x68] sm:$0xf]
        %v550 = vld [vmem:[%s2 + $0x6c] sm:$0xf]
        %v551 = vld [vmem:[%s2 + $0x70] sm:$0xf]
        %v552 = vld [vmem:[%s2 + $0x74] sm:$0xf]
        %v553 = vld [vmem:[%s2 + $0x78] sm:$0xf]
        %v554 = vld [vmem:[%s2 + $0x7c] sm:$0xf]
        %v555 = vld [vmem:[%s3] sm:$0x1]
        %v557 = vlaneseq
        %v558 = vshrl.u32 %v557, 7
        %v559 = vsub.s32 0, %v558
        %v560 = vrot.slane %v555, %v559
        %v578 = vunpack.c.l.b16 %v507
        %v579 = vunpack.c.h.b16 %v507
        %v580 = vunpack.c.l.b16 %v508
        %v581 = vunpack.c.h.b16 %v508
        %v582 = vunpack.c.l.b16 %v509
        %v583 = vunpack.c.h.b16 %v509
        %v584 = vunpack.c.l.b16 %v510
        %v585 = vunpack.c.h.b16 %v510
        %v586 = vunpack.c.l.b16 %v511
        %v587 = vunpack.c.h.b16 %v511
        %v588 = vunpack.c.l.b16 %v512
        %v589 = vunpack.c.h.b16 %v512
        %v590 = vunpack.c.l.b16 %v513
        %v591 = vunpack.c.h.b16 %v513
        %v592 = vunpack.c.l.b16 %v514
        %v593 = vunpack.c.h.b16 %v514
        %v594 = vunpack.c.l.b16 %v515
        %v595 = vunpack.c.h.b16 %v515
        %v596 = vunpack.c.l.b16 %v516
        %v597 = vunpack.c.h.b16 %v516
        %v598 = vunpack.c.l.b16 %v517
        %v599 = vunpack.c.h.b16 %v517
        %v600 = vunpack.c.l.b16 %v518
        %v601 = vunpack.c.h.b16 %v518
        %v602 = vunpack.c.l.b16 %v519
        %v603 = vunpack.c.h.b16 %v519
        %v604 = vunpack.c.l.b16 %v520
        %v605 = vunpack.c.h.b16 %v520
        %v606 = vunpack.c.l.b16 %v521
        %v607 = vunpack.c.h.b16 %v521
        %v608 = vunpack.c.l.b16 %v522
        %v609 = vunpack.c.h.b16 %v522
        %v610 = vpack.c.b16 %v580, %v578
        %v611 = vpack.c.b16 %v581, %v579
        %v612 = vpack.c.b16 %v584, %v582
        %v613 = vpack.c.b16 %v585, %v583
        %v614 = vpack.c.b16 %v588, %v586
        %v615 = vpack.c.b16 %v589, %v587
        %v616 = vpack.c.b16 %v592, %v590
        %v617 = vpack.c.b16 %v593, %v591
        %v618 = vpack.c.b16 %v596, %v594
        %v619 = vpack.c.b16 %v597, %v595
        %v620 = vpack.c.b16 %v600, %v598
        %v621 = vpack.c.b16 %v601, %v599
        %v622 = vpack.c.b16 %v604, %v602
        %v623 = vpack.c.b16 %v605, %v603
        %v624 = vpack.c.b16 %v608, %v606
        %v625 = vpack.c.b16 %v609, %v607
        %v674 = vunpack.c.l.b16 %v523
        %v675 = vunpack.c.l.b16 %v524
        %v676 = vunpack.c.l.b16 %v525
        %v677 = vunpack.c.l.b16 %v526
        %v678 = vunpack.c.l.b16 %v527
        %v679 = vunpack.c.l.b16 %v528
        %v680 = vunpack.c.l.b16 %v529
        %v681 = vunpack.c.l.b16 %v530
        %v682 = vunpack.c.l.b16 %v531
        %v683 = vunpack.c.l.b16 %v532
        %v684 = vunpack.c.l.b16 %v533
        %v685 = vunpack.c.l.b16 %v534
        %v686 = vunpack.c.l.b16 %v535
        %v687 = vunpack.c.l.b16 %v536
        %v688 = vunpack.c.l.b16 %v537
        %v689 = vunpack.c.l.b16 %v538
        %v690 = vunpack.c.l.b16 %v539
        %v691 = vunpack.c.l.b16 %v540
        %v692 = vunpack.c.l.b16 %v541
        %v693 = vunpack.c.l.b16 %v542
        %v694 = vunpack.c.l.b16 %v543
        %v695 = vunpack.c.l.b16 %v544
        %v696 = vunpack.c.l.b16 %v545
        %v697 = vunpack.c.l.b16 %v546
        %v698 = vunpack.c.l.b16 %v547
        %v699 = vunpack.c.l.b16 %v548
        %v700 = vunpack.c.l.b16 %v549
        %v701 = vunpack.c.l.b16 %v550
        %v702 = vunpack.c.l.b16 %v551
        %v703 = vunpack.c.l.b16 %v552
        %v704 = vunpack.c.l.b16 %v553
        %v705 = vunpack.c.l.b16 %v554
        %v706 = vpack.c.b16 %v675, %v674
        %v707 = vpack.c.b16 %v677, %v676
        %v708 = vpack.c.b16 %v679, %v678
        %v709 = vpack.c.b16 %v681, %v680
        %v710 = vpack.c.b16 %v683, %v682
        %v711 = vpack.c.b16 %v685, %v684
        %v712 = vpack.c.b16 %v687, %v686
        %v713 = vpack.c.b16 %v689, %v688
        %v714 = vpack.c.b16 %v691, %v690
        %v715 = vpack.c.b16 %v693, %v692
        %v716 = vpack.c.b16 %v695, %v694
        %v717 = vpack.c.b16 %v697, %v696
        %v718 = vpack.c.b16 %v699, %v698
        %v719 = vpack.c.b16 %v701, %v700
        %v720 = vpack.c.b16 %v703, %v702
        %v721 = vpack.c.b16 %v705, %v704
        %738 = vmatprep.subr.bf16.mxu0 0
        %739 = vmatpush1.bf16.msra.mxu0 %v713
        %740 = vmatprep.subr.bf16.mxu0 0
        %741 = vmatpush1.bf16.msra.mxu0 %v712
        %742 = vmatprep.subr.bf16.mxu0 0
        %743 = vmatpush1.bf16.msra.mxu0 %v711
        %744 = vmatprep.subr.bf16.mxu0 0
        %745 = vmatpush1.bf16.msra.mxu0 %v710
        %746 = vmatprep.subr.bf16.mxu0 0
        %747 = vmatpush1.bf16.msra.mxu0 %v709
        %748 = vmatprep.subr.bf16.mxu0 0
        %749 = vmatpush1.bf16.msra.mxu0 %v708
        %750 = vmatprep.subr.bf16.mxu0 0
        %751 = vmatpush1.bf16.msra.mxu0 %v707
        %752 = vmatprep.subr.bf16.mxu0 0
        %753 = vmatpush1.bf16.msra.mxu0 %v706
        %754 = vmatprep.subr.bf16.mxu0 0
        %755 = vmatpush2.bf16.msra.mxu0 %v721
        %756 = vmatprep.subr.bf16.mxu0 0
        %757 = vmatpush2.bf16.msra.mxu0 %v720
        %758 = vmatprep.subr.bf16.mxu0 0
        %759 = vmatpush2.bf16.msra.mxu0 %v719
        %760 = vmatprep.subr.bf16.mxu0 0
        %761 = vmatpush2.bf16.msra.mxu0 %v718
        %762 = vmatprep.subr.bf16.mxu0 0
        %763 = vmatpush2.bf16.msra.mxu0 %v717
        %764 = vmatprep.subr.bf16.mxu0 0
        %765 = vmatpush2.bf16.msra.mxu0 %v716
        %766 = vmatprep.subr.bf16.mxu0 0
        %767 = vmatpush2.bf16.msra.mxu0 %v715
        %768 = vmatprep.subr.bf16.mxu0 0
        %769 = vmatpush2.bf16.msra.mxu0 %v714
        %770 = vmatprep.mubr.bf16.mxu0 %v611
        %771 = vmatmul.mubr.bf16.gmra.mxu0 %v610
        %v772 = vpop.f32.mrf.mxu0
        %v773 = vadd.f32 %v560, %v772
        %v774 = vpop.f32.mrf.mxu0
        %v775 = vpop.f32.mrf.mxu0
        %v776 = vadd.f32 %v560, %v775
        %v777 = vpop.f32.mrf.mxu0
        %778 = vmatprep.mubr.bf16.mxu0 %v613
        %779 = vmatmul.mubr.bf16.gmra.mxu0 %v612
        %v780 = vpop.f32.mrf.mxu0
        %v781 = vadd.f32 %v560, %v780
        %v782 = vpop.f32.mrf.mxu0
        %v783 = vpop.f32.mrf.mxu0
        %v784 = vadd.f32 %v560, %v783
        %v785 = vpop.f32.mrf.mxu0
        %786 = vmatprep.mubr.bf16.mxu0 %v615
        %787 = vmatmul.mubr.bf16.gmra.mxu0 %v614
        %v788 = vpop.f32.mrf.mxu0
        %v789 = vadd.f32 %v560, %v788
        %v790 = vpop.f32.mrf.mxu0
        %v791 = vpop.f32.mrf.mxu0
        %v792 = vadd.f32 %v560, %v791
        %v793 = vpop.f32.mrf.mxu0
        %794 = vmatprep.mubr.bf16.mxu0 %v617
        %795 = vmatmul.mubr.bf16.gmra.mxu0 %v616
        %v796 = vpop.f32.mrf.mxu0
        %v797 = vadd.f32 %v560, %v796
        %v798 = vpop.f32.mrf.mxu0
        %v799 = vpop.f32.mrf.mxu0
        %v800 = vadd.f32 %v560, %v799
        %v801 = vpop.f32.mrf.mxu0
        %802 = vmatprep.mubr.bf16.mxu0 %v619
        %803 = vmatmul.mubr.bf16.gmra.mxu0 %v618
        %v804 = vpop.f32.mrf.mxu0
        %v805 = vadd.f32 %v560, %v804
        %v806 = vpop.f32.mrf.mxu0
        %v807 = vpop.f32.mrf.mxu0
        %v808 = vadd.f32 %v560, %v807
        %v809 = vpop.f32.mrf.mxu0
        %810 = vmatprep.mubr.bf16.mxu0 %v621
        %811 = vmatmul.mubr.bf16.gmra.mxu0 %v620
        %v812 = vpop.f32.mrf.mxu0
        %v813 = vadd.f32 %v560, %v812
        %v814 = vpop.f32.mrf.mxu0
        %v815 = vpop.f32.mrf.mxu0
        %v816 = vadd.f32 %v560, %v815
        %v817 = vpop.f32.mrf.mxu0
        %818 = vmatprep.mubr.bf16.mxu0 %v623
        %819 = vmatmul.mubr.bf16.gmra.mxu0 %v622
        %v820 = vpop.f32.mrf.mxu0
        %v821 = vadd.f32 %v560, %v820
        %v822 = vpop.f32.mrf.mxu0
        %v823 = vpop.f32.mrf.mxu0
        %v824 = vadd.f32 %v560, %v823
        %v825 = vpop.f32.mrf.mxu0
        %826 = vmatprep.mubr.bf16.mxu0 %v625
        %827 = vmatmul.mubr.bf16.gmra.mxu0 %v624
        %v828 = vpop.f32.mrf.mxu0
        %v829 = vadd.f32 %v560, %v828
        %v830 = vpop.f32.mrf.mxu0
        %v831 = vpop.f32.mrf.mxu0
        %v832 = vadd.f32 %v560, %v831
        %v833 = vpop.f32.mrf.mxu0
        %834 = vdwg.mxu0
        %v835 = vmax.f32 %v773, 0.0
        %v836 = vmax.f32 %v776, 0.0
        %v837 = vmax.f32 %v781, 0.0
        %v838 = vmax.f32 %v784, 0.0
        %v839 = vmax.f32 %v789, 0.0
        %v840 = vmax.f32 %v792, 0.0
        %v841 = vmax.f32 %v797, 0.0
        %v842 = vmax.f32 %v800, 0.0
        %v843 = vmax.f32 %v805, 0.0
        %v844 = vmax.f32 %v808, 0.0
        %v845 = vmax.f32 %v813, 0.0
        %v846 = vmax.f32 %v816, 0.0
        %v847 = vmax.f32 %v821, 0.0
        %v848 = vmax.f32 %v824, 0.0
        %v849 = vmax.f32 %v829, 0.0
        %v850 = vmax.f32 %v832, 0.0
        %v851 = vpack.c.bf16 %v836, %v835
        %v852 = vpack.c.bf16 %v838, %v837
        %v853 = vpack.c.bf16 %v840, %v839
        %v854 = vpack.c.bf16 %v842, %v841
        %v855 = vpack.c.bf16 %v844, %v843
        %v856 = vpack.c.bf16 %v846, %v845
        %v857 = vpack.c.bf16 %v848, %v847
        %v858 = vpack.c.bf16 %v850, %v849
        %v859 = vld [vmem:[%s4] sm:$0xf]
        %v860 = vld [vmem:[%s4 + $0x4] sm:$0xf]
        %v861 = vld [vmem:[%s4 + $0x8] sm:$0xf]
        %v862 = vld [vmem:[%s4 + $0xc] sm:$0xf]
        %v863 = vld [vmem:[%s4 + $0x10] sm:$0xf]
        %v864 = vld [vmem:[%s4 + $0x14] sm:$0xf]
        %v865 = vld [vmem:[%s4 + $0x18] sm:$0xf]
        %v866 = vld [vmem:[%s4 + $0x1c] sm:$0xf]
        %v867 = vld [vmem:[%s4 + $0x20] sm:$0xf]
        %v868 = vld [vmem:[%s4 + $0x24] sm:$0xf]
        %v869 = vld [vmem:[%s4 + $0x28] sm:$0xf]
        %v870 = vld [vmem:[%s4 + $0x2c] sm:$0xf]
        %v871 = vld [vmem:[%s4 + $0x30] sm:$0xf]
        %v872 = vld [vmem:[%s4 + $0x34] sm:$0xf]
        %v873 = vld [vmem:[%s4 + $0x38] sm:$0xf]
        %v874 = vld [vmem:[%s4 + $0x3c] sm:$0xf]
        %v875 = vld [vmem:[%s4 + $0x40] sm:$0xf]
        %v876 = vld [vmem:[%s4 + $0x44] sm:$0xf]
        %v877 = vld [vmem:[%s4 + $0x48] sm:$0xf]
        %v878 = vld [vmem:[%s4 + $0x4c] sm:$0xf]
        %v879 = vld [vmem:[%s4 + $0x50] sm:$0xf]
        %v880 = vld [vmem:[%s4 + $0x54] sm:$0xf]
        %v881 = vld [vmem:[%s4 + $0x58] sm:$0xf]
        %v882 = vld [vmem:[%s4 + $0x5c] sm:$0xf]
        %v883 = vld [vmem:[%s4 + $0x60] sm:$0xf]
        %v884 = vld [vmem:[%s4 + $0x64] sm:$0xf]
        %v885 = vld [vmem:[%s4 + $0x68] sm:$0xf]
        %v886 = vld [vmem:[%s4 + $0x6c] sm:$0xf]
        %v887 = vld [vmem:[%s4 + $0x70] sm:$0xf]
        %v888 = vld [vmem:[%s4 + $0x74] sm:$0xf]
        %v889 = vld [vmem:[%s4 + $0x78] sm:$0xf]
        %v890 = vld [vmem:[%s4 + $0x7c] sm:$0xf]
        %v923 = vunpack.c.l.b16 %v859
        %v924 = vunpack.c.l.b16 %v860
        %v925 = vunpack.c.l.b16 %v861
        %v926 = vunpack.c.l.b16 %v862
        %v927 = vunpack.c.l.b16 %v863
        %v928 = vunpack.c.l.b16 %v864
        %v929 = vunpack.c.l.b16 %v865
        %v930 = vunpack.c.l.b16 %v866
        %v931 = vunpack.c.l.b16 %v867
        %v932 = vunpack.c.l.b16 %v868
        %v933 = vunpack.c.l.b16 %v869
        %v934 = vunpack.c.l.b16 %v870
        %v935 = vunpack.c.l.b16 %v871
        %v936 = vunpack.c.l.b16 %v872
        %v937 = vunpack.c.l.b16 %v873
        %v938 = vunpack.c.l.b16 %v874
        %v939 = vunpack.c.l.b16 %v875
        %v940 = vunpack.c.l.b16 %v876
        %v941 = vunpack.c.l.b16 %v877
        %v942 = vunpack.c.l.b16 %v878
        %v943 = vunpack.c.l.b16 %v879
        %v944 = vunpack.c.l.b16 %v880
        %v945 = vunpack.c.l.b16 %v881
        %v946 = vunpack.c.l.b16 %v882
        %v947 = vunpack.c.l.b16 %v883
        %v948 = vunpack.c.l.b16 %v884
        %v949 = vunpack.c.l.b16 %v885
        %v950 = vunpack.c.l.b16 %v886
        %v951 = vunpack.c.l.b16 %v887
        %v952 = vunpack.c.l.b16 %v888
        %v953 = vunpack.c.l.b16 %v889
        %v954 = vunpack.c.l.b16 %v890
        %v955 = vpack.c.b16 %v924, %v923
        %v956 = vpack.c.b16 %v926, %v925
        %v957 = vpack.c.b16 %v928, %v927
        %v958 = vpack.c.b16 %v930, %v929
        %v959 = vpack.c.b16 %v932, %v931
        %v960 = vpack.c.b16 %v934, %v933
        %v961 = vpack.c.b16 %v936, %v935
        %v962 = vpack.c.b16 %v938, %v937
        %v963 = vpack.c.b16 %v940, %v939
        %v964 = vpack.c.b16 %v942, %v941
        %v965 = vpack.c.b16 %v944, %v943
        %v966 = vpack.c.b16 %v946, %v945
        %v967 = vpack.c.b16 %v948, %v947
        %v968 = vpack.c.b16 %v950, %v949
        %v969 = vpack.c.b16 %v952, %v951
        %v970 = vpack.c.b16 %v954, %v953
        %987 = vmatprep.subr.bf16.mxu0 0
        %988 = vmatpush1.bf16.msra.mxu0 %v858
        %989 = vmatprep.subr.bf16.mxu0 0
        %990 = vmatpush1.bf16.msra.mxu0 %v857
        %991 = vmatprep.subr.bf16.mxu0 0
        %992 = vmatpush1.bf16.msra.mxu0 %v856
        %993 = vmatprep.subr.bf16.mxu0 0
        %994 = vmatpush1.bf16.msra.mxu0 %v855
        %995 = vmatprep.subr.bf16.mxu0 0
        %996 = vmatpush1.bf16.msra.mxu0 %v854
        %997 = vmatprep.subr.bf16.mxu0 0
        %998 = vmatpush1.bf16.msra.mxu0 %v853
        %999 = vmatprep.subr.bf16.mxu0 0
        %1000 = vmatpush1.bf16.msra.mxu0 %v852
        %1001 = vmatprep.subr.bf16.mxu0 0
        %1002 = vmatpush1.bf16.msra.mxu0 %v851
        %1003 = vmatprep.subr.bf16.mxu0 0
        %1004 = vmatpush2.bf16.msra.mxu0 0
        %1005 = vmatprep.subr.bf16.mxu0 0
        %1006 = vmatpush2.bf16.msra.mxu0 0
        %1007 = vmatprep.subr.bf16.mxu0 0
        %1008 = vmatpush2.bf16.msra.mxu0 0
        %1009 = vmatprep.subr.bf16.mxu0 0
        %1010 = vmatpush2.bf16.msra.mxu0 0
        %1011 = vmatprep.subr.bf16.mxu0 0
        %1012 = vmatpush2.bf16.msra.mxu0 0
        %1013 = vmatprep.subr.bf16.mxu0 0
        %1014 = vmatpush2.bf16.msra.mxu0 0
        %1015 = vmatprep.subr.bf16.mxu0 0
        %1016 = vmatpush2.bf16.msra.mxu0 0
        %1017 = vmatprep.subr.bf16.mxu0 0
        %1018 = vmatpush2.bf16.msra.mxu0 0
        %1019 = vmatprep.mubr.bf16.mxu0 0
        %1020 = vmatmul.mubr.bf16.gmra.mxu0 %v955
        %v1021 = vpop.f32.mrf.mxu0
        %v1022 = vadd.f32 0.0, %v1021
        %v1023 = vpop.f32.mrf.mxu0
        %v1024 = vpop.f32.mrf.mxu0
        %v1025 = vadd.f32 0.0, %v1024
        %v1026 = vpop.f32.mrf.mxu0
        %1027 = vmatprep.mubr.bf16.mxu0 0
        %1028 = vmatmul.mubr.bf16.gmra.mxu0 %v956
        %v1029 = vpop.f32.mrf.mxu0
        %v1030 = vadd.f32 0.0, %v1029
        %v1031 = vpop.f32.mrf.mxu0
        %v1032 = vpop.f32.mrf.mxu0
        %v1033 = vadd.f32 0.0, %v1032
        %v1034 = vpop.f32.mrf.mxu0
        %1035 = vmatprep.mubr.bf16.mxu0 0
        %1036 = vmatmul.mubr.bf16.gmra.mxu0 %v957
        %v1037 = vpop.f32.mrf.mxu0
        %v1038 = vadd.f32 0.0, %v1037
        %v1039 = vpop.f32.mrf.mxu0
        %v1040 = vpop.f32.mrf.mxu0
        %v1041 = vadd.f32 0.0, %v1040
        %v1042 = vpop.f32.mrf.mxu0
        %1043 = vmatprep.mubr.bf16.mxu0 0
        %1044 = vmatmul.mubr.bf16.gmra.mxu0 %v958
        %v1045 = vpop.f32.mrf.mxu0
        %v1046 = vadd.f32 0.0, %v1045
        %v1047 = vpop.f32.mrf.mxu0
        %v1048 = vpop.f32.mrf.mxu0
        %v1049 = vadd.f32 0.0, %v1048
        %v1050 = vpop.f32.mrf.mxu0
        %1051 = vmatprep.mubr.bf16.mxu0 0
        %1052 = vmatmul.mubr.bf16.gmra.mxu0 %v959
        %v1053 = vpop.f32.mrf.mxu0
        %v1054 = vadd.f32 0.0, %v1053
        %v1055 = vpop.f32.mrf.mxu0
        %v1056 = vpop.f32.mrf.mxu0
        %v1057 = vadd.f32 0.0, %v1056
        %v1058 = vpop.f32.mrf.mxu0
        %1059 = vmatprep.mubr.bf16.mxu0 0
        %1060 = vmatmul.mubr.bf16.gmra.mxu0 %v960
        %v1061 = vpop.f32.mrf.mxu0
        %v1062 = vadd.f32 0.0, %v1061
        %v1063 = vpop.f32.mrf.mxu0
        %v1064 = vpop.f32.mrf.mxu0
        %v1065 = vadd.f32 0.0, %v1064
        %v1066 = vpop.f32.mrf.mxu0
        %1067 = vmatprep.mubr.bf16.mxu0 0
        %1068 = vmatmul.mubr.bf16.gmra.mxu0 %v961
        %v1069 = vpop.f32.mrf.mxu0
        %v1070 = vadd.f32 0.0, %v1069
        %v1071 = vpop.f32.mrf.mxu0
        %v1072 = vpop.f32.mrf.mxu0
        %v1073 = vadd.f32 0.0, %v1072
        %v1074 = vpop.f32.mrf.mxu0
        %1075 = vmatprep.mubr.bf16.mxu0 0
        %1076 = vmatmul.mubr.bf16.gmra.mxu0 %v962
        %v1077 = vpop.f32.mrf.mxu0
        %v1078 = vadd.f32 0.0, %v1077
        %v1079 = vpop.f32.mrf.mxu0
        %v1080 = vpop.f32.mrf.mxu0
        %v1081 = vadd.f32 0.0, %v1080
        %v1082 = vpop.f32.mrf.mxu0
        %1083 = vmatprep.mubr.bf16.mxu0 0
        %1084 = vmatmul.mubr.bf16.gmra.mxu0 %v963
        %v1085 = vpop.f32.mrf.mxu0
        %v1086 = vadd.f32 0.0, %v1085
        %v1087 = vpop.f32.mrf.mxu0
        %v1088 = vpop.f32.mrf.mxu0
        %v1089 = vadd.f32 0.0, %v1088
        %v1090 = vpop.f32.mrf.mxu0
        %1091 = vmatprep.mubr.bf16.mxu0 0
        %1092 = vmatmul.mubr.bf16.gmra.mxu0 %v964
        %v1093 = vpop.f32.mrf.mxu0
        %v1094 = vadd.f32 0.0, %v1093
        %v1095 = vpop.f32.mrf.mxu0
        %v1096 = vpop.f32.mrf.mxu0
        %v1097 = vadd.f32 0.0, %v1096
        %v1098 = vpop.f32.mrf.mxu0
        %1099 = vmatprep.mubr.bf16.mxu0 0
        %1100 = vmatmul.mubr.bf16.gmra.mxu0 %v965
        %v1101 = vpop.f32.mrf.mxu0
        %v1102 = vadd.f32 0.0, %v1101
        %v1103 = vpop.f32.mrf.mxu0
        %v1104 = vpop.f32.mrf.mxu0
        %v1105 = vadd.f32 0.0, %v1104
        %v1106 = vpop.f32.mrf.mxu0
        %1107 = vmatprep.mubr.bf16.mxu0 0
        %1108 = vmatmul.mubr.bf16.gmra.mxu0 %v966
        %v1109 = vpop.f32.mrf.mxu0
        %v1110 = vadd.f32 0.0, %v1109
        %v1111 = vpop.f32.mrf.mxu0
        %v1112 = vpop.f32.mrf.mxu0
        %v1113 = vadd.f32 0.0, %v1112
        %v1114 = vpop.f32.mrf.mxu0
        %1115 = vmatprep.mubr.bf16.mxu0 0
        %1116 = vmatmul.mubr.bf16.gmra.mxu0 %v967
        %v1117 = vpop.f32.mrf.mxu0
        %v1118 = vadd.f32 0.0, %v1117
        %v1119 = vpop.f32.mrf.mxu0
        %v1120 = vpop.f32.mrf.mxu0
        %v1121 = vadd.f32 0.0, %v1120
        %v1122 = vpop.f32.mrf.mxu0
        %1123 = vmatprep.mubr.bf16.mxu0 0
        %1124 = vmatmul.mubr.bf16.gmra.mxu0 %v968
        %v1125 = vpop.f32.mrf.mxu0
        %v1126 = vadd.f32 0.0, %v1125
        %v1127 = vpop.f32.mrf.mxu0
        %v1128 = vpop.f32.mrf.mxu0
        %v1129 = vadd.f32 0.0, %v1128
        %v1130 = vpop.f32.mrf.mxu0
        %1131 = vmatprep.mubr.bf16.mxu0 0
        %1132 = vmatmul.mubr.bf16.gmra.mxu0 %v969
        %v1133 = vpop.f32.mrf.mxu0
        %v1134 = vadd.f32 0.0, %v1133
        %v1135 = vpop.f32.mrf.mxu0
        %v1136 = vpop.f32.mrf.mxu0
        %v1137 = vadd.f32 0.0, %v1136
        %v1138 = vpop.f32.mrf.mxu0
        %1139 = vmatprep.mubr.bf16.mxu0 0
        %1140 = vmatmul.mubr.bf16.gmra.mxu0 %v970
        %v1141 = vpop.f32.mrf.mxu0
        %v1142 = vadd.f32 0.0, %v1141
        %v1143 = vpop.f32.mrf.mxu0
        %v1144 = vpop.f32.mrf.mxu0
        %v1145 = vadd.f32 0.0, %v1144
        %v1146 = vpop.f32.mrf.mxu0
        %1147 = vdwg.mxu0
        %v1148 = vpack.c.bf16 %v1025, %v1022
        %v1149 = vpack.c.bf16 %v1033, %v1030
        %v1150 = vpack.c.bf16 %v1041, %v1038
        %v1151 = vpack.c.bf16 %v1049, %v1046
        %v1152 = vpack.c.bf16 %v1057, %v1054
        %v1153 = vpack.c.bf16 %v1065, %v1062
        %v1154 = vpack.c.bf16 %v1073, %v1070
        %v1155 = vpack.c.bf16 %v1081, %v1078
        %v1156 = vpack.c.bf16 %v1089, %v1086
        %v1157 = vpack.c.bf16 %v1097, %v1094
        %v1158 = vpack.c.bf16 %v1105, %v1102
        %v1159 = vpack.c.bf16 %v1113, %v1110
        %v1160 = vpack.c.bf16 %v1121, %v1118
        %v1161 = vpack.c.bf16 %v1129, %v1126
        %v1162 = vpack.c.bf16 %v1137, %v1134
        %v1163 = vpack.c.bf16 %v1145, %v1142
        %v1164 = vld [vmem:[%s5] sm:$0xf]
        %v1165 = vld [vmem:[%s5 + $0x4] sm:$0xf]
        %v1166 = vld [vmem:[%s5 + $0x8] sm:$0xf]
        %v1167 = vld [vmem:[%s5 + $0xc] sm:$0xf]
        %v1168 = vld [vmem:[%s5 + $0x10] sm:$0xf]
        %v1169 = vld [vmem:[%s5 + $0x14] sm:$0xf]
        %v1170 = vld [vmem:[%s5 + $0x18] sm:$0xf]
        %v1171 = vld [vmem:[%s5 + $0x1c] sm:$0xf]
        %v1172 = vld [vmem:[%s5 + $0x20] sm:$0xf]
        %v1173 = vld [vmem:[%s5 + $0x24] sm:$0xf]
        %v1174 = vld [vmem:[%s5 + $0x28] sm:$0xf]
        %v1175 = vld [vmem:[%s5 + $0x2c] sm:$0xf]
        %v1176 = vld [vmem:[%s5 + $0x30] sm:$0xf]
        %v1177 = vld [vmem:[%s5 + $0x34] sm:$0xf]
        %v1178 = vld [vmem:[%s5 + $0x38] sm:$0xf]
        %v1179 = vld [vmem:[%s5 + $0x3c] sm:$0xf]
        %s1180 = scalar_lea.vmem %s5, 64
        %v1181 = vld [vmem:[%s1180] sm:$0xf]
        %v1182 = vld [vmem:[%s1180 + $0x4] sm:$0xf]
        %v1183 = vld [vmem:[%s1180 + $0x8] sm:$0xf]
        %v1184 = vld [vmem:[%s1180 + $0xc] sm:$0xf]
        %v1185 = vld [vmem:[%s1180 + $0x10] sm:$0xf]
        %v1186 = vld [vmem:[%s1180 + $0x14] sm:$0xf]
        %v1187 = vld [vmem:[%s1180 + $0x18] sm:$0xf]
        %v1188 = vld [vmem:[%s1180 + $0x1c] sm:$0xf]
        %v1189 = vld [vmem:[%s1180 + $0x20] sm:$0xf]
        %v1190 = vld [vmem:[%s1180 + $0x24] sm:$0xf]
        %v1191 = vld [vmem:[%s1180 + $0x28] sm:$0xf]
        %v1192 = vld [vmem:[%s1180 + $0x2c] sm:$0xf]
        %v1193 = vld [vmem:[%s1180 + $0x30] sm:$0xf]
        %v1194 = vld [vmem:[%s1180 + $0x34] sm:$0xf]
        %v1195 = vld [vmem:[%s1180 + $0x38] sm:$0xf]
        %v1196 = vld [vmem:[%s1180 + $0x3c] sm:$0xf]
        %v1213 = vunpack.c.l.b16 %v1181
        %v1214 = vunpack.c.l.b16 %v1182
        %v1215 = vunpack.c.l.b16 %v1183
        %v1216 = vunpack.c.l.b16 %v1184
        %v1217 = vunpack.c.l.b16 %v1185
        %v1218 = vunpack.c.l.b16 %v1186
        %v1219 = vunpack.c.l.b16 %v1187
        %v1220 = vunpack.c.l.b16 %v1188
        %v1221 = vunpack.c.l.b16 %v1189
        %v1222 = vunpack.c.l.b16 %v1190
        %v1223 = vunpack.c.l.b16 %v1191
        %v1224 = vunpack.c.l.b16 %v1192
        %v1225 = vunpack.c.l.b16 %v1193
        %v1226 = vunpack.c.l.b16 %v1194
        %v1227 = vunpack.c.l.b16 %v1195
        %v1228 = vunpack.c.l.b16 %v1196
        %v1229 = vpack.c.b16 %v1214, %v1213
        %v1230 = vpack.c.b16 %v1216, %v1215
        %v1231 = vpack.c.b16 %v1218, %v1217
        %v1232 = vpack.c.b16 %v1220, %v1219
        %v1233 = vpack.c.b16 %v1222, %v1221
        %v1234 = vpack.c.b16 %v1224, %v1223
        %v1235 = vpack.c.b16 %v1226, %v1225
        %v1236 = vpack.c.b16 %v1228, %v1227
        %1245 = vmatprep.subr.bf16.mxu0 0
        %1246 = vmatpush1.bf16.msra.mxu0 %v1236
        %1247 = vmatprep.subr.bf16.mxu0 0
        %1248 = vmatpush1.bf16.msra.mxu0 %v1235
        %1249 = vmatprep.subr.bf16.mxu0 0
        %1250 = vmatpush1.bf16.msra.mxu0 %v1234
        %1251 = vmatprep.subr.bf16.mxu0 0
        %1252 = vmatpush1.bf16.msra.mxu0 %v1233
        %1253 = vmatprep.subr.bf16.mxu0 0
        %1254 = vmatpush1.bf16.msra.mxu0 %v1232
        %1255 = vmatprep.subr.bf16.mxu0 0
        %1256 = vmatpush1.bf16.msra.mxu0 %v1231
        %1257 = vmatprep.subr.bf16.mxu0 0
        %1258 = vmatpush1.bf16.msra.mxu0 %v1230
        %1259 = vmatprep.subr.bf16.mxu0 0
        %1260 = vmatpush1.bf16.msra.mxu0 %v1229
        %1261 = vmatprep.subr.bf16.mxu0 0
        %1262 = vmatpush2.bf16.msra.mxu0 0
        %1263 = vmatprep.subr.bf16.mxu0 0
        %1264 = vmatpush2.bf16.msra.mxu0 0
        %1265 = vmatprep.subr.bf16.mxu0 0
        %1266 = vmatpush2.bf16.msra.mxu0 0
        %1267 = vmatprep.subr.bf16.mxu0 0
        %1268 = vmatpush2.bf16.msra.mxu0 0
        %1269 = vmatprep.subr.bf16.mxu0 0
        %1270 = vmatpush2.bf16.msra.mxu0 0
        %1271 = vmatprep.subr.bf16.mxu0 0
        %1272 = vmatpush2.bf16.msra.mxu0 0
        %1273 = vmatprep.subr.bf16.mxu0 0
        %1274 = vmatpush2.bf16.msra.mxu0 0
        %1275 = vmatprep.subr.bf16.mxu0 0
        %1276 = vmatpush2.bf16.msra.mxu0 0
        %1277 = vmatprep.mubr.bf16.mxu0 0
        %1278 = vmatmul.mubr.bf16.gmra.mxu0 %v1149
        %v1279 = vpop.f32.mrf.mxu0
        %v1280 = vadd.f32 0.0, %v1279
        %v1281 = vpop.f32.mrf.mxu0
        %v1282 = vpop.f32.mrf.mxu0
        %v1283 = vadd.f32 0.0, %v1282
        %v1284 = vpop.f32.mrf.mxu0
        %1285 = vdwg.mxu0
        %v1302 = vunpack.c.l.b16 %v1164
        %v1303 = vunpack.c.l.b16 %v1165
        %v1304 = vunpack.c.l.b16 %v1166
        %v1305 = vunpack.c.l.b16 %v1167
        %v1306 = vunpack.c.l.b16 %v1168
        %v1307 = vunpack.c.l.b16 %v1169
        %v1308 = vunpack.c.l.b16 %v1170
        %v1309 = vunpack.c.l.b16 %v1171
        %v1310 = vunpack.c.l.b16 %v1172
        %v1311 = vunpack.c.l.b16 %v1173
        %v1312 = vunpack.c.l.b16 %v1174
        %v1313 = vunpack.c.l.b16 %v1175
        %v1314 = vunpack.c.l.b16 %v1176
        %v1315 = vunpack.c.l.b16 %v1177
        %v1316 = vunpack.c.l.b16 %v1178
        %v1317 = vunpack.c.l.b16 %v1179
        %v1318 = vpack.c.b16 %v1303, %v1302
        %v1319 = vpack.c.b16 %v1305, %v1304
        %v1320 = vpack.c.b16 %v1307, %v1306
        %v1321 = vpack.c.b16 %v1309, %v1308
        %v1322 = vpack.c.b16 %v1311, %v1310
        %v1323 = vpack.c.b16 %v1313, %v1312
        %v1324 = vpack.c.b16 %v1315, %v1314
        %v1325 = vpack.c.b16 %v1317, %v1316
        %1334 = vmatprep.subr.bf16.mxu0 0
        %1335 = vmatpush1.bf16.msra.mxu0 %v1325
        %1336 = vmatprep.subr.bf16.mxu0 0
        %1337 = vmatpush1.bf16.msra.mxu0 %v1324
        %1338 = vmatprep.subr.bf16.mxu0 0
        %1339 = vmatpush1.bf16.msra.mxu0 %v1323
        %1340 = vmatprep.subr.bf16.mxu0 0
        %1341 = vmatpush1.bf16.msra.mxu0 %v1322
        %1342 = vmatprep.subr.bf16.mxu0 0
        %1343 = vmatpush1.bf16.msra.mxu0 %v1321
        %1344 = vmatprep.subr.bf16.mxu0 0
        %1345 = vmatpush1.bf16.msra.mxu0 %v1320
        %1346 = vmatprep.subr.bf16.mxu0 0
        %1347 = vmatpush1.bf16.msra.mxu0 %v1319
        %1348 = vmatprep.subr.bf16.mxu0 0
        %1349 = vmatpush1.bf16.msra.mxu0 %v1318
        %1350 = vmatprep.subr.bf16.mxu0 0
        %1351 = vmatpush2.bf16.msra.mxu0 0
        %1352 = vmatprep.subr.bf16.mxu0 0
        %1353 = vmatpush2.bf16.msra.mxu0 0
        %1354 = vmatprep.subr.bf16.mxu0 0
        %1355 = vmatpush2.bf16.msra.mxu0 0
        %1356 = vmatprep.subr.bf16.mxu0 0
        %1357 = vmatpush2.bf16.msra.mxu0 0
        %1358 = vmatprep.subr.bf16.mxu0 0
        %1359 = vmatpush2.bf16.msra.mxu0 0
        %1360 = vmatprep.subr.bf16.mxu0 0
        %1361 = vmatpush2.bf16.msra.mxu0 0
        %1362 = vmatprep.subr.bf16.mxu0 0
        %1363 = vmatpush2.bf16.msra.mxu0 0
        %1364 = vmatprep.subr.bf16.mxu0 0
        %1365 = vmatpush2.bf16.msra.mxu0 0
        %1366 = vmatprep.mubr.bf16.mxu0 0
        %1367 = vmatmul.mubr.bf16.gmra.mxu0 %v1148
        %v1368 = vpop.f32.mrf.mxu0
        %v1369 = vadd.f32 %v1280, %v1368
        %v1370 = vpop.f32.mrf.mxu0
        %v1371 = vpop.f32.mrf.mxu0
        %v1372 = vadd.f32 %v1283, %v1371
        %v1373 = vpop.f32.mrf.mxu0
        %1374 = vdwg.mxu0
        %s1375 = scalar_lea.vmem %s5, 128
        %v1376 = vld [vmem:[%s1375] sm:$0xf]
        %v1377 = vld [vmem:[%s1375 + $0x4] sm:$0xf]
        %v1378 = vld [vmem:[%s1375 + $0x8] sm:$0xf]
        %v1379 = vld [vmem:[%s1375 + $0xc] sm:$0xf]
        %v1380 = vld [vmem:[%s1375 + $0x10] sm:$0xf]
        %v1381 = vld [vmem:[%s1375 + $0x14] sm:$0xf]
        %v1382 = vld [vmem:[%s1375 + $0x18] sm:$0xf]
        %v1383 = vld [vmem:[%s1375 + $0x1c] sm:$0xf]
        %v1384 = vld [vmem:[%s1375 + $0x20] sm:$0xf]
        %v1385 = vld [vmem:[%s1375 + $0x24] sm:$0xf]
        %v1386 = vld [vmem:[%s1375 + $0x28] sm:$0xf]
        %v1387 = vld [vmem:[%s1375 + $0x2c] sm:$0xf]
        %v1388 = vld [vmem:[%s1375 + $0x30] sm:$0xf]
        %v1389 = vld [vmem:[%s1375 + $0x34] sm:$0xf]
        %v1390 = vld [vmem:[%s1375 + $0x38] sm:$0xf]
        %v1391 = vld [vmem:[%s1375 + $0x3c] sm:$0xf]
        %v1408 = vunpack.c.l.b16 %v1376
        %v1409 = vunpack.c.l.b16 %v1377
        %v1410 = vunpack.c.l.b16 %v1378
        %v1411 = vunpack.c.l.b16 %v1379
        %v1412 = vunpack.c.l.b16 %v1380
        %v1413 = vunpack.c.l.b16 %v1381
        %v1414 = vunpack.c.l.b16 %v1382
        %v1415 = vunpack.c.l.b16 %v1383
        %v1416 = vunpack.c.l.b16 %v1384
        %v1417 = vunpack.c.l.b16 %v1385
        %v1418 = vunpack.c.l.b16 %v1386
        %v1419 = vunpack.c.l.b16 %v1387
        %v1420 = vunpack.c.l.b16 %v1388
        %v1421 = vunpack.c.l.b16 %v1389
        %v1422 = vunpack.c.l.b16 %v1390
        %v1423 = vunpack.c.l.b16 %v1391
        %v1424 = vpack.c.b16 %v1409, %v1408
        %v1425 = vpack.c.b16 %v1411, %v1410
        %v1426 = vpack.c.b16 %v1413, %v1412
        %v1427 = vpack.c.b16 %v1415, %v1414
        %v1428 = vpack.c.b16 %v1417, %v1416
        %v1429 = vpack.c.b16 %v1419, %v1418
        %v1430 = vpack.c.b16 %v1421, %v1420
        %v1431 = vpack.c.b16 %v1423, %v1422
        %1440 = vmatprep.subr.bf16.mxu0 0
        %1441 = vmatpush1.bf16.msra.mxu0 %v1431
        %1442 = vmatprep.subr.bf16.mxu0 0
        %1443 = vmatpush1.bf16.msra.mxu0 %v1430
        %1444 = vmatprep.subr.bf16.mxu0 0
        %1445 = vmatpush1.bf16.msra.mxu0 %v1429
        %1446 = vmatprep.subr.bf16.mxu0 0
        %1447 = vmatpush1.bf16.msra.mxu0 %v1428
        %1448 = vmatprep.subr.bf16.mxu0 0
        %1449 = vmatpush1.bf16.msra.mxu0 %v1427
        %1450 = vmatprep.subr.bf16.mxu0 0
        %1451 = vmatpush1.bf16.msra.mxu0 %v1426
        %1452 = vmatprep.subr.bf16.mxu0 0
        %1453 = vmatpush1.bf16.msra.mxu0 %v1425
        %1454 = vmatprep.subr.bf16.mxu0 0
        %1455 = vmatpush1.bf16.msra.mxu0 %v1424
        %1456 = vmatprep.subr.bf16.mxu0 0
        %1457 = vmatpush2.bf16.msra.mxu0 0
        %1458 = vmatprep.subr.bf16.mxu0 0
        %1459 = vmatpush2.bf16.msra.mxu0 0
        %1460 = vmatprep.subr.bf16.mxu0 0
        %1461 = vmatpush2.bf16.msra.mxu0 0
        %1462 = vmatprep.subr.bf16.mxu0 0
        %1463 = vmatpush2.bf16.msra.mxu0 0
        %1464 = vmatprep.subr.bf16.mxu0 0
        %1465 = vmatpush2.bf16.msra.mxu0 0
        %1466 = vmatprep.subr.bf16.mxu0 0
        %1467 = vmatpush2.bf16.msra.mxu0 0
        %1468 = vmatprep.subr.bf16.mxu0 0
        %1469 = vmatpush2.bf16.msra.mxu0 0
        %1470 = vmatprep.subr.bf16.mxu0 0
        %1471 = vmatpush2.bf16.msra.mxu0 0
        %1472 = vmatprep.mubr.bf16.mxu0 0
        %1473 = vmatmul.mubr.bf16.gmra.mxu0 %v1150
        %v1474 = vpop.f32.mrf.mxu0
        %v1475 = vadd.f32 0.0, %v1474
        %v1476 = vpop.f32.mrf.mxu0
        %v1477 = vpop.f32.mrf.mxu0
        %v1478 = vadd.f32 0.0, %v1477
        %v1479 = vpop.f32.mrf.mxu0
        %1480 = vdwg.mxu0
        %v1481 = vadd.f32 %v1369, %v1475
        %v1482 = vadd.f32 %v1372, %v1478
        %s1483 = scalar_lea.vmem %s5, 192
        %v1484 = vld [vmem:[%s1483] sm:$0xf]
        %v1485 = vld [vmem:[%s1483 + $0x4] sm:$0xf]
        %v1486 = vld [vmem:[%s1483 + $0x8] sm:$0xf]
        %v1487 = vld [vmem:[%s1483 + $0xc] sm:$0xf]
        %v1488 = vld [vmem:[%s1483 + $0x10] sm:$0xf]
        %v1489 = vld [vmem:[%s1483 + $0x14] sm:$0xf]
        %v1490 = vld [vmem:[%s1483 + $0x18] sm:$0xf]
        %v1491 = vld [vmem:[%s1483 + $0x1c] sm:$0xf]
        %v1492 = vld [vmem:[%s1483 + $0x20] sm:$0xf]
        %v1493 = vld [vmem:[%s1483 + $0x24] sm:$0xf]
        %v1494 = vld [vmem:[%s1483 + $0x28] sm:$0xf]
        %v1495 = vld [vmem:[%s1483 + $0x2c] sm:$0xf]
        %v1496 = vld [vmem:[%s1483 + $0x30] sm:$0xf]
        %v1497 = vld [vmem:[%s1483 + $0x34] sm:$0xf]
        %v1498 = vld [vmem:[%s1483 + $0x38] sm:$0xf]
        %v1499 = vld [vmem:[%s1483 + $0x3c] sm:$0xf]
        %v1516 = vunpack.c.l.b16 %v1484
        %v1517 = vunpack.c.l.b16 %v1485
        %v1518 = vunpack.c.l.b16 %v1486
        %v1519 = vunpack.c.l.b16 %v1487
        %v1520 = vunpack.c.l.b16 %v1488
        %v1521 = vunpack.c.l.b16 %v1489
        %v1522 = vunpack.c.l.b16 %v1490
        %v1523 = vunpack.c.l.b16 %v1491
        %v1524 = vunpack.c.l.b16 %v1492
        %v1525 = vunpack.c.l.b16 %v1493
        %v1526 = vunpack.c.l.b16 %v1494
        %v1527 = vunpack.c.l.b16 %v1495
        %v1528 = vunpack.c.l.b16 %v1496
        %v1529 = vunpack.c.l.b16 %v1497
        %v1530 = vunpack.c.l.b16 %v1498
        %v1531 = vunpack.c.l.b16 %v1499
        %v1532 = vpack.c.b16 %v1517, %v1516
        %v1533 = vpack.c.b16 %v1519, %v1518
        %v1534 = vpack.c.b16 %v1521, %v1520
        %v1535 = vpack.c.b16 %v1523, %v1522
        %v1536 = vpack.c.b16 %v1525, %v1524
        %v1537 = vpack.c.b16 %v1527, %v1526
        %v1538 = vpack.c.b16 %v1529, %v1528
        %v1539 = vpack.c.b16 %v1531, %v1530
        %1548 = vmatprep.subr.bf16.mxu0 0
        %1549 = vmatpush1.bf16.msra.mxu0 %v1539
        %1550 = vmatprep.subr.bf16.mxu0 0
        %1551 = vmatpush1.bf16.msra.mxu0 %v1538
        %1552 = vmatprep.subr.bf16.mxu0 0
        %1553 = vmatpush1.bf16.msra.mxu0 %v1537
        %1554 = vmatprep.subr.bf16.mxu0 0
        %1555 = vmatpush1.bf16.msra.mxu0 %v1536
        %1556 = vmatprep.subr.bf16.mxu0 0
        %1557 = vmatpush1.bf16.msra.mxu0 %v1535
        %1558 = vmatprep.subr.bf16.mxu0 0
        %1559 = vmatpush1.bf16.msra.mxu0 %v1534
        %1560 = vmatprep.subr.bf16.mxu0 0
        %1561 = vmatpush1.bf16.msra.mxu0 %v1533
        %1562 = vmatprep.subr.bf16.mxu0 0
        %1563 = vmatpush1.bf16.msra.mxu0 %v1532
        %1564 = vmatprep.subr.bf16.mxu0 0
        %1565 = vmatpush2.bf16.msra.mxu0 0
        %1566 = vmatprep.subr.bf16.mxu0 0
        %1567 = vmatpush2.bf16.msra.mxu0 0
        %1568 = vmatprep.subr.bf16.mxu0 0
        %1569 = vmatpush2.bf16.msra.mxu0 0
        %1570 = vmatprep.subr.bf16.mxu0 0
        %1571 = vmatpush2.bf16.msra.mxu0 0
        %1572 = vmatprep.subr.bf16.mxu0 0
        %1573 = vmatpush2.bf16.msra.mxu0 0
        %1574 = vmatprep.subr.bf16.mxu0 0
        %1575 = vmatpush2.bf16.msra.mxu0 0
        %1576 = vmatprep.subr.bf16.mxu0 0
        %1577 = vmatpush2.bf16.msra.mxu0 0
        %1578 = vmatprep.subr.bf16.mxu0 0
        %1579 = vmatpush2.bf16.msra.mxu0 0
        %1580 = vmatprep.mubr.bf16.mxu0 0
        %1581 = vmatmul.mubr.bf16.gmra.mxu0 %v1151
        %v1582 = vpop.f32.mrf.mxu0
        %v1583 = vadd.f32 0.0, %v1582
        %v1584 = vpop.f32.mrf.mxu0
        %v1585 = vpop.f32.mrf.mxu0
        %v1586 = vadd.f32 0.0, %v1585
        %v1587 = vpop.f32.mrf.mxu0
        %1588 = vdwg.mxu0
        %v1589 = vadd.f32 %v1481, %v1583
        %v1590 = vadd.f32 %v1482, %v1586
        %s1591 = scalar_lea.vmem %s5, 256
        %v1592 = vld [vmem:[%s1591] sm:$0xf]
        %v1593 = vld [vmem:[%s1591 + $0x4] sm:$0xf]
        %v1594 = vld [vmem:[%s1591 + $0x8] sm:$0xf]
        %v1595 = vld [vmem:[%s1591 + $0xc] sm:$0xf]
        %v1596 = vld [vmem:[%s1591 + $0x10] sm:$0xf]
        %v1597 = vld [vmem:[%s1591 + $0x14] sm:$0xf]
        %v1598 = vld [vmem:[%s1591 + $0x18] sm:$0xf]
        %v1599 = vld [vmem:[%s1591 + $0x1c] sm:$0xf]
        %v1600 = vld [vmem:[%s1591 + $0x20] sm:$0xf]
        %v1601 = vld [vmem:[%s1591 + $0x24] sm:$0xf]
        %v1602 = vld [vmem:[%s1591 + $0x28] sm:$0xf]
        %v1603 = vld [vmem:[%s1591 + $0x2c] sm:$0xf]
        %v1604 = vld [vmem:[%s1591 + $0x30] sm:$0xf]
        %v1605 = vld [vmem:[%s1591 + $0x34] sm:$0xf]
        %v1606 = vld [vmem:[%s1591 + $0x38] sm:$0xf]
        %v1607 = vld [vmem:[%s1591 + $0x3c] sm:$0xf]
        %v1624 = vunpack.c.l.b16 %v1592
        %v1625 = vunpack.c.l.b16 %v1593
        %v1626 = vunpack.c.l.b16 %v1594
        %v1627 = vunpack.c.l.b16 %v1595
        %v1628 = vunpack.c.l.b16 %v1596
        %v1629 = vunpack.c.l.b16 %v1597
        %v1630 = vunpack.c.l.b16 %v1598
        %v1631 = vunpack.c.l.b16 %v1599
        %v1632 = vunpack.c.l.b16 %v1600
        %v1633 = vunpack.c.l.b16 %v1601
        %v1634 = vunpack.c.l.b16 %v1602
        %v1635 = vunpack.c.l.b16 %v1603
        %v1636 = vunpack.c.l.b16 %v1604
        %v1637 = vunpack.c.l.b16 %v1605
        %v1638 = vunpack.c.l.b16 %v1606
        %v1639 = vunpack.c.l.b16 %v1607
        %v1640 = vpack.c.b16 %v1625, %v1624
        %v1641 = vpack.c.b16 %v1627, %v1626
        %v1642 = vpack.c.b16 %v1629, %v1628
        %v1643 = vpack.c.b16 %v1631, %v1630
        %v1644 = vpack.c.b16 %v1633, %v1632
        %v1645 = vpack.c.b16 %v1635, %v1634
        %v1646 = vpack.c.b16 %v1637, %v1636
        %v1647 = vpack.c.b16 %v1639, %v1638
        %1656 = vmatprep.subr.bf16.mxu0 0
        %1657 = vmatpush1.bf16.msra.mxu0 %v1647
        %1658 = vmatprep.subr.bf16.mxu0 0
        %1659 = vmatpush1.bf16.msra.mxu0 %v1646
        %1660 = vmatprep.subr.bf16.mxu0 0
        %1661 = vmatpush1.bf16.msra.mxu0 %v1645
        %1662 = vmatprep.subr.bf16.mxu0 0
        %1663 = vmatpush1.bf16.msra.mxu0 %v1644
        %1664 = vmatprep.subr.bf16.mxu0 0
        %1665 = vmatpush1.bf16.msra.mxu0 %v1643
        %1666 = vmatprep.subr.bf16.mxu0 0
        %1667 = vmatpush1.bf16.msra.mxu0 %v1642
        %1668 = vmatprep.subr.bf16.mxu0 0
        %1669 = vmatpush1.bf16.msra.mxu0 %v1641
        %1670 = vmatprep.subr.bf16.mxu0 0
        %1671 = vmatpush1.bf16.msra.mxu0 %v1640
        %1672 = vmatprep.subr.bf16.mxu0 0
        %1673 = vmatpush2.bf16.msra.mxu0 0
        %1674 = vmatprep.subr.bf16.mxu0 0
        %1675 = vmatpush2.bf16.msra.mxu0 0
        %1676 = vmatprep.subr.bf16.mxu0 0
        %1677 = vmatpush2.bf16.msra.mxu0 0
        %1678 = vmatprep.subr.bf16.mxu0 0
        %1679 = vmatpush2.bf16.msra.mxu0 0
        %1680 = vmatprep.subr.bf16.mxu0 0
        %1681 = vmatpush2.bf16.msra.mxu0 0
        %1682 = vmatprep.subr.bf16.mxu0 0
        %1683 = vmatpush2.bf16.msra.mxu0 0
        %1684 = vmatprep.subr.bf16.mxu0 0
        %1685 = vmatpush2.bf16.msra.mxu0 0
        %1686 = vmatprep.subr.bf16.mxu0 0
        %1687 = vmatpush2.bf16.msra.mxu0 0
        %1688 = vmatprep.mubr.bf16.mxu0 0
        %1689 = vmatmul.mubr.bf16.gmra.mxu0 %v1152
        %v1690 = vpop.f32.mrf.mxu0
        %v1691 = vadd.f32 0.0, %v1690
        %v1692 = vpop.f32.mrf.mxu0
        %v1693 = vpop.f32.mrf.mxu0
        %v1694 = vadd.f32 0.0, %v1693
        %v1695 = vpop.f32.mrf.mxu0
        %1696 = vdwg.mxu0
        %v1697 = vadd.f32 %v1589, %v1691
        %v1698 = vadd.f32 %v1590, %v1694
        %s1699 = scalar_lea.vmem %s5, 320
        %v1700 = vld [vmem:[%s1699] sm:$0xf]
        %v1701 = vld [vmem:[%s1699 + $0x4] sm:$0xf]
        %v1702 = vld [vmem:[%s1699 + $0x8] sm:$0xf]
        %v1703 = vld [vmem:[%s1699 + $0xc] sm:$0xf]
        %v1704 = vld [vmem:[%s1699 + $0x10] sm:$0xf]
        %v1705 = vld [vmem:[%s1699 + $0x14] sm:$0xf]
        %v1706 = vld [vmem:[%s1699 + $0x18] sm:$0xf]
        %v1707 = vld [vmem:[%s1699 + $0x1c] sm:$0xf]
        %v1708 = vld [vmem:[%s1699 + $0x20] sm:$0xf]
        %v1709 = vld [vmem:[%s1699 + $0x24] sm:$0xf]
        %v1710 = vld [vmem:[%s1699 + $0x28] sm:$0xf]
        %v1711 = vld [vmem:[%s1699 + $0x2c] sm:$0xf]
        %v1712 = vld [vmem:[%s1699 + $0x30] sm:$0xf]
        %v1713 = vld [vmem:[%s1699 + $0x34] sm:$0xf]
        %v1714 = vld [vmem:[%s1699 + $0x38] sm:$0xf]
        %v1715 = vld [vmem:[%s1699 + $0x3c] sm:$0xf]
        %v1732 = vunpack.c.l.b16 %v1700
        %v1733 = vunpack.c.l.b16 %v1701
        %v1734 = vunpack.c.l.b16 %v1702
        %v1735 = vunpack.c.l.b16 %v1703
        %v1736 = vunpack.c.l.b16 %v1704
        %v1737 = vunpack.c.l.b16 %v1705
        %v1738 = vunpack.c.l.b16 %v1706
        %v1739 = vunpack.c.l.b16 %v1707
        %v1740 = vunpack.c.l.b16 %v1708
        %v1741 = vunpack.c.l.b16 %v1709
        %v1742 = vunpack.c.l.b16 %v1710
        %v1743 = vunpack.c.l.b16 %v1711
        %v1744 = vunpack.c.l.b16 %v1712
        %v1745 = vunpack.c.l.b16 %v1713
        %v1746 = vunpack.c.l.b16 %v1714
        %v1747 = vunpack.c.l.b16 %v1715
        %v1748 = vpack.c.b16 %v1733, %v1732
        %v1749 = vpack.c.b16 %v1735, %v1734
        %v1750 = vpack.c.b16 %v1737, %v1736
        %v1751 = vpack.c.b16 %v1739, %v1738
        %v1752 = vpack.c.b16 %v1741, %v1740
        %v1753 = vpack.c.b16 %v1743, %v1742
        %v1754 = vpack.c.b16 %v1745, %v1744
        %v1755 = vpack.c.b16 %v1747, %v1746
        %1764 = vmatprep.subr.bf16.mxu0 0
        %1765 = vmatpush1.bf16.msra.mxu0 %v1755
        %1766 = vmatprep.subr.bf16.mxu0 0
        %1767 = vmatpush1.bf16.msra.mxu0 %v1754
        %1768 = vmatprep.subr.bf16.mxu0 0
        %1769 = vmatpush1.bf16.msra.mxu0 %v1753
        %1770 = vmatprep.subr.bf16.mxu0 0
        %1771 = vmatpush1.bf16.msra.mxu0 %v1752
        %1772 = vmatprep.subr.bf16.mxu0 0
        %1773 = vmatpush1.bf16.msra.mxu0 %v1751
        %1774 = vmatprep.subr.bf16.mxu0 0
        %1775 = vmatpush1.bf16.msra.mxu0 %v1750
        %1776 = vmatprep.subr.bf16.mxu0 0
        %1777 = vmatpush1.bf16.msra.mxu0 %v1749
        %1778 = vmatprep.subr.bf16.mxu0 0
        %1779 = vmatpush1.bf16.msra.mxu0 %v1748
        %1780 = vmatprep.subr.bf16.mxu0 0
        %1781 = vmatpush2.bf16.msra.mxu0 0
        %1782 = vmatprep.subr.bf16.mxu0 0
        %1783 = vmatpush2.bf16.msra.mxu0 0
        %1784 = vmatprep.subr.bf16.mxu0 0
        %1785 = vmatpush2.bf16.msra.mxu0 0
        %1786 = vmatprep.subr.bf16.mxu0 0
        %1787 = vmatpush2.bf16.msra.mxu0 0
        %1788 = vmatprep.subr.bf16.mxu0 0
        %1789 = vmatpush2.bf16.msra.mxu0 0
        %1790 = vmatprep.subr.bf16.mxu0 0
        %1791 = vmatpush2.bf16.msra.mxu0 0
        %1792 = vmatprep.subr.bf16.mxu0 0
        %1793 = vmatpush2.bf16.msra.mxu0 0
        %1794 = vmatprep.subr.bf16.mxu0 0
        %1795 = vmatpush2.bf16.msra.mxu0 0
        %1796 = vmatprep.mubr.bf16.mxu0 0
        %1797 = vmatmul.mubr.bf16.gmra.mxu0 %v1153
        %v1798 = vpop.f32.mrf.mxu0
        %v1799 = vadd.f32 0.0, %v1798
        %v1800 = vpop.f32.mrf.mxu0
        %v1801 = vpop.f32.mrf.mxu0
        %v1802 = vadd.f32 0.0, %v1801
        %v1803 = vpop.f32.mrf.mxu0
        %1804 = vdwg.mxu0
        %v1805 = vadd.f32 %v1697, %v1799
        %v1806 = vadd.f32 %v1698, %v1802
        %s1807 = scalar_lea.vmem %s5, 384
        %v1808 = vld [vmem:[%s1807] sm:$0xf]
        %v1809 = vld [vmem:[%s1807 + $0x4] sm:$0xf]
        %v1810 = vld [vmem:[%s1807 + $0x8] sm:$0xf]
        %v1811 = vld [vmem:[%s1807 + $0xc] sm:$0xf]
        %v1812 = vld [vmem:[%s1807 + $0x10] sm:$0xf]
        %v1813 = vld [vmem:[%s1807 + $0x14] sm:$0xf]
        %v1814 = vld [vmem:[%s1807 + $0x18] sm:$0xf]
        %v1815 = vld [vmem:[%s1807 + $0x1c] sm:$0xf]
        %v1816 = vld [vmem:[%s1807 + $0x20] sm:$0xf]
        %v1817 = vld [vmem:[%s1807 + $0x24] sm:$0xf]
        %v1818 = vld [vmem:[%s1807 + $0x28] sm:$0xf]
        %v1819 = vld [vmem:[%s1807 + $0x2c] sm:$0xf]
        %v1820 = vld [vmem:[%s1807 + $0x30] sm:$0xf]
        %v1821 = vld [vmem:[%s1807 + $0x34] sm:$0xf]
        %v1822 = vld [vmem:[%s1807 + $0x38] sm:$0xf]
        %v1823 = vld [vmem:[%s1807 + $0x3c] sm:$0xf]
        %v1840 = vunpack.c.l.b16 %v1808
        %v1841 = vunpack.c.l.b16 %v1809
        %v1842 = vunpack.c.l.b16 %v1810
        %v1843 = vunpack.c.l.b16 %v1811
        %v1844 = vunpack.c.l.b16 %v1812
        %v1845 = vunpack.c.l.b16 %v1813
        %v1846 = vunpack.c.l.b16 %v1814
        %v1847 = vunpack.c.l.b16 %v1815
        %v1848 = vunpack.c.l.b16 %v1816
        %v1849 = vunpack.c.l.b16 %v1817
        %v1850 = vunpack.c.l.b16 %v1818
        %v1851 = vunpack.c.l.b16 %v1819
        %v1852 = vunpack.c.l.b16 %v1820
        %v1853 = vunpack.c.l.b16 %v1821
        %v1854 = vunpack.c.l.b16 %v1822
        %v1855 = vunpack.c.l.b16 %v1823
        %v1856 = vpack.c.b16 %v1841, %v1840
        %v1857 = vpack.c.b16 %v1843, %v1842
        %v1858 = vpack.c.b16 %v1845, %v1844
        %v1859 = vpack.c.b16 %v1847, %v1846
        %v1860 = vpack.c.b16 %v1849, %v1848
        %v1861 = vpack.c.b16 %v1851, %v1850
        %v1862 = vpack.c.b16 %v1853, %v1852
        %v1863 = vpack.c.b16 %v1855, %v1854
        %1872 = vmatprep.subr.bf16.mxu0 0
        %1873 = vmatpush1.bf16.msra.mxu0 %v1863
        %1874 = vmatprep.subr.bf16.mxu0 0
        %1875 = vmatpush1.bf16.msra.mxu0 %v1862
        %1876 = vmatprep.subr.bf16.mxu0 0
        %1877 = vmatpush1.bf16.msra.mxu0 %v1861
        %1878 = vmatprep.subr.bf16.mxu0 0
        %1879 = vmatpush1.bf16.msra.mxu0 %v1860
        %1880 = vmatprep.subr.bf16.mxu0 0
        %1881 = vmatpush1.bf16.msra.mxu0 %v1859
        %1882 = vmatprep.subr.bf16.mxu0 0
        %1883 = vmatpush1.bf16.msra.mxu0 %v1858
        %1884 = vmatprep.subr.bf16.mxu0 0
        %1885 = vmatpush1.bf16.msra.mxu0 %v1857
        %1886 = vmatprep.subr.bf16.mxu0 0
        %1887 = vmatpush1.bf16.msra.mxu0 %v1856
        %1888 = vmatprep.subr.bf16.mxu0 0
        %1889 = vmatpush2.bf16.msra.mxu0 0
        %1890 = vmatprep.subr.bf16.mxu0 0
        %1891 = vmatpush2.bf16.msra.mxu0 0
        %1892 = vmatprep.subr.bf16.mxu0 0
        %1893 = vmatpush2.bf16.msra.mxu0 0
        %1894 = vmatprep.subr.bf16.mxu0 0
        %1895 = vmatpush2.bf16.msra.mxu0 0
        %1896 = vmatprep.subr.bf16.mxu0 0
        %1897 = vmatpush2.bf16.msra.mxu0 0
        %1898 = vmatprep.subr.bf16.mxu0 0
        %1899 = vmatpush2.bf16.msra.mxu0 0
        %1900 = vmatprep.subr.bf16.mxu0 0
        %1901 = vmatpush2.bf16.msra.mxu0 0
        %1902 = vmatprep.subr.bf16.mxu0 0
        %1903 = vmatpush2.bf16.msra.mxu0 0
        %1904 = vmatprep.mubr.bf16.mxu0 0
        %1905 = vmatmul.mubr.bf16.gmra.mxu0 %v1154
        %v1906 = vpop.f32.mrf.mxu0
        %v1907 = vadd.f32 0.0, %v1906
        %v1908 = vpop.f32.mrf.mxu0
        %v1909 = vpop.f32.mrf.mxu0
        %v1910 = vadd.f32 0.0, %v1909
        %v1911 = vpop.f32.mrf.mxu0
        %1912 = vdwg.mxu0
        %v1913 = vadd.f32 %v1805, %v1907
        %v1914 = vadd.f32 %v1806, %v1910
        %s1915 = scalar_lea.vmem %s5, 448
        %v1916 = vld [vmem:[%s1915] sm:$0xf]
        %v1917 = vld [vmem:[%s1915 + $0x4] sm:$0xf]
        %v1918 = vld [vmem:[%s1915 + $0x8] sm:$0xf]
        %v1919 = vld [vmem:[%s1915 + $0xc] sm:$0xf]
        %v1920 = vld [vmem:[%s1915 + $0x10] sm:$0xf]
        %v1921 = vld [vmem:[%s1915 + $0x14] sm:$0xf]
        %v1922 = vld [vmem:[%s1915 + $0x18] sm:$0xf]
        %v1923 = vld [vmem:[%s1915 + $0x1c] sm:$0xf]
        %v1924 = vld [vmem:[%s1915 + $0x20] sm:$0xf]
        %v1925 = vld [vmem:[%s1915 + $0x24] sm:$0xf]
        %v1926 = vld [vmem:[%s1915 + $0x28] sm:$0xf]
        %v1927 = vld [vmem:[%s1915 + $0x2c] sm:$0xf]
        %v1928 = vld [vmem:[%s1915 + $0x30] sm:$0xf]
        %v1929 = vld [vmem:[%s1915 + $0x34] sm:$0xf]
        %v1930 = vld [vmem:[%s1915 + $0x38] sm:$0xf]
        %v1931 = vld [vmem:[%s1915 + $0x3c] sm:$0xf]
        %v1948 = vunpack.c.l.b16 %v1916
        %v1949 = vunpack.c.l.b16 %v1917
        %v1950 = vunpack.c.l.b16 %v1918
        %v1951 = vunpack.c.l.b16 %v1919
        %v1952 = vunpack.c.l.b16 %v1920
        %v1953 = vunpack.c.l.b16 %v1921
        %v1954 = vunpack.c.l.b16 %v1922
        %v1955 = vunpack.c.l.b16 %v1923
        %v1956 = vunpack.c.l.b16 %v1924
        %v1957 = vunpack.c.l.b16 %v1925
        %v1958 = vunpack.c.l.b16 %v1926
        %v1959 = vunpack.c.l.b16 %v1927
        %v1960 = vunpack.c.l.b16 %v1928
        %v1961 = vunpack.c.l.b16 %v1929
        %v1962 = vunpack.c.l.b16 %v1930
        %v1963 = vunpack.c.l.b16 %v1931
        %v1964 = vpack.c.b16 %v1949, %v1948
        %v1965 = vpack.c.b16 %v1951, %v1950
        %v1966 = vpack.c.b16 %v1953, %v1952
        %v1967 = vpack.c.b16 %v1955, %v1954
        %v1968 = vpack.c.b16 %v1957, %v1956
        %v1969 = vpack.c.b16 %v1959, %v1958
        %v1970 = vpack.c.b16 %v1961, %v1960
        %v1971 = vpack.c.b16 %v1963, %v1962
        %1980 = vmatprep.subr.bf16.mxu0 0
        %1981 = vmatpush1.bf16.msra.mxu0 %v1971
        %1982 = vmatprep.subr.bf16.mxu0 0
        %1983 = vmatpush1.bf16.msra.mxu0 %v1970
        %1984 = vmatprep.subr.bf16.mxu0 0
        %1985 = vmatpush1.bf16.msra.mxu0 %v1969
        %1986 = vmatprep.subr.bf16.mxu0 0
        %1987 = vmatpush1.bf16.msra.mxu0 %v1968
        %1988 = vmatprep.subr.bf16.mxu0 0
        %1989 = vmatpush1.bf16.msra.mxu0 %v1967
        %1990 = vmatprep.subr.bf16.mxu0 0
        %1991 = vmatpush1.bf16.msra.mxu0 %v1966
        %1992 = vmatprep.subr.bf16.mxu0 0
        %1993 = vmatpush1.bf16.msra.mxu0 %v1965
        %1994 = vmatprep.subr.bf16.mxu0 0
        %1995 = vmatpush1.bf16.msra.mxu0 %v1964
        %1996 = vmatprep.subr.bf16.mxu0 0
        %1997 = vmatpush2.bf16.msra.mxu0 0
        %1998 = vmatprep.subr.bf16.mxu0 0
        %1999 = vmatpush2.bf16.msra.mxu0 0
        %2000 = vmatprep.subr.bf16.mxu0 0
        %2001 = vmatpush2.bf16.msra.mxu0 0
        %2002 = vmatprep.subr.bf16.mxu0 0
        %2003 = vmatpush2.bf16.msra.mxu0 0
        %2004 = vmatprep.subr.bf16.mxu0 0
        %2005 = vmatpush2.bf16.msra.mxu0 0
        %2006 = vmatprep.subr.bf16.mxu0 0
        %2007 = vmatpush2.bf16.msra.mxu0 0
        %2008 = vmatprep.subr.bf16.mxu0 0
        %2009 = vmatpush2.bf16.msra.mxu0 0
        %2010 = vmatprep.subr.bf16.mxu0 0
        %2011 = vmatpush2.bf16.msra.mxu0 0
        %2012 = vmatprep.mubr.bf16.mxu0 0
        %2013 = vmatmul.mubr.bf16.gmra.mxu0 %v1155
        %v2014 = vpop.f32.mrf.mxu0
        %v2015 = vadd.f32 0.0, %v2014
        %v2016 = vpop.f32.mrf.mxu0
        %v2017 = vpop.f32.mrf.mxu0
        %v2018 = vadd.f32 0.0, %v2017
        %v2019 = vpop.f32.mrf.mxu0
        %2020 = vdwg.mxu0
        %v2021 = vadd.f32 %v1913, %v2015
        %v2022 = vadd.f32 %v1914, %v2018
        %s2023 = scalar_lea.vmem %s5, 512
        %v2024 = vld [vmem:[%s2023] sm:$0xf]
        %v2025 = vld [vmem:[%s2023 + $0x4] sm:$0xf]
        %v2026 = vld [vmem:[%s2023 + $0x8] sm:$0xf]
        %v2027 = vld [vmem:[%s2023 + $0xc] sm:$0xf]
        %v2028 = vld [vmem:[%s2023 + $0x10] sm:$0xf]
        %v2029 = vld [vmem:[%s2023 + $0x14] sm:$0xf]
        %v2030 = vld [vmem:[%s2023 + $0x18] sm:$0xf]
        %v2031 = vld [vmem:[%s2023 + $0x1c] sm:$0xf]
        %v2032 = vld [vmem:[%s2023 + $0x20] sm:$0xf]
        %v2033 = vld [vmem:[%s2023 + $0x24] sm:$0xf]
        %v2034 = vld [vmem:[%s2023 + $0x28] sm:$0xf]
        %v2035 = vld [vmem:[%s2023 + $0x2c] sm:$0xf]
        %v2036 = vld [vmem:[%s2023 + $0x30] sm:$0xf]
        %v2037 = vld [vmem:[%s2023 + $0x34] sm:$0xf]
        %v2038 = vld [vmem:[%s2023 + $0x38] sm:$0xf]
        %v2039 = vld [vmem:[%s2023 + $0x3c] sm:$0xf]
        %v2056 = vunpack.c.l.b16 %v2024
        %v2057 = vunpack.c.l.b16 %v2025
        %v2058 = vunpack.c.l.b16 %v2026
        %v2059 = vunpack.c.l.b16 %v2027
        %v2060 = vunpack.c.l.b16 %v2028
        %v2061 = vunpack.c.l.b16 %v2029
        %v2062 = vunpack.c.l.b16 %v2030
        %v2063 = vunpack.c.l.b16 %v2031
        %v2064 = vunpack.c.l.b16 %v2032
        %v2065 = vunpack.c.l.b16 %v2033
        %v2066 = vunpack.c.l.b16 %v2034
        %v2067 = vunpack.c.l.b16 %v2035
        %v2068 = vunpack.c.l.b16 %v2036
        %v2069 = vunpack.c.l.b16 %v2037
        %v2070 = vunpack.c.l.b16 %v2038
        %v2071 = vunpack.c.l.b16 %v2039
        %v2072 = vpack.c.b16 %v2057, %v2056
        %v2073 = vpack.c.b16 %v2059, %v2058
        %v2074 = vpack.c.b16 %v2061, %v2060
        %v2075 = vpack.c.b16 %v2063, %v2062
        %v2076 = vpack.c.b16 %v2065, %v2064
        %v2077 = vpack.c.b16 %v2067, %v2066
        %v2078 = vpack.c.b16 %v2069, %v2068
        %v2079 = vpack.c.b16 %v2071, %v2070
        %2088 = vmatprep.subr.bf16.mxu0 0
        %2089 = vmatpush1.bf16.msra.mxu0 %v2079
        %2090 = vmatprep.subr.bf16.mxu0 0
        %2091 = vmatpush1.bf16.msra.mxu0 %v2078
        %2092 = vmatprep.subr.bf16.mxu0 0
        %2093 = vmatpush1.bf16.msra.mxu0 %v2077
        %2094 = vmatprep.subr.bf16.mxu0 0
        %2095 = vmatpush1.bf16.msra.mxu0 %v2076
        %2096 = vmatprep.subr.bf16.mxu0 0
        %2097 = vmatpush1.bf16.msra.mxu0 %v2075
        %2098 = vmatprep.subr.bf16.mxu0 0
        %2099 = vmatpush1.bf16.msra.mxu0 %v2074
        %2100 = vmatprep.subr.bf16.mxu0 0
        %2101 = vmatpush1.bf16.msra.mxu0 %v2073
        %2102 = vmatprep.subr.bf16.mxu0 0
        %2103 = vmatpush1.bf16.msra.mxu0 %v2072
        %2104 = vmatprep.subr.bf16.mxu0 0
        %2105 = vmatpush2.bf16.msra.mxu0 0
        %2106 = vmatprep.subr.bf16.mxu0 0
        %2107 = vmatpush2.bf16.msra.mxu0 0
        %2108 = vmatprep.subr.bf16.mxu0 0
        %2109 = vmatpush2.bf16.msra.mxu0 0
        %2110 = vmatprep.subr.bf16.mxu0 0
        %2111 = vmatpush2.bf16.msra.mxu0 0
        %2112 = vmatprep.subr.bf16.mxu0 0
        %2113 = vmatpush2.bf16.msra.mxu0 0
        %2114 = vmatprep.subr.bf16.mxu0 0
        %2115 = vmatpush2.bf16.msra.mxu0 0
        %2116 = vmatprep.subr.bf16.mxu0 0
        %2117 = vmatpush2.bf16.msra.mxu0 0
        %2118 = vmatprep.subr.bf16.mxu0 0
        %2119 = vmatpush2.bf16.msra.mxu0 0
        %2120 = vmatprep.mubr.bf16.mxu0 0
        %2121 = vmatmul.mubr.bf16.gmra.mxu0 %v1156
        %v2122 = vpop.f32.mrf.mxu0
        %v2123 = vadd.f32 0.0, %v2122
        %v2124 = vpop.f32.mrf.mxu0
        %v2125 = vpop.f32.mrf.mxu0
        %v2126 = vadd.f32 0.0, %v2125
        %v2127 = vpop.f32.mrf.mxu0
        %2128 = vdwg.mxu0
        %v2129 = vadd.f32 %v2021, %v2123
        %v2130 = vadd.f32 %v2022, %v2126
        %s2131 = scalar_lea.vmem %s5, 576
        %v2132 = vld [vmem:[%s2131] sm:$0xf]
        %v2133 = vld [vmem:[%s2131 + $0x4] sm:$0xf]
        %v2134 = vld [vmem:[%s2131 + $0x8] sm:$0xf]
        %v2135 = vld [vmem:[%s2131 + $0xc] sm:$0xf]
        %v2136 = vld [vmem:[%s2131 + $0x10] sm:$0xf]
        %v2137 = vld [vmem:[%s2131 + $0x14] sm:$0xf]
        %v2138 = vld [vmem:[%s2131 + $0x18] sm:$0xf]
        %v2139 = vld [vmem:[%s2131 + $0x1c] sm:$0xf]
        %v2140 = vld [vmem:[%s2131 + $0x20] sm:$0xf]
        %v2141 = vld [vmem:[%s2131 + $0x24] sm:$0xf]
        %v2142 = vld [vmem:[%s2131 + $0x28] sm:$0xf]
        %v2143 = vld [vmem:[%s2131 + $0x2c] sm:$0xf]
        %v2144 = vld [vmem:[%s2131 + $0x30] sm:$0xf]
        %v2145 = vld [vmem:[%s2131 + $0x34] sm:$0xf]
        %v2146 = vld [vmem:[%s2131 + $0x38] sm:$0xf]
        %v2147 = vld [vmem:[%s2131 + $0x3c] sm:$0xf]
        %v2164 = vunpack.c.l.b16 %v2132
        %v2165 = vunpack.c.l.b16 %v2133
        %v2166 = vunpack.c.l.b16 %v2134
        %v2167 = vunpack.c.l.b16 %v2135
        %v2168 = vunpack.c.l.b16 %v2136
        %v2169 = vunpack.c.l.b16 %v2137
        %v2170 = vunpack.c.l.b16 %v2138
        %v2171 = vunpack.c.l.b16 %v2139
        %v2172 = vunpack.c.l.b16 %v2140
        %v2173 = vunpack.c.l.b16 %v2141
        %v2174 = vunpack.c.l.b16 %v2142
        %v2175 = vunpack.c.l.b16 %v2143
        %v2176 = vunpack.c.l.b16 %v2144
        %v2177 = vunpack.c.l.b16 %v2145
        %v2178 = vunpack.c.l.b16 %v2146
        %v2179 = vunpack.c.l.b16 %v2147
        %v2180 = vpack.c.b16 %v2165, %v2164
        %v2181 = vpack.c.b16 %v2167, %v2166
        %v2182 = vpack.c.b16 %v2169, %v2168
        %v2183 = vpack.c.b16 %v2171, %v2170
        %v2184 = vpack.c.b16 %v2173, %v2172
        %v2185 = vpack.c.b16 %v2175, %v2174
        %v2186 = vpack.c.b16 %v2177, %v2176
        %v2187 = vpack.c.b16 %v2179, %v2178
        %2196 = vmatprep.subr.bf16.mxu0 0
        %2197 = vmatpush1.bf16.msra.mxu0 %v2187
        %2198 = vmatprep.subr.bf16.mxu0 0
        %2199 = vmatpush1.bf16.msra.mxu0 %v2186
        %2200 = vmatprep.subr.bf16.mxu0 0
        %2201 = vmatpush1.bf16.msra.mxu0 %v2185
        %2202 = vmatprep.subr.bf16.mxu0 0
        %2203 = vmatpush1.bf16.msra.mxu0 %v2184
        %2204 = vmatprep.subr.bf16.mxu0 0
        %2205 = vmatpush1.bf16.msra.mxu0 %v2183
        %2206 = vmatprep.subr.bf16.mxu0 0
        %2207 = vmatpush1.bf16.msra.mxu0 %v2182
        %2208 = vmatprep.subr.bf16.mxu0 0
        %2209 = vmatpush1.bf16.msra.mxu0 %v2181
        %2210 = vmatprep.subr.bf16.mxu0 0
        %2211 = vmatpush1.bf16.msra.mxu0 %v2180
        %2212 = vmatprep.subr.bf16.mxu0 0
        %2213 = vmatpush2.bf16.msra.mxu0 0
        %2214 = vmatprep.subr.bf16.mxu0 0
        %2215 = vmatpush2.bf16.msra.mxu0 0
        %2216 = vmatprep.subr.bf16.mxu0 0
        %2217 = vmatpush2.bf16.msra.mxu0 0
        %2218 = vmatprep.subr.bf16.mxu0 0
        %2219 = vmatpush2.bf16.msra.mxu0 0
        %2220 = vmatprep.subr.bf16.mxu0 0
        %2221 = vmatpush2.bf16.msra.mxu0 0
        %2222 = vmatprep.subr.bf16.mxu0 0
        %2223 = vmatpush2.bf16.msra.mxu0 0
        %2224 = vmatprep.subr.bf16.mxu0 0
        %2225 = vmatpush2.bf16.msra.mxu0 0
        %2226 = vmatprep.subr.bf16.mxu0 0
        %2227 = vmatpush2.bf16.msra.mxu0 0
        %2228 = vmatprep.mubr.bf16.mxu0 0
        %2229 = vmatmul.mubr.bf16.gmra.mxu0 %v1157
        %v2230 = vpop.f32.mrf.mxu0
        %v2231 = vadd.f32 0.0, %v2230
        %v2232 = vpop.f32.mrf.mxu0
        %v2233 = vpop.f32.mrf.mxu0
        %v2234 = vadd.f32 0.0, %v2233
        %v2235 = vpop.f32.mrf.mxu0
        %2236 = vdwg.mxu0
        %v2237 = vadd.f32 %v2129, %v2231
        %v2238 = vadd.f32 %v2130, %v2234
        %s2239 = scalar_lea.vmem %s5, 640
        %v2240 = vld [vmem:[%s2239] sm:$0xf]
        %v2241 = vld [vmem:[%s2239 + $0x4] sm:$0xf]
        %v2242 = vld [vmem:[%s2239 + $0x8] sm:$0xf]
        %v2243 = vld [vmem:[%s2239 + $0xc] sm:$0xf]
        %v2244 = vld [vmem:[%s2239 + $0x10] sm:$0xf]
        %v2245 = vld [vmem:[%s2239 + $0x14] sm:$0xf]
        %v2246 = vld [vmem:[%s2239 + $0x18] sm:$0xf]
        %v2247 = vld [vmem:[%s2239 + $0x1c] sm:$0xf]
        %v2248 = vld [vmem:[%s2239 + $0x20] sm:$0xf]
        %v2249 = vld [vmem:[%s2239 + $0x24] sm:$0xf]
        %v2250 = vld [vmem:[%s2239 + $0x28] sm:$0xf]
        %v2251 = vld [vmem:[%s2239 + $0x2c] sm:$0xf]
        %v2252 = vld [vmem:[%s2239 + $0x30] sm:$0xf]
        %v2253 = vld [vmem:[%s2239 + $0x34] sm:$0xf]
        %v2254 = vld [vmem:[%s2239 + $0x38] sm:$0xf]
        %v2255 = vld [vmem:[%s2239 + $0x3c] sm:$0xf]
        %v2272 = vunpack.c.l.b16 %v2240
        %v2273 = vunpack.c.l.b16 %v2241
        %v2274 = vunpack.c.l.b16 %v2242
        %v2275 = vunpack.c.l.b16 %v2243
        %v2276 = vunpack.c.l.b16 %v2244
        %v2277 = vunpack.c.l.b16 %v2245
        %v2278 = vunpack.c.l.b16 %v2246
        %v2279 = vunpack.c.l.b16 %v2247
        %v2280 = vunpack.c.l.b16 %v2248
        %v2281 = vunpack.c.l.b16 %v2249
        %v2282 = vunpack.c.l.b16 %v2250
        %v2283 = vunpack.c.l.b16 %v2251
        %v2284 = vunpack.c.l.b16 %v2252
        %v2285 = vunpack.c.l.b16 %v2253
        %v2286 = vunpack.c.l.b16 %v2254
        %v2287 = vunpack.c.l.b16 %v2255
        %v2288 = vpack.c.b16 %v2273, %v2272
        %v2289 = vpack.c.b16 %v2275, %v2274
        %v2290 = vpack.c.b16 %v2277, %v2276
        %v2291 = vpack.c.b16 %v2279, %v2278
        %v2292 = vpack.c.b16 %v2281, %v2280
        %v2293 = vpack.c.b16 %v2283, %v2282
        %v2294 = vpack.c.b16 %v2285, %v2284
        %v2295 = vpack.c.b16 %v2287, %v2286
        %2304 = vmatprep.subr.bf16.mxu0 0
        %2305 = vmatpush1.bf16.msra.mxu0 %v2295
        %2306 = vmatprep.subr.bf16.mxu0 0
        %2307 = vmatpush1.bf16.msra.mxu0 %v2294
        %2308 = vmatprep.subr.bf16.mxu0 0
        %2309 = vmatpush1.bf16.msra.mxu0 %v2293
        %2310 = vmatprep.subr.bf16.mxu0 0
        %2311 = vmatpush1.bf16.msra.mxu0 %v2292
        %2312 = vmatprep.subr.bf16.mxu0 0
        %2313 = vmatpush1.bf16.msra.mxu0 %v2291
        %2314 = vmatprep.subr.bf16.mxu0 0
        %2315 = vmatpush1.bf16.msra.mxu0 %v2290
        %2316 = vmatprep.subr.bf16.mxu0 0
        %2317 = vmatpush1.bf16.msra.mxu0 %v2289
        %2318 = vmatprep.subr.bf16.mxu0 0
        %2319 = vmatpush1.bf16.msra.mxu0 %v2288
        %2320 = vmatprep.subr.bf16.mxu0 0
        %2321 = vmatpush2.bf16.msra.mxu0 0
        %2322 = vmatprep.subr.bf16.mxu0 0
        %2323 = vmatpush2.bf16.msra.mxu0 0
        %2324 = vmatprep.subr.bf16.mxu0 0
        %2325 = vmatpush2.bf16.msra.mxu0 0
        %2326 = vmatprep.subr.bf16.mxu0 0
        %2327 = vmatpush2.bf16.msra.mxu0 0
        %2328 = vmatprep.subr.bf16.mxu0 0
        %2329 = vmatpush2.bf16.msra.mxu0 0
        %2330 = vmatprep.subr.bf16.mxu0 0
        %2331 = vmatpush2.bf16.msra.mxu0 0
        %2332 = vmatprep.subr.bf16.mxu0 0
        %2333 = vmatpush2.bf16.msra.mxu0 0
        %2334 = vmatprep.subr.bf16.mxu0 0
        %2335 = vmatpush2.bf16.msra.mxu0 0
        %2336 = vmatprep.mubr.bf16.mxu0 0
        %2337 = vmatmul.mubr.bf16.gmra.mxu0 %v1158
        %v2338 = vpop.f32.mrf.mxu0
        %v2339 = vadd.f32 0.0, %v2338
        %v2340 = vpop.f32.mrf.mxu0
        %v2341 = vpop.f32.mrf.mxu0
        %v2342 = vadd.f32 0.0, %v2341
        %v2343 = vpop.f32.mrf.mxu0
        %2344 = vdwg.mxu0
        %v2345 = vadd.f32 %v2237, %v2339
        %v2346 = vadd.f32 %v2238, %v2342
        %s2347 = scalar_lea.vmem %s5, 704
        %v2348 = vld [vmem:[%s2347] sm:$0xf]
        %v2349 = vld [vmem:[%s2347 + $0x4] sm:$0xf]
        %v2350 = vld [vmem:[%s2347 + $0x8] sm:$0xf]
        %v2351 = vld [vmem:[%s2347 + $0xc] sm:$0xf]
        %v2352 = vld [vmem:[%s2347 + $0x10] sm:$0xf]
        %v2353 = vld [vmem:[%s2347 + $0x14] sm:$0xf]
        %v2354 = vld [vmem:[%s2347 + $0x18] sm:$0xf]
        %v2355 = vld [vmem:[%s2347 + $0x1c] sm:$0xf]
        %v2356 = vld [vmem:[%s2347 + $0x20] sm:$0xf]
        %v2357 = vld [vmem:[%s2347 + $0x24] sm:$0xf]
        %v2358 = vld [vmem:[%s2347 + $0x28] sm:$0xf]
        %v2359 = vld [vmem:[%s2347 + $0x2c] sm:$0xf]
        %v2360 = vld [vmem:[%s2347 + $0x30] sm:$0xf]
        %v2361 = vld [vmem:[%s2347 + $0x34] sm:$0xf]
        %v2362 = vld [vmem:[%s2347 + $0x38] sm:$0xf]
        %v2363 = vld [vmem:[%s2347 + $0x3c] sm:$0xf]
        %v2380 = vunpack.c.l.b16 %v2348
        %v2381 = vunpack.c.l.b16 %v2349
        %v2382 = vunpack.c.l.b16 %v2350
        %v2383 = vunpack.c.l.b16 %v2351
        %v2384 = vunpack.c.l.b16 %v2352
        %v2385 = vunpack.c.l.b16 %v2353
        %v2386 = vunpack.c.l.b16 %v2354
        %v2387 = vunpack.c.l.b16 %v2355
        %v2388 = vunpack.c.l.b16 %v2356
        %v2389 = vunpack.c.l.b16 %v2357
        %v2390 = vunpack.c.l.b16 %v2358
        %v2391 = vunpack.c.l.b16 %v2359
        %v2392 = vunpack.c.l.b16 %v2360
        %v2393 = vunpack.c.l.b16 %v2361
        %v2394 = vunpack.c.l.b16 %v2362
        %v2395 = vunpack.c.l.b16 %v2363
        %v2396 = vpack.c.b16 %v2381, %v2380
        %v2397 = vpack.c.b16 %v2383, %v2382
        %v2398 = vpack.c.b16 %v2385, %v2384
        %v2399 = vpack.c.b16 %v2387, %v2386
        %v2400 = vpack.c.b16 %v2389, %v2388
        %v2401 = vpack.c.b16 %v2391, %v2390
        %v2402 = vpack.c.b16 %v2393, %v2392
        %v2403 = vpack.c.b16 %v2395, %v2394
        %2412 = vmatprep.subr.bf16.mxu0 0
        %2413 = vmatpush1.bf16.msra.mxu0 %v2403
        %2414 = vmatprep.subr.bf16.mxu0 0
        %2415 = vmatpush1.bf16.msra.mxu0 %v2402
        %2416 = vmatprep.subr.bf16.mxu0 0
        %2417 = vmatpush1.bf16.msra.mxu0 %v2401
        %2418 = vmatprep.subr.bf16.mxu0 0
        %2419 = vmatpush1.bf16.msra.mxu0 %v2400
        %2420 = vmatprep.subr.bf16.mxu0 0
        %2421 = vmatpush1.bf16.msra.mxu0 %v2399
        %2422 = vmatprep.subr.bf16.mxu0 0
        %2423 = vmatpush1.bf16.msra.mxu0 %v2398
        %2424 = vmatprep.subr.bf16.mxu0 0
        %2425 = vmatpush1.bf16.msra.mxu0 %v2397
        %2426 = vmatprep.subr.bf16.mxu0 0
        %2427 = vmatpush1.bf16.msra.mxu0 %v2396
        %2428 = vmatprep.subr.bf16.mxu0 0
        %2429 = vmatpush2.bf16.msra.mxu0 0
        %2430 = vmatprep.subr.bf16.mxu0 0
        %2431 = vmatpush2.bf16.msra.mxu0 0
        %2432 = vmatprep.subr.bf16.mxu0 0
        %2433 = vmatpush2.bf16.msra.mxu0 0
        %2434 = vmatprep.subr.bf16.mxu0 0
        %2435 = vmatpush2.bf16.msra.mxu0 0
        %2436 = vmatprep.subr.bf16.mxu0 0
        %2437 = vmatpush2.bf16.msra.mxu0 0
        %2438 = vmatprep.subr.bf16.mxu0 0
        %2439 = vmatpush2.bf16.msra.mxu0 0
        %2440 = vmatprep.subr.bf16.mxu0 0
        %2441 = vmatpush2.bf16.msra.mxu0 0
        %2442 = vmatprep.subr.bf16.mxu0 0
        %2443 = vmatpush2.bf16.msra.mxu0 0
        %2444 = vmatprep.mubr.bf16.mxu0 0
        %2445 = vmatmul.mubr.bf16.gmra.mxu0 %v1159
        %v2446 = vpop.f32.mrf.mxu0
        %v2447 = vadd.f32 0.0, %v2446
        %v2448 = vpop.f32.mrf.mxu0
        %v2449 = vpop.f32.mrf.mxu0
        %v2450 = vadd.f32 0.0, %v2449
        %v2451 = vpop.f32.mrf.mxu0
        %2452 = vdwg.mxu0
        %v2453 = vadd.f32 %v2345, %v2447
        %v2454 = vadd.f32 %v2346, %v2450
        %s2455 = scalar_lea.vmem %s5, 768
        %v2456 = vld [vmem:[%s2455] sm:$0xf]
        %v2457 = vld [vmem:[%s2455 + $0x4] sm:$0xf]
        %v2458 = vld [vmem:[%s2455 + $0x8] sm:$0xf]
        %v2459 = vld [vmem:[%s2455 + $0xc] sm:$0xf]
        %v2460 = vld [vmem:[%s2455 + $0x10] sm:$0xf]
        %v2461 = vld [vmem:[%s2455 + $0x14] sm:$0xf]
        %v2462 = vld [vmem:[%s2455 + $0x18] sm:$0xf]
        %v2463 = vld [vmem:[%s2455 + $0x1c] sm:$0xf]
        %v2464 = vld [vmem:[%s2455 + $0x20] sm:$0xf]
        %v2465 = vld [vmem:[%s2455 + $0x24] sm:$0xf]
        %v2466 = vld [vmem:[%s2455 + $0x28] sm:$0xf]
        %v2467 = vld [vmem:[%s2455 + $0x2c] sm:$0xf]
        %v2468 = vld [vmem:[%s2455 + $0x30] sm:$0xf]
        %v2469 = vld [vmem:[%s2455 + $0x34] sm:$0xf]
        %v2470 = vld [vmem:[%s2455 + $0x38] sm:$0xf]
        %v2471 = vld [vmem:[%s2455 + $0x3c] sm:$0xf]
        %v2488 = vunpack.c.l.b16 %v2456
        %v2489 = vunpack.c.l.b16 %v2457
        %v2490 = vunpack.c.l.b16 %v2458
        %v2491 = vunpack.c.l.b16 %v2459
        %v2492 = vunpack.c.l.b16 %v2460
        %v2493 = vunpack.c.l.b16 %v2461
        %v2494 = vunpack.c.l.b16 %v2462
        %v2495 = vunpack.c.l.b16 %v2463
        %v2496 = vunpack.c.l.b16 %v2464
        %v2497 = vunpack.c.l.b16 %v2465
        %v2498 = vunpack.c.l.b16 %v2466
        %v2499 = vunpack.c.l.b16 %v2467
        %v2500 = vunpack.c.l.b16 %v2468
        %v2501 = vunpack.c.l.b16 %v2469
        %v2502 = vunpack.c.l.b16 %v2470
        %v2503 = vunpack.c.l.b16 %v2471
        %v2504 = vpack.c.b16 %v2489, %v2488
        %v2505 = vpack.c.b16 %v2491, %v2490
        %v2506 = vpack.c.b16 %v2493, %v2492
        %v2507 = vpack.c.b16 %v2495, %v2494
        %v2508 = vpack.c.b16 %v2497, %v2496
        %v2509 = vpack.c.b16 %v2499, %v2498
        %v2510 = vpack.c.b16 %v2501, %v2500
        %v2511 = vpack.c.b16 %v2503, %v2502
        %2520 = vmatprep.subr.bf16.mxu0 0
        %2521 = vmatpush1.bf16.msra.mxu0 %v2511
        %2522 = vmatprep.subr.bf16.mxu0 0
        %2523 = vmatpush1.bf16.msra.mxu0 %v2510
        %2524 = vmatprep.subr.bf16.mxu0 0
        %2525 = vmatpush1.bf16.msra.mxu0 %v2509
        %2526 = vmatprep.subr.bf16.mxu0 0
        %2527 = vmatpush1.bf16.msra.mxu0 %v2508
        %2528 = vmatprep.subr.bf16.mxu0 0
        %2529 = vmatpush1.bf16.msra.mxu0 %v2507
        %2530 = vmatprep.subr.bf16.mxu0 0
        %2531 = vmatpush1.bf16.msra.mxu0 %v2506
        %2532 = vmatprep.subr.bf16.mxu0 0
        %2533 = vmatpush1.bf16.msra.mxu0 %v2505
        %2534 = vmatprep.subr.bf16.mxu0 0
        %2535 = vmatpush1.bf16.msra.mxu0 %v2504
        %2536 = vmatprep.subr.bf16.mxu0 0
        %2537 = vmatpush2.bf16.msra.mxu0 0
        %2538 = vmatprep.subr.bf16.mxu0 0
        %2539 = vmatpush2.bf16.msra.mxu0 0
        %2540 = vmatprep.subr.bf16.mxu0 0
        %2541 = vmatpush2.bf16.msra.mxu0 0
        %2542 = vmatprep.subr.bf16.mxu0 0
        %2543 = vmatpush2.bf16.msra.mxu0 0
        %2544 = vmatprep.subr.bf16.mxu0 0
        %2545 = vmatpush2.bf16.msra.mxu0 0
        %2546 = vmatprep.subr.bf16.mxu0 0
        %2547 = vmatpush2.bf16.msra.mxu0 0
        %2548 = vmatprep.subr.bf16.mxu0 0
        %2549 = vmatpush2.bf16.msra.mxu0 0
        %2550 = vmatprep.subr.bf16.mxu0 0
        %2551 = vmatpush2.bf16.msra.mxu0 0
        %2552 = vmatprep.mubr.bf16.mxu0 0
        %2553 = vmatmul.mubr.bf16.gmra.mxu0 %v1160
        %v2554 = vpop.f32.mrf.mxu0
        %v2555 = vadd.f32 0.0, %v2554
        %v2556 = vpop.f32.mrf.mxu0
        %v2557 = vpop.f32.mrf.mxu0
        %v2558 = vadd.f32 0.0, %v2557
        %v2559 = vpop.f32.mrf.mxu0
        %2560 = vdwg.mxu0
        %v2561 = vadd.f32 %v2453, %v2555
        %v2562 = vadd.f32 %v2454, %v2558
        %s2563 = scalar_lea.vmem %s5, 832
        %v2564 = vld [vmem:[%s2563] sm:$0xf]
        %v2565 = vld [vmem:[%s2563 + $0x4] sm:$0xf]
        %v2566 = vld [vmem:[%s2563 + $0x8] sm:$0xf]
        %v2567 = vld [vmem:[%s2563 + $0xc] sm:$0xf]
        %v2568 = vld [vmem:[%s2563 + $0x10] sm:$0xf]
        %v2569 = vld [vmem:[%s2563 + $0x14] sm:$0xf]
        %v2570 = vld [vmem:[%s2563 + $0x18] sm:$0xf]
        %v2571 = vld [vmem:[%s2563 + $0x1c] sm:$0xf]
        %v2572 = vld [vmem:[%s2563 + $0x20] sm:$0xf]
        %v2573 = vld [vmem:[%s2563 + $0x24] sm:$0xf]
        %v2574 = vld [vmem:[%s2563 + $0x28] sm:$0xf]
        %v2575 = vld [vmem:[%s2563 + $0x2c] sm:$0xf]
        %v2576 = vld [vmem:[%s2563 + $0x30] sm:$0xf]
        %v2577 = vld [vmem:[%s2563 + $0x34] sm:$0xf]
        %v2578 = vld [vmem:[%s2563 + $0x38] sm:$0xf]
        %v2579 = vld [vmem:[%s2563 + $0x3c] sm:$0xf]
        %v2596 = vunpack.c.l.b16 %v2564
        %v2597 = vunpack.c.l.b16 %v2565
        %v2598 = vunpack.c.l.b16 %v2566
        %v2599 = vunpack.c.l.b16 %v2567
        %v2600 = vunpack.c.l.b16 %v2568
        %v2601 = vunpack.c.l.b16 %v2569
        %v2602 = vunpack.c.l.b16 %v2570
        %v2603 = vunpack.c.l.b16 %v2571
        %v2604 = vunpack.c.l.b16 %v2572
        %v2605 = vunpack.c.l.b16 %v2573
        %v2606 = vunpack.c.l.b16 %v2574
        %v2607 = vunpack.c.l.b16 %v2575
        %v2608 = vunpack.c.l.b16 %v2576
        %v2609 = vunpack.c.l.b16 %v2577
        %v2610 = vunpack.c.l.b16 %v2578
        %v2611 = vunpack.c.l.b16 %v2579
        %v2612 = vpack.c.b16 %v2597, %v2596
        %v2613 = vpack.c.b16 %v2599, %v2598
        %v2614 = vpack.c.b16 %v2601, %v2600
        %v2615 = vpack.c.b16 %v2603, %v2602
        %v2616 = vpack.c.b16 %v2605, %v2604
        %v2617 = vpack.c.b16 %v2607, %v2606
        %v2618 = vpack.c.b16 %v2609, %v2608
        %v2619 = vpack.c.b16 %v2611, %v2610
        %2628 = vmatprep.subr.bf16.mxu0 0
        %2629 = vmatpush1.bf16.msra.mxu0 %v2619
        %2630 = vmatprep.subr.bf16.mxu0 0
        %2631 = vmatpush1.bf16.msra.mxu0 %v2618
        %2632 = vmatprep.subr.bf16.mxu0 0
        %2633 = vmatpush1.bf16.msra.mxu0 %v2617
        %2634 = vmatprep.subr.bf16.mxu0 0
        %2635 = vmatpush1.bf16.msra.mxu0 %v2616
        %2636 = vmatprep.subr.bf16.mxu0 0
        %2637 = vmatpush1.bf16.msra.mxu0 %v2615
        %2638 = vmatprep.subr.bf16.mxu0 0
        %2639 = vmatpush1.bf16.msra.mxu0 %v2614
        %2640 = vmatprep.subr.bf16.mxu0 0
        %2641 = vmatpush1.bf16.msra.mxu0 %v2613
        %2642 = vmatprep.subr.bf16.mxu0 0
        %2643 = vmatpush1.bf16.msra.mxu0 %v2612
        %2644 = vmatprep.subr.bf16.mxu0 0
        %2645 = vmatpush2.bf16.msra.mxu0 0
        %2646 = vmatprep.subr.bf16.mxu0 0
        %2647 = vmatpush2.bf16.msra.mxu0 0
        %2648 = vmatprep.subr.bf16.mxu0 0
        %2649 = vmatpush2.bf16.msra.mxu0 0
        %2650 = vmatprep.subr.bf16.mxu0 0
        %2651 = vmatpush2.bf16.msra.mxu0 0
        %2652 = vmatprep.subr.bf16.mxu0 0
        %2653 = vmatpush2.bf16.msra.mxu0 0
        %2654 = vmatprep.subr.bf16.mxu0 0
        %2655 = vmatpush2.bf16.msra.mxu0 0
        %2656 = vmatprep.subr.bf16.mxu0 0
        %2657 = vmatpush2.bf16.msra.mxu0 0
        %2658 = vmatprep.subr.bf16.mxu0 0
        %2659 = vmatpush2.bf16.msra.mxu0 0
        %2660 = vmatprep.mubr.bf16.mxu0 0
        %2661 = vmatmul.mubr.bf16.gmra.mxu0 %v1161
        %v2662 = vpop.f32.mrf.mxu0
        %v2663 = vadd.f32 0.0, %v2662
        %v2664 = vpop.f32.mrf.mxu0
        %v2665 = vpop.f32.mrf.mxu0
        %v2666 = vadd.f32 0.0, %v2665
        %v2667 = vpop.f32.mrf.mxu0
        %2668 = vdwg.mxu0
        %v2669 = vadd.f32 %v2561, %v2663
        %v2670 = vadd.f32 %v2562, %v2666
        %s2671 = scalar_lea.vmem %s5, 896
        %v2672 = vld [vmem:[%s2671] sm:$0xf]
        %v2673 = vld [vmem:[%s2671 + $0x4] sm:$0xf]
        %v2674 = vld [vmem:[%s2671 + $0x8] sm:$0xf]
        %v2675 = vld [vmem:[%s2671 + $0xc] sm:$0xf]
        %v2676 = vld [vmem:[%s2671 + $0x10] sm:$0xf]
        %v2677 = vld [vmem:[%s2671 + $0x14] sm:$0xf]
        %v2678 = vld [vmem:[%s2671 + $0x18] sm:$0xf]
        %v2679 = vld [vmem:[%s2671 + $0x1c] sm:$0xf]
        %v2680 = vld [vmem:[%s2671 + $0x20] sm:$0xf]
        %v2681 = vld [vmem:[%s2671 + $0x24] sm:$0xf]
        %v2682 = vld [vmem:[%s2671 + $0x28] sm:$0xf]
        %v2683 = vld [vmem:[%s2671 + $0x2c] sm:$0xf]
        %v2684 = vld [vmem:[%s2671 + $0x30] sm:$0xf]
        %v2685 = vld [vmem:[%s2671 + $0x34] sm:$0xf]
        %v2686 = vld [vmem:[%s2671 + $0x38] sm:$0xf]
        %v2687 = vld [vmem:[%s2671 + $0x3c] sm:$0xf]
        %v2704 = vunpack.c.l.b16 %v2672
        %v2705 = vunpack.c.l.b16 %v2673
        %v2706 = vunpack.c.l.b16 %v2674
        %v2707 = vunpack.c.l.b16 %v2675
        %v2708 = vunpack.c.l.b16 %v2676
        %v2709 = vunpack.c.l.b16 %v2677
        %v2710 = vunpack.c.l.b16 %v2678
        %v2711 = vunpack.c.l.b16 %v2679
        %v2712 = vunpack.c.l.b16 %v2680
        %v2713 = vunpack.c.l.b16 %v2681
        %v2714 = vunpack.c.l.b16 %v2682
        %v2715 = vunpack.c.l.b16 %v2683
        %v2716 = vunpack.c.l.b16 %v2684
        %v2717 = vunpack.c.l.b16 %v2685
        %v2718 = vunpack.c.l.b16 %v2686
        %v2719 = vunpack.c.l.b16 %v2687
        %v2720 = vpack.c.b16 %v2705, %v2704
        %v2721 = vpack.c.b16 %v2707, %v2706
        %v2722 = vpack.c.b16 %v2709, %v2708
        %v2723 = vpack.c.b16 %v2711, %v2710
        %v2724 = vpack.c.b16 %v2713, %v2712
        %v2725 = vpack.c.b16 %v2715, %v2714
        %v2726 = vpack.c.b16 %v2717, %v2716
        %v2727 = vpack.c.b16 %v2719, %v2718
        %2736 = vmatprep.subr.bf16.mxu0 0
        %2737 = vmatpush1.bf16.msra.mxu0 %v2727
        %2738 = vmatprep.subr.bf16.mxu0 0
        %2739 = vmatpush1.bf16.msra.mxu0 %v2726
        %2740 = vmatprep.subr.bf16.mxu0 0
        %2741 = vmatpush1.bf16.msra.mxu0 %v2725
        %2742 = vmatprep.subr.bf16.mxu0 0
        %2743 = vmatpush1.bf16.msra.mxu0 %v2724
        %2744 = vmatprep.subr.bf16.mxu0 0
        %2745 = vmatpush1.bf16.msra.mxu0 %v2723
        %2746 = vmatprep.subr.bf16.mxu0 0
        %2747 = vmatpush1.bf16.msra.mxu0 %v2722
        %2748 = vmatprep.subr.bf16.mxu0 0
        %2749 = vmatpush1.bf16.msra.mxu0 %v2721
        %2750 = vmatprep.subr.bf16.mxu0 0
        %2751 = vmatpush1.bf16.msra.mxu0 %v2720
        %2752 = vmatprep.subr.bf16.mxu0 0
        %2753 = vmatpush2.bf16.msra.mxu0 0
        %2754 = vmatprep.subr.bf16.mxu0 0
        %2755 = vmatpush2.bf16.msra.mxu0 0
        %2756 = vmatprep.subr.bf16.mxu0 0
        %2757 = vmatpush2.bf16.msra.mxu0 0
        %2758 = vmatprep.subr.bf16.mxu0 0
        %2759 = vmatpush2.bf16.msra.mxu0 0
        %2760 = vmatprep.subr.bf16.mxu0 0
        %2761 = vmatpush2.bf16.msra.mxu0 0
        %2762 = vmatprep.subr.bf16.mxu0 0
        %2763 = vmatpush2.bf16.msra.mxu0 0
        %2764 = vmatprep.subr.bf16.mxu0 0
        %2765 = vmatpush2.bf16.msra.mxu0 0
        %2766 = vmatprep.subr.bf16.mxu0 0
        %2767 = vmatpush2.bf16.msra.mxu0 0
        %2768 = vmatprep.mubr.bf16.mxu0 0
        %2769 = vmatmul.mubr.bf16.gmra.mxu0 %v1162
        %v2770 = vpop.f32.mrf.mxu0
        %v2771 = vadd.f32 0.0, %v2770
        %v2772 = vpop.f32.mrf.mxu0
        %v2773 = vpop.f32.mrf.mxu0
        %v2774 = vadd.f32 0.0, %v2773
        %v2775 = vpop.f32.mrf.mxu0
        %2776 = vdwg.mxu0
        %v2777 = vadd.f32 %v2669, %v2771
        %v2778 = vadd.f32 %v2670, %v2774
        %s2779 = scalar_lea.vmem %s5, 960
        %v2780 = vld [vmem:[%s2779] sm:$0xf]
        %v2781 = vld [vmem:[%s2779 + $0x4] sm:$0xf]
        %v2782 = vld [vmem:[%s2779 + $0x8] sm:$0xf]
        %v2783 = vld [vmem:[%s2779 + $0xc] sm:$0xf]
        %v2784 = vld [vmem:[%s2779 + $0x10] sm:$0xf]
        %v2785 = vld [vmem:[%s2779 + $0x14] sm:$0xf]
        %v2786 = vld [vmem:[%s2779 + $0x18] sm:$0xf]
        %v2787 = vld [vmem:[%s2779 + $0x1c] sm:$0xf]
        %v2788 = vld [vmem:[%s2779 + $0x20] sm:$0xf]
        %v2789 = vld [vmem:[%s2779 + $0x24] sm:$0xf]
        %v2790 = vld [vmem:[%s2779 + $0x28] sm:$0xf]
        %v2791 = vld [vmem:[%s2779 + $0x2c] sm:$0xf]
        %v2792 = vld [vmem:[%s2779 + $0x30] sm:$0xf]
        %v2793 = vld [vmem:[%s2779 + $0x34] sm:$0xf]
        %v2794 = vld [vmem:[%s2779 + $0x38] sm:$0xf]
        %v2795 = vld [vmem:[%s2779 + $0x3c] sm:$0xf]
        %v2812 = vunpack.c.l.b16 %v2780
        %v2813 = vunpack.c.l.b16 %v2781
        %v2814 = vunpack.c.l.b16 %v2782
        %v2815 = vunpack.c.l.b16 %v2783
        %v2816 = vunpack.c.l.b16 %v2784
        %v2817 = vunpack.c.l.b16 %v2785
        %v2818 = vunpack.c.l.b16 %v2786
        %v2819 = vunpack.c.l.b16 %v2787
        %v2820 = vunpack.c.l.b16 %v2788
        %v2821 = vunpack.c.l.b16 %v2789
        %v2822 = vunpack.c.l.b16 %v2790
        %v2823 = vunpack.c.l.b16 %v2791
        %v2824 = vunpack.c.l.b16 %v2792
        %v2825 = vunpack.c.l.b16 %v2793
        %v2826 = vunpack.c.l.b16 %v2794
        %v2827 = vunpack.c.l.b16 %v2795
        %v2828 = vpack.c.b16 %v2813, %v2812
        %v2829 = vpack.c.b16 %v2815, %v2814
        %v2830 = vpack.c.b16 %v2817, %v2816
        %v2831 = vpack.c.b16 %v2819, %v2818
        %v2832 = vpack.c.b16 %v2821, %v2820
        %v2833 = vpack.c.b16 %v2823, %v2822
        %v2834 = vpack.c.b16 %v2825, %v2824
        %v2835 = vpack.c.b16 %v2827, %v2826
        %2844 = vmatprep.subr.bf16.mxu0 0
        %2845 = vmatpush1.bf16.msra.mxu0 %v2835
        %2846 = vmatprep.subr.bf16.mxu0 0
        %2847 = vmatpush1.bf16.msra.mxu0 %v2834
        %2848 = vmatprep.subr.bf16.mxu0 0
        %2849 = vmatpush1.bf16.msra.mxu0 %v2833
        %2850 = vmatprep.subr.bf16.mxu0 0
        %2851 = vmatpush1.bf16.msra.mxu0 %v2832
        %2852 = vmatprep.subr.bf16.mxu0 0
        %2853 = vmatpush1.bf16.msra.mxu0 %v2831
        %2854 = vmatprep.subr.bf16.mxu0 0
        %2855 = vmatpush1.bf16.msra.mxu0 %v2830
        %2856 = vmatprep.subr.bf16.mxu0 0
        %2857 = vmatpush1.bf16.msra.mxu0 %v2829
        %2858 = vmatprep.subr.bf16.mxu0 0
        %2859 = vmatpush1.bf16.msra.mxu0 %v2828
        %2860 = vmatprep.subr.bf16.mxu0 0
        %2861 = vmatpush2.bf16.msra.mxu0 0
        %2862 = vmatprep.subr.bf16.mxu0 0
        %2863 = vmatpush2.bf16.msra.mxu0 0
        %2864 = vmatprep.subr.bf16.mxu0 0
        %2865 = vmatpush2.bf16.msra.mxu0 0
        %2866 = vmatprep.subr.bf16.mxu0 0
        %2867 = vmatpush2.bf16.msra.mxu0 0
        %2868 = vmatprep.subr.bf16.mxu0 0
        %2869 = vmatpush2.bf16.msra.mxu0 0
        %2870 = vmatprep.subr.bf16.mxu0 0
        %2871 = vmatpush2.bf16.msra.mxu0 0
        %2872 = vmatprep.subr.bf16.mxu0 0
        %2873 = vmatpush2.bf16.msra.mxu0 0
        %2874 = vmatprep.subr.bf16.mxu0 0
        %2875 = vmatpush2.bf16.msra.mxu0 0
        %2876 = vmatprep.mubr.bf16.mxu0 0
        %2877 = vmatmul.mubr.bf16.gmra.mxu0 %v1163
        %v2878 = vpop.f32.mrf.mxu0
        %v2879 = vadd.f32 0.0, %v2878
        %v2880 = vpop.f32.mrf.mxu0
        %v2881 = vpop.f32.mrf.mxu0
        %v2882 = vadd.f32 0.0, %v2881
        %v2883 = vpop.f32.mrf.mxu0
        %2884 = vdwg.mxu0
        %v2885 = vadd.f32 %v2777, %v2879
        %v2886 = vadd.f32 %v2778, %v2882
        %v2887 = vld [vmem:[%s6] sm:$0x1]
        %v2889 = vlaneseq
        %v2890 = vshrl.u32 %v2889, 7
        %v2891 = vsub.s32 0, %v2890
        %v2892 = vrot.slane %v2887, %v2891
        %v2894 = vadd.f32 %v2885, %v2892
        %v2895 = vadd.f32 %v2886, %v2892
        %v2896 = vmax.f32 %v2894, 0.0
        %v2897 = vmax.f32 %v2895, 0.0
        %v2898 = vpack.c.bf16 %v2897, %v2896
        %v2899 = vld [vmem:[%s7] sm:$0xf]
        %v2900 = vld [vmem:[%s7 + $0x4] sm:$0xf]
        %v2901 = vld [vmem:[%s7 + $0x8] sm:$0xf]
        %v2902 = vld [vmem:[%s7 + $0xc] sm:$0xf]
        %v2903 = vld [vmem:[%s7 + $0x10] sm:$0x3]
        %v2909 = vunpack.c.l.b16 %v2899
        %v2910 = vunpack.c.l.b16 %v2900
        %v2911 = vunpack.c.l.b16 %v2901
        %v2912 = vunpack.c.l.b16 %v2902
        %v2913 = vunpack.c.l.b16 %v2903
        %v2914 = vpack.c.b16 %v2910, %v2909
        %v2915 = vpack.c.b16 %v2912, %v2911
        %v2916 = vpack.c.b16 %v2913, %v2913
        %vm2917 = vcmask 130048
        %v2919 = vsel %vm2917, %v2914, 0
        %v2922 = vsel %vm2917, %v2915, 0
        %v2925 = vsel %vm2917, %v2916, 0
        %2927 = vmatprep.subr.bf16.mxu0 0
        %2928 = vmatpush1.bf16.msra.mxu0 0
        %2929 = vmatprep.subr.bf16.mxu0 0
        %2930 = vmatpush1.bf16.msra.mxu0 0
        %2931 = vmatprep.subr.bf16.mxu0 0
        %2932 = vmatpush1.bf16.msra.mxu0 0
        %2933 = vmatprep.subr.bf16.mxu0 0
        %2934 = vmatpush1.bf16.msra.mxu0 0
        %2935 = vmatprep.subr.bf16.mxu0 0
        %2936 = vmatpush1.bf16.msra.mxu0 0
        %2937 = vmatprep.subr.bf16.mxu0 0
        %2938 = vmatpush1.bf16.msra.mxu0 0
        %2939 = vmatprep.subr.bf16.mxu0 0
        %2940 = vmatpush1.bf16.msra.mxu0 0
        %2941 = vmatprep.subr.bf16.mxu0 0
        %2942 = vmatpush1.bf16.msra.mxu0 %v2898
        %2943 = vmatprep.subr.bf16.mxu0 0
        %2944 = vmatpush2.bf16.msra.mxu0 0
        %2945 = vmatprep.subr.bf16.mxu0 0
        %2946 = vmatpush2.bf16.msra.mxu0 0
        %2947 = vmatprep.subr.bf16.mxu0 0
        %2948 = vmatpush2.bf16.msra.mxu0 0
        %2949 = vmatprep.subr.bf16.mxu0 0
        %2950 = vmatpush2.bf16.msra.mxu0 0
        %2951 = vmatprep.subr.bf16.mxu0 0
        %2952 = vmatpush2.bf16.msra.mxu0 0
        %2953 = vmatprep.subr.bf16.mxu0 0
        %2954 = vmatpush2.bf16.msra.mxu0 0
        %2955 = vmatprep.subr.bf16.mxu0 0
        %2956 = vmatpush2.bf16.msra.mxu0 0
        %2957 = vmatprep.subr.bf16.mxu0 0
        %2958 = vmatpush2.bf16.msra.mxu0 0
        %2959 = vmatprep.mubr.bf16.mxu0 0
        %2960 = vmatmul.mubr.bf16.gmra.mxu0 %v2919
        %v2961 = vpop.f32.mrf.mxu0
        %v2962 = vadd.f32 0.0, %v2961
        %v2963 = vpop.f32.mrf.mxu0
        %v2964 = vpop.f32.mrf.mxu0
        %v2965 = vadd.f32 0.0, %v2964
        %v2966 = vpop.f32.mrf.mxu0
        %2967 = vmatprep.mubr.bf16.mxu0 0
        %2968 = vmatmul.mubr.bf16.gmra.mxu0 %v2922
        %v2969 = vpop.f32.mrf.mxu0
        %v2970 = vadd.f32 0.0, %v2969
        %v2971 = vpop.f32.mrf.mxu0
        %v2972 = vpop.f32.mrf.mxu0
        %v2973 = vadd.f32 0.0, %v2972
        %v2974 = vpop.f32.mrf.mxu0
        %2975 = vmatprep.mubr.bf16.mxu0 0
        %2976 = vmatmul.mubr.bf16.gmra.mxu0 %v2925
        %v2977 = vpop.f32.mrf.mxu0
        %v2978 = vadd.f32 0.0, %v2977
        %v2979 = vpop.f32.mrf.mxu0
        %v2980 = vpop.f32.mrf.mxu0
        %v2981 = vpop.f32.mrf.mxu0
        %2982 = vdwg.mxu0
        %v2983 = vpack.c.bf16 %v2965, %v2962
        %v2984 = vpack.c.bf16 %v2973, %v2970
        %v2985 = vpack.c.bf16 %v2978, %v2978
        %v2986 = vld [vmem:[%s8] sm:$0xf]
        %v2987 = vld [vmem:[%s8 + $0x4] sm:$0xf]
        %v2988 = vld [vmem:[%s8 + $0x8] sm:$0xf]
        %v2989 = vld [vmem:[%s8 + $0xc] sm:$0xf]
        %v2990 = vld [vmem:[%s8 + $0x10] sm:$0xf]
        %v2991 = vld [vmem:[%s8 + $0x14] sm:$0xf]
        %v2992 = vld [vmem:[%s8 + $0x18] sm:$0xf]
        %v2993 = vld [vmem:[%s8 + $0x1c] sm:$0xf]
        %v2994 = vld [vmem:[%s8 + $0x20] sm:$0xf]
        %v2995 = vld [vmem:[%s8 + $0x24] sm:$0xf]
        %v2996 = vld [vmem:[%s8 + $0x28] sm:$0xf]
        %v2997 = vld [vmem:[%s8 + $0x2c] sm:$0xf]
        %v2998 = vld [vmem:[%s8 + $0x30] sm:$0xf]
        %v2999 = vld [vmem:[%s8 + $0x34] sm:$0xf]
        %v3000 = vld [vmem:[%s8 + $0x38] sm:$0xf]
        %v3001 = vld [vmem:[%s8 + $0x3c] sm:$0xf]
        %s3002 = scalar_lea.vmem %s8, 64
        %v3003 = vld [vmem:[%s3002] sm:$0xf]
        %v3004 = vld [vmem:[%s3002 + $0x4] sm:$0xf]
        %v3005 = vld [vmem:[%s3002 + $0x8] sm:$0xf]
        %v3006 = vld [vmem:[%s3002 + $0xc] sm:$0xf]
        %v3007 = vld [vmem:[%s3002 + $0x10] sm:$0xf]
        %v3008 = vld [vmem:[%s3002 + $0x14] sm:$0xf]
        %v3009 = vld [vmem:[%s3002 + $0x18] sm:$0xf]
        %v3010 = vld [vmem:[%s3002 + $0x1c] sm:$0xf]
        %v3011 = vld [vmem:[%s3002 + $0x20] sm:$0xf]
        %v3012 = vld [vmem:[%s3002 + $0x24] sm:$0xf]
        %v3013 = vld [vmem:[%s3002 + $0x28] sm:$0xf]
        %v3014 = vld [vmem:[%s3002 + $0x2c] sm:$0xf]
        %v3015 = vld [vmem:[%s3002 + $0x30] sm:$0xf]
        %v3016 = vld [vmem:[%s3002 + $0x34] sm:$0xf]
        %v3017 = vld [vmem:[%s3002 + $0x38] sm:$0xf]
        %v3018 = vld [vmem:[%s3002 + $0x3c] sm:$0xf]
        %v3020 = vrot.slane %v2983, 2
        %v3038 = vunpack.c.l.b16 %v3003
        %v3039 = vunpack.c.l.b16 %v3004
        %v3040 = vunpack.c.l.b16 %v3005
        %v3041 = vunpack.c.l.b16 %v3006
        %v3042 = vunpack.c.l.b16 %v3007
        %v3043 = vunpack.c.l.b16 %v3008
        %v3044 = vunpack.c.l.b16 %v3009
        %v3045 = vunpack.c.l.b16 %v3010
        %v3046 = vunpack.c.l.b16 %v3011
        %v3047 = vunpack.c.l.b16 %v3012
        %v3048 = vunpack.c.l.b16 %v3013
        %v3049 = vunpack.c.l.b16 %v3014
        %v3050 = vunpack.c.l.b16 %v3015
        %v3051 = vunpack.c.l.b16 %v3016
        %v3052 = vunpack.c.l.b16 %v3017
        %v3053 = vunpack.c.l.b16 %v3018
        %v3054 = vpack.c.b16 %v3039, %v3038
        %v3055 = vpack.c.b16 %v3041, %v3040
        %v3056 = vpack.c.b16 %v3043, %v3042
        %v3057 = vpack.c.b16 %v3045, %v3044
        %v3058 = vpack.c.b16 %v3047, %v3046
        %v3059 = vpack.c.b16 %v3049, %v3048
        %v3060 = vpack.c.b16 %v3051, %v3050
        %v3061 = vpack.c.b16 %v3053, %v3052
        %3070 = vmatprep.subr.bf16.mxu0 0
        %3071 = vmatpush1.bf16.msra.mxu0 %v3061
        %3072 = vmatprep.subr.bf16.mxu0 0
        %3073 = vmatpush1.bf16.msra.mxu0 %v3060
        %3074 = vmatprep.subr.bf16.mxu0 0
        %3075 = vmatpush1.bf16.msra.mxu0 %v3059
        %3076 = vmatprep.subr.bf16.mxu0 0
        %3077 = vmatpush1.bf16.msra.mxu0 %v3058
        %3078 = vmatprep.subr.bf16.mxu0 0
        %3079 = vmatpush1.bf16.msra.mxu0 %v3057
        %3080 = vmatprep.subr.bf16.mxu0 0
        %3081 = vmatpush1.bf16.msra.mxu0 %v3056
        %3082 = vmatprep.subr.bf16.mxu0 0
        %3083 = vmatpush1.bf16.msra.mxu0 %v3055
        %3084 = vmatprep.subr.bf16.mxu0 0
        %3085 = vmatpush1.bf16.msra.mxu0 %v3054
        %3086 = vmatprep.subr.bf16.mxu0 0
        %3087 = vmatpush2.bf16.msra.mxu0 0
        %3088 = vmatprep.subr.bf16.mxu0 0
        %3089 = vmatpush2.bf16.msra.mxu0 0
        %3090 = vmatprep.subr.bf16.mxu0 0
        %3091 = vmatpush2.bf16.msra.mxu0 0
        %3092 = vmatprep.subr.bf16.mxu0 0
        %3093 = vmatpush2.bf16.msra.mxu0 0
        %3094 = vmatprep.subr.bf16.mxu0 0
        %3095 = vmatpush2.bf16.msra.mxu0 0
        %3096 = vmatprep.subr.bf16.mxu0 0
        %3097 = vmatpush2.bf16.msra.mxu0 0
        %3098 = vmatprep.subr.bf16.mxu0 0
        %3099 = vmatpush2.bf16.msra.mxu0 0
        %3100 = vmatprep.subr.bf16.mxu0 0
        %3101 = vmatpush2.bf16.msra.mxu0 0
        %3102 = vmatprep.mubr.bf16.mxu0 0
        %3103 = vmatmul.mubr.bf16.gmra.mxu0 %v3020
        %v3104 = vpop.f32.mrf.mxu0
        %v3105 = vadd.f32 0.0, %v3104
        %v3106 = vpop.f32.mrf.mxu0
        %v3107 = vpop.f32.mrf.mxu0
        %v3108 = vpop.f32.mrf.mxu0
        %3109 = vdwg.mxu0
        %v3126 = vunpack.c.l.b16 %v2986
        %v3127 = vunpack.c.l.b16 %v2987
        %v3128 = vunpack.c.l.b16 %v2988
        %v3129 = vunpack.c.l.b16 %v2989
        %v3130 = vunpack.c.l.b16 %v2990
        %v3131 = vunpack.c.l.b16 %v2991
        %v3132 = vunpack.c.l.b16 %v2992
        %v3133 = vunpack.c.l.b16 %v2993
        %v3134 = vunpack.c.l.b16 %v2994
        %v3135 = vunpack.c.l.b16 %v2995
        %v3136 = vunpack.c.l.b16 %v2996
        %v3137 = vunpack.c.l.b16 %v2997
        %v3138 = vunpack.c.l.b16 %v2998
        %v3139 = vunpack.c.l.b16 %v2999
        %v3140 = vunpack.c.l.b16 %v3000
        %v3141 = vunpack.c.l.b16 %v3001
        %v3142 = vpack.c.b16 %v3127, %v3126
        %v3143 = vpack.c.b16 %v3129, %v3128
        %v3144 = vpack.c.b16 %v3131, %v3130
        %v3145 = vpack.c.b16 %v3133, %v3132
        %v3146 = vpack.c.b16 %v3135, %v3134
        %v3147 = vpack.c.b16 %v3137, %v3136
        %v3148 = vpack.c.b16 %v3139, %v3138
        %v3149 = vpack.c.b16 %v3141, %v3140
        %3158 = vmatprep.subr.bf16.mxu0 0
        %3159 = vmatpush1.bf16.msra.mxu0 %v3149
        %3160 = vmatprep.subr.bf16.mxu0 0
        %3161 = vmatpush1.bf16.msra.mxu0 %v3148
        %3162 = vmatprep.subr.bf16.mxu0 0
        %3163 = vmatpush1.bf16.msra.mxu0 %v3147
        %3164 = vmatprep.subr.bf16.mxu0 0
        %3165 = vmatpush1.bf16.msra.mxu0 %v3146
        %3166 = vmatprep.subr.bf16.mxu0 0
        %3167 = vmatpush1.bf16.msra.mxu0 %v3145
        %3168 = vmatprep.subr.bf16.mxu0 0
        %3169 = vmatpush1.bf16.msra.mxu0 %v3144
        %3170 = vmatprep.subr.bf16.mxu0 0
        %3171 = vmatpush1.bf16.msra.mxu0 %v3143
        %3172 = vmatprep.subr.bf16.mxu0 0
        %3173 = vmatpush1.bf16.msra.mxu0 %v3142
        %3174 = vmatprep.subr.bf16.mxu0 0
        %3175 = vmatpush2.bf16.msra.mxu0 0
        %3176 = vmatprep.subr.bf16.mxu0 0
        %3177 = vmatpush2.bf16.msra.mxu0 0
        %3178 = vmatprep.subr.bf16.mxu0 0
        %3179 = vmatpush2.bf16.msra.mxu0 0
        %3180 = vmatprep.subr.bf16.mxu0 0
        %3181 = vmatpush2.bf16.msra.mxu0 0
        %3182 = vmatprep.subr.bf16.mxu0 0
        %3183 = vmatpush2.bf16.msra.mxu0 0
        %3184 = vmatprep.subr.bf16.mxu0 0
        %3185 = vmatpush2.bf16.msra.mxu0 0
        %3186 = vmatprep.subr.bf16.mxu0 0
        %3187 = vmatpush2.bf16.msra.mxu0 0
        %3188 = vmatprep.subr.bf16.mxu0 0
        %3189 = vmatpush2.bf16.msra.mxu0 0
        %3190 = vmatprep.mubr.bf16.mxu0 0
        %3191 = vmatmul.mubr.bf16.gmra.mxu0 %v2983
        %v3192 = vpop.f32.mrf.mxu0
        %v3193 = vadd.f32 %v3105, %v3192
        %v3194 = vpop.f32.mrf.mxu0
        %v3195 = vpop.f32.mrf.mxu0
        %v3196 = vpop.f32.mrf.mxu0
        %3197 = vdwg.mxu0
        %s3198 = scalar_lea.vmem %s8, 128
        %v3199 = vld [vmem:[%s3198] sm:$0xf]
        %v3200 = vld [vmem:[%s3198 + $0x4] sm:$0xf]
        %v3201 = vld [vmem:[%s3198 + $0x8] sm:$0xf]
        %v3202 = vld [vmem:[%s3198 + $0xc] sm:$0xf]
        %v3203 = vld [vmem:[%s3198 + $0x10] sm:$0xf]
        %v3204 = vld [vmem:[%s3198 + $0x14] sm:$0xf]
        %v3205 = vld [vmem:[%s3198 + $0x18] sm:$0xf]
        %v3206 = vld [vmem:[%s3198 + $0x1c] sm:$0xf]
        %v3207 = vld [vmem:[%s3198 + $0x20] sm:$0xf]
        %v3208 = vld [vmem:[%s3198 + $0x24] sm:$0xf]
        %v3209 = vld [vmem:[%s3198 + $0x28] sm:$0xf]
        %v3210 = vld [vmem:[%s3198 + $0x2c] sm:$0xf]
        %v3211 = vld [vmem:[%s3198 + $0x30] sm:$0xf]
        %v3212 = vld [vmem:[%s3198 + $0x34] sm:$0xf]
        %v3213 = vld [vmem:[%s3198 + $0x38] sm:$0xf]
        %v3214 = vld [vmem:[%s3198 + $0x3c] sm:$0xf]
        %v3215 = vrot.slane %v2983, 4
        %v3233 = vunpack.c.l.b16 %v3199
        %v3234 = vunpack.c.l.b16 %v3200
        %v3235 = vunpack.c.l.b16 %v3201
        %v3236 = vunpack.c.l.b16 %v3202
        %v3237 = vunpack.c.l.b16 %v3203
        %v3238 = vunpack.c.l.b16 %v3204
        %v3239 = vunpack.c.l.b16 %v3205
        %v3240 = vunpack.c.l.b16 %v3206
        %v3241 = vunpack.c.l.b16 %v3207
        %v3242 = vunpack.c.l.b16 %v3208
        %v3243 = vunpack.c.l.b16 %v3209
        %v3244 = vunpack.c.l.b16 %v3210
        %v3245 = vunpack.c.l.b16 %v3211
        %v3246 = vunpack.c.l.b16 %v3212
        %v3247 = vunpack.c.l.b16 %v3213
        %v3248 = vunpack.c.l.b16 %v3214
        %v3249 = vpack.c.b16 %v3234, %v3233
        %v3250 = vpack.c.b16 %v3236, %v3235
        %v3251 = vpack.c.b16 %v3238, %v3237
        %v3252 = vpack.c.b16 %v3240, %v3239
        %v3253 = vpack.c.b16 %v3242, %v3241
        %v3254 = vpack.c.b16 %v3244, %v3243
        %v3255 = vpack.c.b16 %v3246, %v3245
        %v3256 = vpack.c.b16 %v3248, %v3247
        %3265 = vmatprep.subr.bf16.mxu0 0
        %3266 = vmatpush1.bf16.msra.mxu0 %v3256
        %3267 = vmatprep.subr.bf16.mxu0 0
        %3268 = vmatpush1.bf16.msra.mxu0 %v3255
        %3269 = vmatprep.subr.bf16.mxu0 0
        %3270 = vmatpush1.bf16.msra.mxu0 %v3254
        %3271 = vmatprep.subr.bf16.mxu0 0
        %3272 = vmatpush1.bf16.msra.mxu0 %v3253
        %3273 = vmatprep.subr.bf16.mxu0 0
        %3274 = vmatpush1.bf16.msra.mxu0 %v3252
        %3275 = vmatprep.subr.bf16.mxu0 0
        %3276 = vmatpush1.bf16.msra.mxu0 %v3251
        %3277 = vmatprep.subr.bf16.mxu0 0
        %3278 = vmatpush1.bf16.msra.mxu0 %v3250
        %3279 = vmatprep.subr.bf16.mxu0 0
        %3280 = vmatpush1.bf16.msra.mxu0 %v3249
        %3281 = vmatprep.subr.bf16.mxu0 0
        %3282 = vmatpush2.bf16.msra.mxu0 0
        %3283 = vmatprep.subr.bf16.mxu0 0
        %3284 = vmatpush2.bf16.msra.mxu0 0
        %3285 = vmatprep.subr.bf16.mxu0 0
        %3286 = vmatpush2.bf16.msra.mxu0 0
        %3287 = vmatprep.subr.bf16.mxu0 0
        %3288 = vmatpush2.bf16.msra.mxu0 0
        %3289 = vmatprep.subr.bf16.mxu0 0
        %3290 = vmatpush2.bf16.msra.mxu0 0
        %3291 = vmatprep.subr.bf16.mxu0 0
        %3292 = vmatpush2.bf16.msra.mxu0 0
        %3293 = vmatprep.subr.bf16.mxu0 0
        %3294 = vmatpush2.bf16.msra.mxu0 0
        %3295 = vmatprep.subr.bf16.mxu0 0
        %3296 = vmatpush2.bf16.msra.mxu0 0
        %3297 = vmatprep.mubr.bf16.mxu0 0
        %3298 = vmatmul.mubr.bf16.gmra.mxu0 %v3215
        %v3299 = vpop.f32.mrf.mxu0
        %v3300 = vadd.f32 0.0, %v3299
        %v3301 = vpop.f32.mrf.mxu0
        %v3302 = vpop.f32.mrf.mxu0
        %v3303 = vpop.f32.mrf.mxu0
        %3304 = vdwg.mxu0
        %v3305 = vadd.f32 %v3193, %v3300
        %s3306 = scalar_lea.vmem %s8, 192
        %v3307 = vld [vmem:[%s3306] sm:$0xf]
        %v3308 = vld [vmem:[%s3306 + $0x4] sm:$0xf]
        %v3309 = vld [vmem:[%s3306 + $0x8] sm:$0xf]
        %v3310 = vld [vmem:[%s3306 + $0xc] sm:$0xf]
        %v3311 = vld [vmem:[%s3306 + $0x10] sm:$0xf]
        %v3312 = vld [vmem:[%s3306 + $0x14] sm:$0xf]
        %v3313 = vld [vmem:[%s3306 + $0x18] sm:$0xf]
        %v3314 = vld [vmem:[%s3306 + $0x1c] sm:$0xf]
        %v3315 = vld [vmem:[%s3306 + $0x20] sm:$0xf]
        %v3316 = vld [vmem:[%s3306 + $0x24] sm:$0xf]
        %v3317 = vld [vmem:[%s3306 + $0x28] sm:$0xf]
        %v3318 = vld [vmem:[%s3306 + $0x2c] sm:$0xf]
        %v3319 = vld [vmem:[%s3306 + $0x30] sm:$0xf]
        %v3320 = vld [vmem:[%s3306 + $0x34] sm:$0xf]
        %v3321 = vld [vmem:[%s3306 + $0x38] sm:$0xf]
        %v3322 = vld [vmem:[%s3306 + $0x3c] sm:$0xf]
        %v3323 = vrot.slane %v2983, 6
        %v3341 = vunpack.c.l.b16 %v3307
        %v3342 = vunpack.c.l.b16 %v3308
        %v3343 = vunpack.c.l.b16 %v3309
        %v3344 = vunpack.c.l.b16 %v3310
        %v3345 = vunpack.c.l.b16 %v3311
        %v3346 = vunpack.c.l.b16 %v3312
        %v3347 = vunpack.c.l.b16 %v3313
        %v3348 = vunpack.c.l.b16 %v3314
        %v3349 = vunpack.c.l.b16 %v3315
        %v3350 = vunpack.c.l.b16 %v3316
        %v3351 = vunpack.c.l.b16 %v3317
        %v3352 = vunpack.c.l.b16 %v3318
        %v3353 = vunpack.c.l.b16 %v3319
        %v3354 = vunpack.c.l.b16 %v3320
        %v3355 = vunpack.c.l.b16 %v3321
        %v3356 = vunpack.c.l.b16 %v3322
        %v3357 = vpack.c.b16 %v3342, %v3341
        %v3358 = vpack.c.b16 %v3344, %v3343
        %v3359 = vpack.c.b16 %v3346, %v3345
        %v3360 = vpack.c.b16 %v3348, %v3347
        %v3361 = vpack.c.b16 %v3350, %v3349
        %v3362 = vpack.c.b16 %v3352, %v3351
        %v3363 = vpack.c.b16 %v3354, %v3353
        %v3364 = vpack.c.b16 %v3356, %v3355
        %3373 = vmatprep.subr.bf16.mxu0 0
        %3374 = vmatpush1.bf16.msra.mxu0 %v3364
        %3375 = vmatprep.subr.bf16.mxu0 0
        %3376 = vmatpush1.bf16.msra.mxu0 %v3363
        %3377 = vmatprep.subr.bf16.mxu0 0
        %3378 = vmatpush1.bf16.msra.mxu0 %v3362
        %3379 = vmatprep.subr.bf16.mxu0 0
        %3380 = vmatpush1.bf16.msra.mxu0 %v3361
        %3381 = vmatprep.subr.bf16.mxu0 0
        %3382 = vmatpush1.bf16.msra.mxu0 %v3360
        %3383 = vmatprep.subr.bf16.mxu0 0
        %3384 = vmatpush1.bf16.msra.mxu0 %v3359
        %3385 = vmatprep.subr.bf16.mxu0 0
        %3386 = vmatpush1.bf16.msra.mxu0 %v3358
        %3387 = vmatprep.subr.bf16.mxu0 0
        %3388 = vmatpush1.bf16.msra.mxu0 %v3357
        %3389 = vmatprep.subr.bf16.mxu0 0
        %3390 = vmatpush2.bf16.msra.mxu0 0
        %3391 = vmatprep.subr.bf16.mxu0 0
        %3392 = vmatpush2.bf16.msra.mxu0 0
        %3393 = vmatprep.subr.bf16.mxu0 0
        %3394 = vmatpush2.bf16.msra.mxu0 0
        %3395 = vmatprep.subr.bf16.mxu0 0
        %3396 = vmatpush2.bf16.msra.mxu0 0
        %3397 = vmatprep.subr.bf16.mxu0 0
        %3398 = vmatpush2.bf16.msra.mxu0 0
        %3399 = vmatprep.subr.bf16.mxu0 0
        %3400 = vmatpush2.bf16.msra.mxu0 0
        %3401 = vmatprep.subr.bf16.mxu0 0
        %3402 = vmatpush2.bf16.msra.mxu0 0
        %3403 = vmatprep.subr.bf16.mxu0 0
        %3404 = vmatpush2.bf16.msra.mxu0 0
        %3405 = vmatprep.mubr.bf16.mxu0 0
        %3406 = vmatmul.mubr.bf16.gmra.mxu0 %v3323
        %v3407 = vpop.f32.mrf.mxu0
        %v3408 = vadd.f32 0.0, %v3407
        %v3409 = vpop.f32.mrf.mxu0
        %v3410 = vpop.f32.mrf.mxu0
        %v3411 = vpop.f32.mrf.mxu0
        %3412 = vdwg.mxu0
        %v3413 = vadd.f32 %v3305, %v3408
        %s3414 = scalar_lea.vmem %s8, 256
        %v3415 = vld [vmem:[%s3414] sm:$0xf]
        %v3416 = vld [vmem:[%s3414 + $0x4] sm:$0xf]
        %v3417 = vld [vmem:[%s3414 + $0x8] sm:$0xf]
        %v3418 = vld [vmem:[%s3414 + $0xc] sm:$0xf]
        %v3419 = vld [vmem:[%s3414 + $0x10] sm:$0xf]
        %v3420 = vld [vmem:[%s3414 + $0x14] sm:$0xf]
        %v3421 = vld [vmem:[%s3414 + $0x18] sm:$0xf]
        %v3422 = vld [vmem:[%s3414 + $0x1c] sm:$0xf]
        %v3423 = vld [vmem:[%s3414 + $0x20] sm:$0xf]
        %v3424 = vld [vmem:[%s3414 + $0x24] sm:$0xf]
        %v3425 = vld [vmem:[%s3414 + $0x28] sm:$0xf]
        %v3426 = vld [vmem:[%s3414 + $0x2c] sm:$0xf]
        %v3427 = vld [vmem:[%s3414 + $0x30] sm:$0xf]
        %v3428 = vld [vmem:[%s3414 + $0x34] sm:$0xf]
        %v3429 = vld [vmem:[%s3414 + $0x38] sm:$0xf]
        %v3430 = vld [vmem:[%s3414 + $0x3c] sm:$0xf]
        %v3447 = vunpack.c.l.b16 %v3415
        %v3448 = vunpack.c.l.b16 %v3416
        %v3449 = vunpack.c.l.b16 %v3417
        %v3450 = vunpack.c.l.b16 %v3418
        %v3451 = vunpack.c.l.b16 %v3419
        %v3452 = vunpack.c.l.b16 %v3420
        %v3453 = vunpack.c.l.b16 %v3421
        %v3454 = vunpack.c.l.b16 %v3422
        %v3455 = vunpack.c.l.b16 %v3423
        %v3456 = vunpack.c.l.b16 %v3424
        %v3457 = vunpack.c.l.b16 %v3425
        %v3458 = vunpack.c.l.b16 %v3426
        %v3459 = vunpack.c.l.b16 %v3427
        %v3460 = vunpack.c.l.b16 %v3428
        %v3461 = vunpack.c.l.b16 %v3429
        %v3462 = vunpack.c.l.b16 %v3430
        %v3463 = vpack.c.b16 %v3448, %v3447
        %v3464 = vpack.c.b16 %v3450, %v3449
        %v3465 = vpack.c.b16 %v3452, %v3451
        %v3466 = vpack.c.b16 %v3454, %v3453
        %v3467 = vpack.c.b16 %v3456, %v3455
        %v3468 = vpack.c.b16 %v3458, %v3457
        %v3469 = vpack.c.b16 %v3460, %v3459
        %v3470 = vpack.c.b16 %v3462, %v3461
        %3479 = vmatprep.subr.bf16.mxu0 0
        %3480 = vmatpush1.bf16.msra.mxu0 %v3470
        %3481 = vmatprep.subr.bf16.mxu0 0
        %3482 = vmatpush1.bf16.msra.mxu0 %v3469
        %3483 = vmatprep.subr.bf16.mxu0 0
        %3484 = vmatpush1.bf16.msra.mxu0 %v3468
        %3485 = vmatprep.subr.bf16.mxu0 0
        %3486 = vmatpush1.bf16.msra.mxu0 %v3467
        %3487 = vmatprep.subr.bf16.mxu0 0
        %3488 = vmatpush1.bf16.msra.mxu0 %v3466
        %3489 = vmatprep.subr.bf16.mxu0 0
        %3490 = vmatpush1.bf16.msra.mxu0 %v3465
        %3491 = vmatprep.subr.bf16.mxu0 0
        %3492 = vmatpush1.bf16.msra.mxu0 %v3464
        %3493 = vmatprep.subr.bf16.mxu0 0
        %3494 = vmatpush1.bf16.msra.mxu0 %v3463
        %3495 = vmatprep.subr.bf16.mxu0 0
        %3496 = vmatpush2.bf16.msra.mxu0 0
        %3497 = vmatprep.subr.bf16.mxu0 0
        %3498 = vmatpush2.bf16.msra.mxu0 0
        %3499 = vmatprep.subr.bf16.mxu0 0
        %3500 = vmatpush2.bf16.msra.mxu0 0
        %3501 = vmatprep.subr.bf16.mxu0 0
        %3502 = vmatpush2.bf16.msra.mxu0 0
        %3503 = vmatprep.subr.bf16.mxu0 0
        %3504 = vmatpush2.bf16.msra.mxu0 0
        %3505 = vmatprep.subr.bf16.mxu0 0
        %3506 = vmatpush2.bf16.msra.mxu0 0
        %3507 = vmatprep.subr.bf16.mxu0 0
        %3508 = vmatpush2.bf16.msra.mxu0 0
        %3509 = vmatprep.subr.bf16.mxu0 0
        %3510 = vmatpush2.bf16.msra.mxu0 0
        %3511 = vmatprep.mubr.bf16.mxu0 0
        %3512 = vmatmul.mubr.bf16.gmra.mxu0 %v2984
        %v3513 = vpop.f32.mrf.mxu0
        %v3514 = vadd.f32 0.0, %v3513
        %v3515 = vpop.f32.mrf.mxu0
        %v3516 = vpop.f32.mrf.mxu0
        %v3517 = vpop.f32.mrf.mxu0
        %3518 = vdwg.mxu0
        %v3519 = vadd.f32 %v3413, %v3514
        %s3520 = scalar_lea.vmem %s8, 320
        %v3521 = vld [vmem:[%s3520] sm:$0xf]
        %v3522 = vld [vmem:[%s3520 + $0x4] sm:$0xf]
        %v3523 = vld [vmem:[%s3520 + $0x8] sm:$0xf]
        %v3524 = vld [vmem:[%s3520 + $0xc] sm:$0xf]
        %v3525 = vld [vmem:[%s3520 + $0x10] sm:$0xf]
        %v3526 = vld [vmem:[%s3520 + $0x14] sm:$0xf]
        %v3527 = vld [vmem:[%s3520 + $0x18] sm:$0xf]
        %v3528 = vld [vmem:[%s3520 + $0x1c] sm:$0xf]
        %v3529 = vld [vmem:[%s3520 + $0x20] sm:$0xf]
        %v3530 = vld [vmem:[%s3520 + $0x24] sm:$0xf]
        %v3531 = vld [vmem:[%s3520 + $0x28] sm:$0xf]
        %v3532 = vld [vmem:[%s3520 + $0x2c] sm:$0xf]
        %v3533 = vld [vmem:[%s3520 + $0x30] sm:$0xf]
        %v3534 = vld [vmem:[%s3520 + $0x34] sm:$0xf]
        %v3535 = vld [vmem:[%s3520 + $0x38] sm:$0xf]
        %v3536 = vld [vmem:[%s3520 + $0x3c] sm:$0xf]
        %v3538 = vrot.slane %v2984, 2
        %v3556 = vunpack.c.l.b16 %v3521
        %v3557 = vunpack.c.l.b16 %v3522
        %v3558 = vunpack.c.l.b16 %v3523
        %v3559 = vunpack.c.l.b16 %v3524
        %v3560 = vunpack.c.l.b16 %v3525
        %v3561 = vunpack.c.l.b16 %v3526
        %v3562 = vunpack.c.l.b16 %v3527
        %v3563 = vunpack.c.l.b16 %v3528
        %v3564 = vunpack.c.l.b16 %v3529
        %v3565 = vunpack.c.l.b16 %v3530
        %v3566 = vunpack.c.l.b16 %v3531
        %v3567 = vunpack.c.l.b16 %v3532
        %v3568 = vunpack.c.l.b16 %v3533
        %v3569 = vunpack.c.l.b16 %v3534
        %v3570 = vunpack.c.l.b16 %v3535
        %v3571 = vunpack.c.l.b16 %v3536
        %v3572 = vpack.c.b16 %v3557, %v3556
        %v3573 = vpack.c.b16 %v3559, %v3558
        %v3574 = vpack.c.b16 %v3561, %v3560
        %v3575 = vpack.c.b16 %v3563, %v3562
        %v3576 = vpack.c.b16 %v3565, %v3564
        %v3577 = vpack.c.b16 %v3567, %v3566
        %v3578 = vpack.c.b16 %v3569, %v3568
        %v3579 = vpack.c.b16 %v3571, %v3570
        %3588 = vmatprep.subr.bf16.mxu0 0
        %3589 = vmatpush1.bf16.msra.mxu0 %v3579
        %3590 = vmatprep.subr.bf16.mxu0 0
        %3591 = vmatpush1.bf16.msra.mxu0 %v3578
        %3592 = vmatprep.subr.bf16.mxu0 0
        %3593 = vmatpush1.bf16.msra.mxu0 %v3577
        %3594 = vmatprep.subr.bf16.mxu0 0
        %3595 = vmatpush1.bf16.msra.mxu0 %v3576
        %3596 = vmatprep.subr.bf16.mxu0 0
        %3597 = vmatpush1.bf16.msra.mxu0 %v3575
        %3598 = vmatprep.subr.bf16.mxu0 0
        %3599 = vmatpush1.bf16.msra.mxu0 %v3574
        %3600 = vmatprep.subr.bf16.mxu0 0
        %3601 = vmatpush1.bf16.msra.mxu0 %v3573
        %3602 = vmatprep.subr.bf16.mxu0 0
        %3603 = vmatpush1.bf16.msra.mxu0 %v3572
        %3604 = vmatprep.subr.bf16.mxu0 0
        %3605 = vmatpush2.bf16.msra.mxu0 0
        %3606 = vmatprep.subr.bf16.mxu0 0
        %3607 = vmatpush2.bf16.msra.mxu0 0
        %3608 = vmatprep.subr.bf16.mxu0 0
        %3609 = vmatpush2.bf16.msra.mxu0 0
        %3610 = vmatprep.subr.bf16.mxu0 0
        %3611 = vmatpush2.bf16.msra.mxu0 0
        %3612 = vmatprep.subr.bf16.mxu0 0
        %3613 = vmatpush2.bf16.msra.mxu0 0
        %3614 = vmatprep.subr.bf16.mxu0 0
        %3615 = vmatpush2.bf16.msra.mxu0 0
        %3616 = vmatprep.subr.bf16.mxu0 0
        %3617 = vmatpush2.bf16.msra.mxu0 0
        %3618 = vmatprep.subr.bf16.mxu0 0
        %3619 = vmatpush2.bf16.msra.mxu0 0
        %3620 = vmatprep.mubr.bf16.mxu0 0
        %3621 = vmatmul.mubr.bf16.gmra.mxu0 %v3538
        %v3622 = vpop.f32.mrf.mxu0
        %v3623 = vadd.f32 0.0, %v3622
        %v3624 = vpop.f32.mrf.mxu0
        %v3625 = vpop.f32.mrf.mxu0
        %v3626 = vpop.f32.mrf.mxu0
        %3627 = vdwg.mxu0
        %v3628 = vadd.f32 %v3519, %v3623
        %s3629 = scalar_lea.vmem %s8, 384
        %v3630 = vld [vmem:[%s3629] sm:$0xf]
        %v3631 = vld [vmem:[%s3629 + $0x4] sm:$0xf]
        %v3632 = vld [vmem:[%s3629 + $0x8] sm:$0xf]
        %v3633 = vld [vmem:[%s3629 + $0xc] sm:$0xf]
        %v3634 = vld [vmem:[%s3629 + $0x10] sm:$0xf]
        %v3635 = vld [vmem:[%s3629 + $0x14] sm:$0xf]
        %v3636 = vld [vmem:[%s3629 + $0x18] sm:$0xf]
        %v3637 = vld [vmem:[%s3629 + $0x1c] sm:$0xf]
        %v3638 = vld [vmem:[%s3629 + $0x20] sm:$0xf]
        %v3639 = vld [vmem:[%s3629 + $0x24] sm:$0xf]
        %v3640 = vld [vmem:[%s3629 + $0x28] sm:$0xf]
        %v3641 = vld [vmem:[%s3629 + $0x2c] sm:$0xf]
        %v3642 = vld [vmem:[%s3629 + $0x30] sm:$0xf]
        %v3643 = vld [vmem:[%s3629 + $0x34] sm:$0xf]
        %v3644 = vld [vmem:[%s3629 + $0x38] sm:$0xf]
        %v3645 = vld [vmem:[%s3629 + $0x3c] sm:$0xf]
        %v3646 = vrot.slane %v2984, 4
        %v3664 = vunpack.c.l.b16 %v3630
        %v3665 = vunpack.c.l.b16 %v3631
        %v3666 = vunpack.c.l.b16 %v3632
        %v3667 = vunpack.c.l.b16 %v3633
        %v3668 = vunpack.c.l.b16 %v3634
        %v3669 = vunpack.c.l.b16 %v3635
        %v3670 = vunpack.c.l.b16 %v3636
        %v3671 = vunpack.c.l.b16 %v3637
        %v3672 = vunpack.c.l.b16 %v3638
        %v3673 = vunpack.c.l.b16 %v3639
        %v3674 = vunpack.c.l.b16 %v3640
        %v3675 = vunpack.c.l.b16 %v3641
        %v3676 = vunpack.c.l.b16 %v3642
        %v3677 = vunpack.c.l.b16 %v3643
        %v3678 = vunpack.c.l.b16 %v3644
        %v3679 = vunpack.c.l.b16 %v3645
        %v3680 = vpack.c.b16 %v3665, %v3664
        %v3681 = vpack.c.b16 %v3667, %v3666
        %v3682 = vpack.c.b16 %v3669, %v3668
        %v3683 = vpack.c.b16 %v3671, %v3670
        %v3684 = vpack.c.b16 %v3673, %v3672
        %v3685 = vpack.c.b16 %v3675, %v3674
        %v3686 = vpack.c.b16 %v3677, %v3676
        %v3687 = vpack.c.b16 %v3679, %v3678
        %3696 = vmatprep.subr.bf16.mxu0 0
        %3697 = vmatpush1.bf16.msra.mxu0 %v3687
        %3698 = vmatprep.subr.bf16.mxu0 0
        %3699 = vmatpush1.bf16.msra.mxu0 %v3686
        %3700 = vmatprep.subr.bf16.mxu0 0
        %3701 = vmatpush1.bf16.msra.mxu0 %v3685
        %3702 = vmatprep.subr.bf16.mxu0 0
        %3703 = vmatpush1.bf16.msra.mxu0 %v3684
        %3704 = vmatprep.subr.bf16.mxu0 0
        %3705 = vmatpush1.bf16.msra.mxu0 %v3683
        %3706 = vmatprep.subr.bf16.mxu0 0
        %3707 = vmatpush1.bf16.msra.mxu0 %v3682
        %3708 = vmatprep.subr.bf16.mxu0 0
        %3709 = vmatpush1.bf16.msra.mxu0 %v3681
        %3710 = vmatprep.subr.bf16.mxu0 0
        %3711 = vmatpush1.bf16.msra.mxu0 %v3680
        %3712 = vmatprep.subr.bf16.mxu0 0
        %3713 = vmatpush2.bf16.msra.mxu0 0
        %3714 = vmatprep.subr.bf16.mxu0 0
        %3715 = vmatpush2.bf16.msra.mxu0 0
        %3716 = vmatprep.subr.bf16.mxu0 0
        %3717 = vmatpush2.bf16.msra.mxu0 0
        %3718 = vmatprep.subr.bf16.mxu0 0
        %3719 = vmatpush2.bf16.msra.mxu0 0
        %3720 = vmatprep.subr.bf16.mxu0 0
        %3721 = vmatpush2.bf16.msra.mxu0 0
        %3722 = vmatprep.subr.bf16.mxu0 0
        %3723 = vmatpush2.bf16.msra.mxu0 0
        %3724 = vmatprep.subr.bf16.mxu0 0
        %3725 = vmatpush2.bf16.msra.mxu0 0
        %3726 = vmatprep.subr.bf16.mxu0 0
        %3727 = vmatpush2.bf16.msra.mxu0 0
        %3728 = vmatprep.mubr.bf16.mxu0 0
        %3729 = vmatmul.mubr.bf16.gmra.mxu0 %v3646
        %v3730 = vpop.f32.mrf.mxu0
        %v3731 = vadd.f32 0.0, %v3730
        %v3732 = vpop.f32.mrf.mxu0
        %v3733 = vpop.f32.mrf.mxu0
        %v3734 = vpop.f32.mrf.mxu0
        %3735 = vdwg.mxu0
        %v3736 = vadd.f32 %v3628, %v3731
        %s3737 = scalar_lea.vmem %s8, 448
        %v3738 = vld [vmem:[%s3737] sm:$0xf]
        %v3739 = vld [vmem:[%s3737 + $0x4] sm:$0xf]
        %v3740 = vld [vmem:[%s3737 + $0x8] sm:$0xf]
        %v3741 = vld [vmem:[%s3737 + $0xc] sm:$0xf]
        %v3742 = vld [vmem:[%s3737 + $0x10] sm:$0xf]
        %v3743 = vld [vmem:[%s3737 + $0x14] sm:$0xf]
        %v3744 = vld [vmem:[%s3737 + $0x18] sm:$0xf]
        %v3745 = vld [vmem:[%s3737 + $0x1c] sm:$0xf]
        %v3746 = vld [vmem:[%s3737 + $0x20] sm:$0xf]
        %v3747 = vld [vmem:[%s3737 + $0x24] sm:$0xf]
        %v3748 = vld [vmem:[%s3737 + $0x28] sm:$0xf]
        %v3749 = vld [vmem:[%s3737 + $0x2c] sm:$0xf]
        %v3750 = vld [vmem:[%s3737 + $0x30] sm:$0xf]
        %v3751 = vld [vmem:[%s3737 + $0x34] sm:$0xf]
        %v3752 = vld [vmem:[%s3737 + $0x38] sm:$0xf]
        %v3753 = vld [vmem:[%s3737 + $0x3c] sm:$0xf]
        %v3754 = vrot.slane %v2984, 6
        %v3772 = vunpack.c.l.b16 %v3738
        %v3773 = vunpack.c.l.b16 %v3739
        %v3774 = vunpack.c.l.b16 %v3740
        %v3775 = vunpack.c.l.b16 %v3741
        %v3776 = vunpack.c.l.b16 %v3742
        %v3777 = vunpack.c.l.b16 %v3743
        %v3778 = vunpack.c.l.b16 %v3744
        %v3779 = vunpack.c.l.b16 %v3745
        %v3780 = vunpack.c.l.b16 %v3746
        %v3781 = vunpack.c.l.b16 %v3747
        %v3782 = vunpack.c.l.b16 %v3748
        %v3783 = vunpack.c.l.b16 %v3749
        %v3784 = vunpack.c.l.b16 %v3750
        %v3785 = vunpack.c.l.b16 %v3751
        %v3786 = vunpack.c.l.b16 %v3752
        %v3787 = vunpack.c.l.b16 %v3753
        %v3788 = vpack.c.b16 %v3773, %v3772
        %v3789 = vpack.c.b16 %v3775, %v3774
        %v3790 = vpack.c.b16 %v3777, %v3776
        %v3791 = vpack.c.b16 %v3779, %v3778
        %v3792 = vpack.c.b16 %v3781, %v3780
        %v3793 = vpack.c.b16 %v3783, %v3782
        %v3794 = vpack.c.b16 %v3785, %v3784
        %v3795 = vpack.c.b16 %v3787, %v3786
        %3804 = vmatprep.subr.bf16.mxu0 0
        %3805 = vmatpush1.bf16.msra.mxu0 %v3795
        %3806 = vmatprep.subr.bf16.mxu0 0
        %3807 = vmatpush1.bf16.msra.mxu0 %v3794
        %3808 = vmatprep.subr.bf16.mxu0 0
        %3809 = vmatpush1.bf16.msra.mxu0 %v3793
        %3810 = vmatprep.subr.bf16.mxu0 0
        %3811 = vmatpush1.bf16.msra.mxu0 %v3792
        %3812 = vmatprep.subr.bf16.mxu0 0
        %3813 = vmatpush1.bf16.msra.mxu0 %v3791
        %3814 = vmatprep.subr.bf16.mxu0 0
        %3815 = vmatpush1.bf16.msra.mxu0 %v3790
        %3816 = vmatprep.subr.bf16.mxu0 0
        %3817 = vmatpush1.bf16.msra.mxu0 %v3789
        %3818 = vmatprep.subr.bf16.mxu0 0
        %3819 = vmatpush1.bf16.msra.mxu0 %v3788
        %3820 = vmatprep.subr.bf16.mxu0 0
        %3821 = vmatpush2.bf16.msra.mxu0 0
        %3822 = vmatprep.subr.bf16.mxu0 0
        %3823 = vmatpush2.bf16.msra.mxu0 0
        %3824 = vmatprep.subr.bf16.mxu0 0
        %3825 = vmatpush2.bf16.msra.mxu0 0
        %3826 = vmatprep.subr.bf16.mxu0 0
        %3827 = vmatpush2.bf16.msra.mxu0 0
        %3828 = vmatprep.subr.bf16.mxu0 0
        %3829 = vmatpush2.bf16.msra.mxu0 0
        %3830 = vmatprep.subr.bf16.mxu0 0
        %3831 = vmatpush2.bf16.msra.mxu0 0
        %3832 = vmatprep.subr.bf16.mxu0 0
        %3833 = vmatpush2.bf16.msra.mxu0 0
        %3834 = vmatprep.subr.bf16.mxu0 0
        %3835 = vmatpush2.bf16.msra.mxu0 0
        %3836 = vmatprep.mubr.bf16.mxu0 0
        %3837 = vmatmul.mubr.bf16.gmra.mxu0 %v3754
        %v3838 = vpop.f32.mrf.mxu0
        %v3839 = vadd.f32 0.0, %v3838
        %v3840 = vpop.f32.mrf.mxu0
        %v3841 = vpop.f32.mrf.mxu0
        %v3842 = vpop.f32.mrf.mxu0
        %3843 = vdwg.mxu0
        %v3844 = vadd.f32 %v3736, %v3839
        %s3845 = scalar_lea.vmem %s8, 512
        %v3846 = vld [vmem:[%s3845] sm:$0xf]
        %v3847 = vld [vmem:[%s3845 + $0x4] sm:$0xf]
        %v3848 = vld [vmem:[%s3845 + $0x8] sm:$0xf]
        %v3849 = vld [vmem:[%s3845 + $0xc] sm:$0xf]
        %v3850 = vld [vmem:[%s3845 + $0x10] sm:$0xf]
        %v3851 = vld [vmem:[%s3845 + $0x14] sm:$0xf]
        %v3852 = vld [vmem:[%s3845 + $0x18] sm:$0xf]
        %v3853 = vld [vmem:[%s3845 + $0x1c] sm:$0xf]
        %v3854 = vld [vmem:[%s3845 + $0x20] sm:$0xf]
        %v3855 = vld [vmem:[%s3845 + $0x24] sm:$0xf]
        %v3856 = vld [vmem:[%s3845 + $0x28] sm:$0xf]
        %v3857 = vld [vmem:[%s3845 + $0x2c] sm:$0xf]
        %v3858 = vld [vmem:[%s3845 + $0x30] sm:$0xf]
        %v3859 = vld [vmem:[%s3845 + $0x34] sm:$0xf]
        %v3860 = vld [vmem:[%s3845 + $0x38] sm:$0xf]
        %v3861 = vld [vmem:[%s3845 + $0x3c] sm:$0xf]
        %v3878 = vunpack.c.l.b16 %v3846
        %v3879 = vunpack.c.l.b16 %v3847
        %v3880 = vunpack.c.l.b16 %v3848
        %v3881 = vunpack.c.l.b16 %v3849
        %v3882 = vunpack.c.l.b16 %v3850
        %v3883 = vunpack.c.l.b16 %v3851
        %v3884 = vunpack.c.l.b16 %v3852
        %v3885 = vunpack.c.l.b16 %v3853
        %v3886 = vunpack.c.l.b16 %v3854
        %v3887 = vunpack.c.l.b16 %v3855
        %v3888 = vunpack.c.l.b16 %v3856
        %v3889 = vunpack.c.l.b16 %v3857
        %v3890 = vunpack.c.l.b16 %v3858
        %v3891 = vunpack.c.l.b16 %v3859
        %v3892 = vunpack.c.l.b16 %v3860
        %v3893 = vunpack.c.l.b16 %v3861
        %v3894 = vpack.c.b16 %v3879, %v3878
        %v3895 = vpack.c.b16 %v3881, %v3880
        %v3896 = vpack.c.b16 %v3883, %v3882
        %v3897 = vpack.c.b16 %v3885, %v3884
        %v3898 = vpack.c.b16 %v3887, %v3886
        %v3899 = vpack.c.b16 %v3889, %v3888
        %v3900 = vpack.c.b16 %v3891, %v3890
        %v3901 = vpack.c.b16 %v3893, %v3892
        %3910 = vmatprep.subr.bf16.mxu0 0
        %3911 = vmatpush1.bf16.msra.mxu0 %v3901
        %3912 = vmatprep.subr.bf16.mxu0 0
        %3913 = vmatpush1.bf16.msra.mxu0 %v3900
        %3914 = vmatprep.subr.bf16.mxu0 0
        %3915 = vmatpush1.bf16.msra.mxu0 %v3899
        %3916 = vmatprep.subr.bf16.mxu0 0
        %3917 = vmatpush1.bf16.msra.mxu0 %v3898
        %3918 = vmatprep.subr.bf16.mxu0 0
        %3919 = vmatpush1.bf16.msra.mxu0 %v3897
        %3920 = vmatprep.subr.bf16.mxu0 0
        %3921 = vmatpush1.bf16.msra.mxu0 %v3896
        %3922 = vmatprep.subr.bf16.mxu0 0
        %3923 = vmatpush1.bf16.msra.mxu0 %v3895
        %3924 = vmatprep.subr.bf16.mxu0 0
        %3925 = vmatpush1.bf16.msra.mxu0 %v3894
        %3926 = vmatprep.subr.bf16.mxu0 0
        %3927 = vmatpush2.bf16.msra.mxu0 0
        %3928 = vmatprep.subr.bf16.mxu0 0
        %3929 = vmatpush2.bf16.msra.mxu0 0
        %3930 = vmatprep.subr.bf16.mxu0 0
        %3931 = vmatpush2.bf16.msra.mxu0 0
        %3932 = vmatprep.subr.bf16.mxu0 0
        %3933 = vmatpush2.bf16.msra.mxu0 0
        %3934 = vmatprep.subr.bf16.mxu0 0
        %3935 = vmatpush2.bf16.msra.mxu0 0
        %3936 = vmatprep.subr.bf16.mxu0 0
        %3937 = vmatpush2.bf16.msra.mxu0 0
        %3938 = vmatprep.subr.bf16.mxu0 0
        %3939 = vmatpush2.bf16.msra.mxu0 0
        %3940 = vmatprep.subr.bf16.mxu0 0
        %3941 = vmatpush2.bf16.msra.mxu0 0
        %3942 = vmatprep.mubr.bf16.mxu0 0
        %3943 = vmatmul.mubr.bf16.gmra.mxu0 %v2985
        %v3944 = vpop.f32.mrf.mxu0
        %v3945 = vadd.f32 0.0, %v3944
        %v3946 = vpop.f32.mrf.mxu0
        %v3947 = vpop.f32.mrf.mxu0
        %v3948 = vpop.f32.mrf.mxu0
        %3949 = vdwg.mxu0
        %v3950 = vadd.f32 %v3844, %v3945
        %v3951 = vld [vmem:[%s9] sm:$0x1]
        %v3953 = vlaneseq
        %v3954 = vshrl.u32 %v3953, 7
        %v3955 = vsub.s32 0, %v3954
        %v3956 = vrot.slane %v3951, %v3955
        %v3958 = vadd.f32 %v3950, %v3956
        %v3959 = vmax.f32 %v3958, 0.0
        %v3960 = vpack.c.bf16 %v3959, %v3959
        %v3961 = vld [vmem:[%s505] sm:$0x1]
        %v3962 = vld [vmem:[%s10] sm:$0xf]
        %v3963 = vld [vmem:[%s10 + $0x4] sm:$0xf]
        %v3964 = vld [vmem:[%s10 + $0x8] sm:$0xf]
        %v3965 = vld [vmem:[%s10 + $0xc] sm:$0xf]
        %v3966 = vld [vmem:[%s10 + $0x10] sm:$0xf]
        %v3967 = vld [vmem:[%s10 + $0x14] sm:$0xf]
        %v3968 = vld [vmem:[%s10 + $0x18] sm:$0xf]
        %v3969 = vld [vmem:[%s10 + $0x1c] sm:$0xf]
        %v3970 = vld [vmem:[%s10 + $0x20] sm:$0xf]
        %v3971 = vld [vmem:[%s10 + $0x24] sm:$0xf]
        %v3972 = vld [vmem:[%s10 + $0x28] sm:$0xf]
        %v3973 = vld [vmem:[%s10 + $0x2c] sm:$0xf]
        %v3974 = vld [vmem:[%s10 + $0x30] sm:$0xf]
        %v3975 = vld [vmem:[%s10 + $0x34] sm:$0xf]
        %v3976 = vld [vmem:[%s10 + $0x38] sm:$0xf]
        %v3977 = vld [vmem:[%s10 + $0x3c] sm:$0xf]
        %v3978 = vld [vmem:[%s11] sm:$0x1]
        %v3995 = vunpack.c.l.b16 %v3962
        %v3996 = vunpack.c.l.b16 %v3963
        %v3997 = vunpack.c.l.b16 %v3964
        %v3998 = vunpack.c.l.b16 %v3965
        %v3999 = vunpack.c.l.b16 %v3966
        %v4000 = vunpack.c.l.b16 %v3967
        %v4001 = vunpack.c.l.b16 %v3968
        %v4002 = vunpack.c.l.b16 %v3969
        %v4003 = vunpack.c.l.b16 %v3970
        %v4004 = vunpack.c.l.b16 %v3971
        %v4005 = vunpack.c.l.b16 %v3972
        %v4006 = vunpack.c.l.b16 %v3973
        %v4007 = vunpack.c.l.b16 %v3974
        %v4008 = vunpack.c.l.b16 %v3975
        %v4009 = vunpack.c.l.b16 %v3976
        %v4010 = vunpack.c.l.b16 %v3977
        %v4011 = vpack.c.b16 %v3996, %v3995
        %v4012 = vpack.c.b16 %v3998, %v3997
        %v4013 = vpack.c.b16 %v4000, %v3999
        %v4014 = vpack.c.b16 %v4002, %v4001
        %v4015 = vpack.c.b16 %v4004, %v4003
        %v4016 = vpack.c.b16 %v4006, %v4005
        %v4017 = vpack.c.b16 %v4008, %v4007
        %v4018 = vpack.c.b16 %v4010, %v4009
        %4027 = vmatprep.subr.bf16.mxu0 0
        %4028 = vmatpush1.bf16.msra.mxu0 %v4018
        %4029 = vmatprep.subr.bf16.mxu0 0
        %4030 = vmatpush1.bf16.msra.mxu0 %v4017
        %4031 = vmatprep.subr.bf16.mxu0 0
        %4032 = vmatpush1.bf16.msra.mxu0 %v4016
        %4033 = vmatprep.subr.bf16.mxu0 0
        %4034 = vmatpush1.bf16.msra.mxu0 %v4015
        %4035 = vmatprep.subr.bf16.mxu0 0
        %4036 = vmatpush1.bf16.msra.mxu0 %v4014
        %4037 = vmatprep.subr.bf16.mxu0 0
        %4038 = vmatpush1.bf16.msra.mxu0 %v4013
        %4039 = vmatprep.subr.bf16.mxu0 0
        %4040 = vmatpush1.bf16.msra.mxu0 %v4012
        %4041 = vmatprep.subr.bf16.mxu0 0
        %4042 = vmatpush1.bf16.msra.mxu0 %v4011
        %4043 = vmatprep.subr.bf16.mxu0 0
        %4044 = vmatpush2.bf16.msra.mxu0 0
        %4045 = vmatprep.subr.bf16.mxu0 0
        %4046 = vmatpush2.bf16.msra.mxu0 0
        %4047 = vmatprep.subr.bf16.mxu0 0
        %4048 = vmatpush2.bf16.msra.mxu0 0
        %4049 = vmatprep.subr.bf16.mxu0 0
        %4050 = vmatpush2.bf16.msra.mxu0 0
        %4051 = vmatprep.subr.bf16.mxu0 0
        %4052 = vmatpush2.bf16.msra.mxu0 0
        %4053 = vmatprep.subr.bf16.mxu0 0
        %4054 = vmatpush2.bf16.msra.mxu0 0
        %4055 = vmatprep.subr.bf16.mxu0 0
        %4056 = vmatpush2.bf16.msra.mxu0 0
        %4057 = vmatprep.subr.bf16.mxu0 0
        %4058 = vmatpush2.bf16.msra.mxu0 0
        %4059 = vmatprep.mubr.bf16.mxu0 0
        %4060 = vmatmul.mubr.bf16.gmra.mxu0 %v3961
        %v4061 = vpop.f32.mrf.mxu0
        %v4062 = vadd.f32 %v3978, %v4061
        %v4063 = vpop.f32.mrf.mxu0
        %v4064 = vpop.f32.mrf.mxu0
        %v4065 = vpop.f32.mrf.mxu0
        %4066 = vdwg.mxu0
        %v4067 = vmax.f32 %v4062, 0.0
        %v4068 = vpack.c.bf16 %v4067, %v4067
        %v4069 = vld [vmem:[%s13] sm:$0xf]
        %v4070 = vld [vmem:[%s13 + $0x4] sm:$0xf]
        %v4071 = vld [vmem:[%s13 + $0x8] sm:$0xf]
        %v4072 = vld [vmem:[%s13 + $0xc] sm:$0xf]
        %v4073 = vld [vmem:[%s13 + $0x10] sm:$0xf]
        %v4074 = vld [vmem:[%s13 + $0x14] sm:$0xf]
        %v4075 = vld [vmem:[%s13 + $0x18] sm:$0xf]
        %v4076 = vld [vmem:[%s13 + $0x1c] sm:$0xf]
        %v4077 = vld [vmem:[%s13 + $0x20] sm:$0xf]
        %v4078 = vld [vmem:[%s13 + $0x24] sm:$0xf]
        %v4079 = vld [vmem:[%s13 + $0x28] sm:$0xf]
        %v4080 = vld [vmem:[%s13 + $0x2c] sm:$0xf]
        %v4081 = vld [vmem:[%s13 + $0x30] sm:$0xf]
        %v4082 = vld [vmem:[%s13 + $0x34] sm:$0xf]
        %v4083 = vld [vmem:[%s13 + $0x38] sm:$0xf]
        %v4084 = vld [vmem:[%s13 + $0x3c] sm:$0xf]
        %v4085 = vld [vmem:[%s12] sm:$0xf]
        %v4086 = vld [vmem:[%s12 + $0x4] sm:$0xf]
        %v4087 = vld [vmem:[%s12 + $0x8] sm:$0xf]
        %v4088 = vld [vmem:[%s12 + $0xc] sm:$0xf]
        %v4089 = vld [vmem:[%s12 + $0x10] sm:$0xf]
        %v4090 = vld [vmem:[%s12 + $0x14] sm:$0xf]
        %v4091 = vld [vmem:[%s12 + $0x18] sm:$0xf]
        %v4092 = vld [vmem:[%s12 + $0x1c] sm:$0xf]
        %v4093 = vld [vmem:[%s12 + $0x20] sm:$0xf]
        %v4094 = vld [vmem:[%s12 + $0x24] sm:$0xf]
        %v4095 = vld [vmem:[%s12 + $0x28] sm:$0xf]
        %v4096 = vld [vmem:[%s12 + $0x2c] sm:$0xf]
        %v4097 = vld [vmem:[%s12 + $0x30] sm:$0xf]
        %v4098 = vld [vmem:[%s12 + $0x34] sm:$0xf]
        %v4099 = vld [vmem:[%s12 + $0x38] sm:$0xf]
        %v4100 = vld [vmem:[%s12 + $0x3c] sm:$0xf]
        %v4117 = vunpack.c.l.b16 %v4085
        %v4118 = vunpack.c.l.b16 %v4086
        %v4119 = vunpack.c.l.b16 %v4087
        %v4120 = vunpack.c.l.b16 %v4088
        %v4121 = vunpack.c.l.b16 %v4089
        %v4122 = vunpack.c.l.b16 %v4090
        %v4123 = vunpack.c.l.b16 %v4091
        %v4124 = vunpack.c.l.b16 %v4092
        %v4125 = vunpack.c.l.b16 %v4093
        %v4126 = vunpack.c.l.b16 %v4094
        %v4127 = vunpack.c.l.b16 %v4095
        %v4128 = vunpack.c.l.b16 %v4096
        %v4129 = vunpack.c.l.b16 %v4097
        %v4130 = vunpack.c.l.b16 %v4098
        %v4131 = vunpack.c.l.b16 %v4099
        %v4132 = vunpack.c.l.b16 %v4100
        %v4133 = vpack.c.b16 %v4118, %v4117
        %v4134 = vpack.c.b16 %v4120, %v4119
        %v4135 = vpack.c.b16 %v4122, %v4121
        %v4136 = vpack.c.b16 %v4124, %v4123
        %v4137 = vpack.c.b16 %v4126, %v4125
        %v4138 = vpack.c.b16 %v4128, %v4127
        %v4139 = vpack.c.b16 %v4130, %v4129
        %v4140 = vpack.c.b16 %v4132, %v4131
        %4149 = vmatprep.subr.bf16.mxu0 0
        %4150 = vmatpush1.bf16.msra.mxu0 %v4140
        %4151 = vmatprep.subr.bf16.mxu0 0
        %4152 = vmatpush1.bf16.msra.mxu0 %v4139
        %4153 = vmatprep.subr.bf16.mxu0 0
        %4154 = vmatpush1.bf16.msra.mxu0 %v4138
        %4155 = vmatprep.subr.bf16.mxu0 0
        %4156 = vmatpush1.bf16.msra.mxu0 %v4137
        %4157 = vmatprep.subr.bf16.mxu0 0
        %4158 = vmatpush1.bf16.msra.mxu0 %v4136
        %4159 = vmatprep.subr.bf16.mxu0 0
        %4160 = vmatpush1.bf16.msra.mxu0 %v4135
        %4161 = vmatprep.subr.bf16.mxu0 0
        %4162 = vmatpush1.bf16.msra.mxu0 %v4134
        %4163 = vmatprep.subr.bf16.mxu0 0
        %4164 = vmatpush1.bf16.msra.mxu0 %v4133
        %4165 = vmatprep.subr.bf16.mxu0 0
        %4166 = vmatpush2.bf16.msra.mxu0 0
        %4167 = vmatprep.subr.bf16.mxu0 0
        %4168 = vmatpush2.bf16.msra.mxu0 0
        %4169 = vmatprep.subr.bf16.mxu0 0
        %4170 = vmatpush2.bf16.msra.mxu0 0
        %4171 = vmatprep.subr.bf16.mxu0 0
        %4172 = vmatpush2.bf16.msra.mxu0 0
        %4173 = vmatprep.subr.bf16.mxu0 0
        %4174 = vmatpush2.bf16.msra.mxu0 0
        %4175 = vmatprep.subr.bf16.mxu0 0
        %4176 = vmatpush2.bf16.msra.mxu0 0
        %4177 = vmatprep.subr.bf16.mxu0 0
        %4178 = vmatpush2.bf16.msra.mxu0 0
        %4179 = vmatprep.subr.bf16.mxu0 0
        %4180 = vmatpush2.bf16.msra.mxu0 0
        %4181 = vmatprep.mubr.bf16.mxu0 0
        %4182 = vmatmul.mubr.bf16.gmra.mxu0 %v3960
        %v4183 = vpop.f32.mrf.mxu0
        %v4184 = vadd.f32 0.0, %v4183
        %v4185 = vpop.f32.mrf.mxu0
        %v4186 = vpop.f32.mrf.mxu0
        %v4187 = vpop.f32.mrf.mxu0
        %4188 = vdwg.mxu0
        %v4205 = vunpack.c.l.b16 %v4069
        %v4206 = vunpack.c.l.b16 %v4070
        %v4207 = vunpack.c.l.b16 %v4071
        %v4208 = vunpack.c.l.b16 %v4072
        %v4209 = vunpack.c.l.b16 %v4073
        %v4210 = vunpack.c.l.b16 %v4074
        %v4211 = vunpack.c.l.b16 %v4075
        %v4212 = vunpack.c.l.b16 %v4076
        %v4213 = vunpack.c.l.b16 %v4077
        %v4214 = vunpack.c.l.b16 %v4078
        %v4215 = vunpack.c.l.b16 %v4079
        %v4216 = vunpack.c.l.b16 %v4080
        %v4217 = vunpack.c.l.b16 %v4081
        %v4218 = vunpack.c.l.b16 %v4082
        %v4219 = vunpack.c.l.b16 %v4083
        %v4220 = vunpack.c.l.b16 %v4084
        %v4221 = vpack.c.b16 %v4206, %v4205
        %v4222 = vpack.c.b16 %v4208, %v4207
        %v4223 = vpack.c.b16 %v4210, %v4209
        %v4224 = vpack.c.b16 %v4212, %v4211
        %v4225 = vpack.c.b16 %v4214, %v4213
        %v4226 = vpack.c.b16 %v4216, %v4215
        %v4227 = vpack.c.b16 %v4218, %v4217
        %v4228 = vpack.c.b16 %v4220, %v4219
        %4237 = vmatprep.subr.bf16.mxu0 0
        %4238 = vmatpush1.bf16.msra.mxu0 %v4228
        %4239 = vmatprep.subr.bf16.mxu0 0
        %4240 = vmatpush1.bf16.msra.mxu0 %v4227
        %4241 = vmatprep.subr.bf16.mxu0 0
        %4242 = vmatpush1.bf16.msra.mxu0 %v4226
        %4243 = vmatprep.subr.bf16.mxu0 0
        %4244 = vmatpush1.bf16.msra.mxu0 %v4225
        %4245 = vmatprep.subr.bf16.mxu0 0
        %4246 = vmatpush1.bf16.msra.mxu0 %v4224
        %4247 = vmatprep.subr.bf16.mxu0 0
        %4248 = vmatpush1.bf16.msra.mxu0 %v4223
        %4249 = vmatprep.subr.bf16.mxu0 0
        %4250 = vmatpush1.bf16.msra.mxu0 %v4222
        %4251 = vmatprep.subr.bf16.mxu0 0
        %4252 = vmatpush1.bf16.msra.mxu0 %v4221
        %4253 = vmatprep.subr.bf16.mxu0 0
        %4254 = vmatpush2.bf16.msra.mxu0 0
        %4255 = vmatprep.subr.bf16.mxu0 0
        %4256 = vmatpush2.bf16.msra.mxu0 0
        %4257 = vmatprep.subr.bf16.mxu0 0
        %4258 = vmatpush2.bf16.msra.mxu0 0
        %4259 = vmatprep.subr.bf16.mxu0 0
        %4260 = vmatpush2.bf16.msra.mxu0 0
        %4261 = vmatprep.subr.bf16.mxu0 0
        %4262 = vmatpush2.bf16.msra.mxu0 0
        %4263 = vmatprep.subr.bf16.mxu0 0
        %4264 = vmatpush2.bf16.msra.mxu0 0
        %4265 = vmatprep.subr.bf16.mxu0 0
        %4266 = vmatpush2.bf16.msra.mxu0 0
        %4267 = vmatprep.subr.bf16.mxu0 0
        %4268 = vmatpush2.bf16.msra.mxu0 0
        %4269 = vmatprep.mubr.bf16.mxu0 0
        %4270 = vmatmul.mubr.bf16.gmra.mxu0 %v4068
        %v4271 = vpop.f32.mrf.mxu0
        %v4272 = vadd.f32 %v4184, %v4271
        %v4273 = vpop.f32.mrf.mxu0
        %v4274 = vpop.f32.mrf.mxu0
        %v4275 = vpop.f32.mrf.mxu0
        %4276 = vdwg.mxu0
        %s4277 = scalar_lea.vmem %s12, 64
        %v4278 = vld [vmem:[%s4277] sm:$0xf]
        %v4279 = vld [vmem:[%s4277 + $0x4] sm:$0xf]
        %v4280 = vld [vmem:[%s4277 + $0x8] sm:$0xf]
        %v4281 = vld [vmem:[%s4277 + $0xc] sm:$0xf]
        %v4282 = vld [vmem:[%s4277 + $0x10] sm:$0xf]
        %v4283 = vld [vmem:[%s4277 + $0x14] sm:$0xf]
        %v4284 = vld [vmem:[%s4277 + $0x18] sm:$0xf]
        %v4285 = vld [vmem:[%s4277 + $0x1c] sm:$0xf]
        %v4286 = vld [vmem:[%s4277 + $0x20] sm:$0xf]
        %v4287 = vld [vmem:[%s4277 + $0x24] sm:$0xf]
        %v4288 = vld [vmem:[%s4277 + $0x28] sm:$0xf]
        %v4289 = vld [vmem:[%s4277 + $0x2c] sm:$0xf]
        %v4290 = vld [vmem:[%s4277 + $0x30] sm:$0xf]
        %v4291 = vld [vmem:[%s4277 + $0x34] sm:$0xf]
        %v4292 = vld [vmem:[%s4277 + $0x38] sm:$0xf]
        %v4293 = vld [vmem:[%s4277 + $0x3c] sm:$0xf]
        %v4295 = vshrl.u32 %v3960, 16
        %v4314 = vunpack.c.l.b16 %v4278
        %v4315 = vunpack.c.l.b16 %v4279
        %v4316 = vunpack.c.l.b16 %v4280
        %v4317 = vunpack.c.l.b16 %v4281
        %v4318 = vunpack.c.l.b16 %v4282
        %v4319 = vunpack.c.l.b16 %v4283
        %v4320 = vunpack.c.l.b16 %v4284
        %v4321 = vunpack.c.l.b16 %v4285
        %v4322 = vunpack.c.l.b16 %v4286
        %v4323 = vunpack.c.l.b16 %v4287
        %v4324 = vunpack.c.l.b16 %v4288
        %v4325 = vunpack.c.l.b16 %v4289
        %v4326 = vunpack.c.l.b16 %v4290
        %v4327 = vunpack.c.l.b16 %v4291
        %v4328 = vunpack.c.l.b16 %v4292
        %v4329 = vunpack.c.l.b16 %v4293
        %v4330 = vpack.c.b16 %v4315, %v4314
        %v4331 = vpack.c.b16 %v4317, %v4316
        %v4332 = vpack.c.b16 %v4319, %v4318
        %v4333 = vpack.c.b16 %v4321, %v4320
        %v4334 = vpack.c.b16 %v4323, %v4322
        %v4335 = vpack.c.b16 %v4325, %v4324
        %v4336 = vpack.c.b16 %v4327, %v4326
        %v4337 = vpack.c.b16 %v4329, %v4328
        %4346 = vmatprep.subr.bf16.mxu0 0
        %4347 = vmatpush1.bf16.msra.mxu0 %v4337
        %4348 = vmatprep.subr.bf16.mxu0 0
        %4349 = vmatpush1.bf16.msra.mxu0 %v4336
        %4350 = vmatprep.subr.bf16.mxu0 0
        %4351 = vmatpush1.bf16.msra.mxu0 %v4335
        %4352 = vmatprep.subr.bf16.mxu0 0
        %4353 = vmatpush1.bf16.msra.mxu0 %v4334
        %4354 = vmatprep.subr.bf16.mxu0 0
        %4355 = vmatpush1.bf16.msra.mxu0 %v4333
        %4356 = vmatprep.subr.bf16.mxu0 0
        %4357 = vmatpush1.bf16.msra.mxu0 %v4332
        %4358 = vmatprep.subr.bf16.mxu0 0
        %4359 = vmatpush1.bf16.msra.mxu0 %v4331
        %4360 = vmatprep.subr.bf16.mxu0 0
        %4361 = vmatpush1.bf16.msra.mxu0 %v4330
        %4362 = vmatprep.subr.bf16.mxu0 0
        %4363 = vmatpush2.bf16.msra.mxu0 0
        %4364 = vmatprep.subr.bf16.mxu0 0
        %4365 = vmatpush2.bf16.msra.mxu0 0
        %4366 = vmatprep.subr.bf16.mxu0 0
        %4367 = vmatpush2.bf16.msra.mxu0 0
        %4368 = vmatprep.subr.bf16.mxu0 0
        %4369 = vmatpush2.bf16.msra.mxu0 0
        %4370 = vmatprep.subr.bf16.mxu0 0
        %4371 = vmatpush2.bf16.msra.mxu0 0
        %4372 = vmatprep.subr.bf16.mxu0 0
        %4373 = vmatpush2.bf16.msra.mxu0 0
        %4374 = vmatprep.subr.bf16.mxu0 0
        %4375 = vmatpush2.bf16.msra.mxu0 0
        %4376 = vmatprep.subr.bf16.mxu0 0
        %4377 = vmatpush2.bf16.msra.mxu0 0
        %4378 = vmatprep.mubr.bf16.mxu0 0
        %4379 = vmatmul.mubr.bf16.gmra.mxu0 %v4295
        %v4380 = vpop.f32.mrf.mxu0
        %v4381 = vadd.f32 0.0, %v4380
        %v4382 = vpop.f32.mrf.mxu0
        %v4383 = vpop.f32.mrf.mxu0
        %v4384 = vpop.f32.mrf.mxu0
        %4385 = vdwg.mxu0
        %v4386 = vadd.f32 %v4272, %v4381
        %s4387 = scalar_lea.vmem %s12, 128
        %v4388 = vld [vmem:[%s4387] sm:$0xf]
        %v4389 = vld [vmem:[%s4387 + $0x4] sm:$0xf]
        %v4390 = vld [vmem:[%s4387 + $0x8] sm:$0xf]
        %v4391 = vld [vmem:[%s4387 + $0xc] sm:$0xf]
        %v4392 = vld [vmem:[%s4387 + $0x10] sm:$0xf]
        %v4393 = vld [vmem:[%s4387 + $0x14] sm:$0xf]
        %v4394 = vld [vmem:[%s4387 + $0x18] sm:$0xf]
        %v4395 = vld [vmem:[%s4387 + $0x1c] sm:$0xf]
        %v4396 = vld [vmem:[%s4387 + $0x20] sm:$0xf]
        %v4397 = vld [vmem:[%s4387 + $0x24] sm:$0xf]
        %v4398 = vld [vmem:[%s4387 + $0x28] sm:$0xf]
        %v4399 = vld [vmem:[%s4387 + $0x2c] sm:$0xf]
        %v4400 = vld [vmem:[%s4387 + $0x30] sm:$0xf]
        %v4401 = vld [vmem:[%s4387 + $0x34] sm:$0xf]
        %v4402 = vld [vmem:[%s4387 + $0x38] sm:$0xf]
        %v4403 = vld [vmem:[%s4387 + $0x3c] sm:$0xf]
        %v4405 = vrot.slane %v3960, 1
        %v4423 = vunpack.c.l.b16 %v4388
        %v4424 = vunpack.c.l.b16 %v4389
        %v4425 = vunpack.c.l.b16 %v4390
        %v4426 = vunpack.c.l.b16 %v4391
        %v4427 = vunpack.c.l.b16 %v4392
        %v4428 = vunpack.c.l.b16 %v4393
        %v4429 = vunpack.c.l.b16 %v4394
        %v4430 = vunpack.c.l.b16 %v4395
        %v4431 = vunpack.c.l.b16 %v4396
        %v4432 = vunpack.c.l.b16 %v4397
        %v4433 = vunpack.c.l.b16 %v4398
        %v4434 = vunpack.c.l.b16 %v4399
        %v4435 = vunpack.c.l.b16 %v4400
        %v4436 = vunpack.c.l.b16 %v4401
        %v4437 = vunpack.c.l.b16 %v4402
        %v4438 = vunpack.c.l.b16 %v4403
        %v4439 = vpack.c.b16 %v4424, %v4423
        %v4440 = vpack.c.b16 %v4426, %v4425
        %v4441 = vpack.c.b16 %v4428, %v4427
        %v4442 = vpack.c.b16 %v4430, %v4429
        %v4443 = vpack.c.b16 %v4432, %v4431
        %v4444 = vpack.c.b16 %v4434, %v4433
        %v4445 = vpack.c.b16 %v4436, %v4435
        %v4446 = vpack.c.b16 %v4438, %v4437
        %4455 = vmatprep.subr.bf16.mxu0 0
        %4456 = vmatpush1.bf16.msra.mxu0 %v4446
        %4457 = vmatprep.subr.bf16.mxu0 0
        %4458 = vmatpush1.bf16.msra.mxu0 %v4445
        %4459 = vmatprep.subr.bf16.mxu0 0
        %4460 = vmatpush1.bf16.msra.mxu0 %v4444
        %4461 = vmatprep.subr.bf16.mxu0 0
        %4462 = vmatpush1.bf16.msra.mxu0 %v4443
        %4463 = vmatprep.subr.bf16.mxu0 0
        %4464 = vmatpush1.bf16.msra.mxu0 %v4442
        %4465 = vmatprep.subr.bf16.mxu0 0
        %4466 = vmatpush1.bf16.msra.mxu0 %v4441
        %4467 = vmatprep.subr.bf16.mxu0 0
        %4468 = vmatpush1.bf16.msra.mxu0 %v4440
        %4469 = vmatprep.subr.bf16.mxu0 0
        %4470 = vmatpush1.bf16.msra.mxu0 %v4439
        %4471 = vmatprep.subr.bf16.mxu0 0
        %4472 = vmatpush2.bf16.msra.mxu0 0
        %4473 = vmatprep.subr.bf16.mxu0 0
        %4474 = vmatpush2.bf16.msra.mxu0 0
        %4475 = vmatprep.subr.bf16.mxu0 0
        %4476 = vmatpush2.bf16.msra.mxu0 0
        %4477 = vmatprep.subr.bf16.mxu0 0
        %4478 = vmatpush2.bf16.msra.mxu0 0
        %4479 = vmatprep.subr.bf16.mxu0 0
        %4480 = vmatpush2.bf16.msra.mxu0 0
        %4481 = vmatprep.subr.bf16.mxu0 0
        %4482 = vmatpush2.bf16.msra.mxu0 0
        %4483 = vmatprep.subr.bf16.mxu0 0
        %4484 = vmatpush2.bf16.msra.mxu0 0
        %4485 = vmatprep.subr.bf16.mxu0 0
        %4486 = vmatpush2.bf16.msra.mxu0 0
        %4487 = vmatprep.mubr.bf16.mxu0 0
        %4488 = vmatmul.mubr.bf16.gmra.mxu0 %v4405
        %v4489 = vpop.f32.mrf.mxu0
        %v4490 = vadd.f32 0.0, %v4489
        %v4491 = vpop.f32.mrf.mxu0
        %v4492 = vpop.f32.mrf.mxu0
        %v4493 = vpop.f32.mrf.mxu0
        %4494 = vdwg.mxu0
        %v4495 = vadd.f32 %v4386, %v4490
        %s4496 = scalar_lea.vmem %s12, 192
        %v4497 = vld [vmem:[%s4496] sm:$0xf]
        %v4498 = vld [vmem:[%s4496 + $0x4] sm:$0xf]
        %v4499 = vld [vmem:[%s4496 + $0x8] sm:$0xf]
        %v4500 = vld [vmem:[%s4496 + $0xc] sm:$0xf]
        %v4501 = vld [vmem:[%s4496 + $0x10] sm:$0xf]
        %v4502 = vld [vmem:[%s4496 + $0x14] sm:$0xf]
        %v4503 = vld [vmem:[%s4496 + $0x18] sm:$0xf]
        %v4504 = vld [vmem:[%s4496 + $0x1c] sm:$0xf]
        %v4505 = vld [vmem:[%s4496 + $0x20] sm:$0xf]
        %v4506 = vld [vmem:[%s4496 + $0x24] sm:$0xf]
        %v4507 = vld [vmem:[%s4496 + $0x28] sm:$0xf]
        %v4508 = vld [vmem:[%s4496 + $0x2c] sm:$0xf]
        %v4509 = vld [vmem:[%s4496 + $0x30] sm:$0xf]
        %v4510 = vld [vmem:[%s4496 + $0x34] sm:$0xf]
        %v4511 = vld [vmem:[%s4496 + $0x38] sm:$0xf]
        %v4512 = vld [vmem:[%s4496 + $0x3c] sm:$0xf]
        %v4513 = vrot.slane %v4295, 1
        %v4531 = vunpack.c.l.b16 %v4497
        %v4532 = vunpack.c.l.b16 %v4498
        %v4533 = vunpack.c.l.b16 %v4499
        %v4534 = vunpack.c.l.b16 %v4500
        %v4535 = vunpack.c.l.b16 %v4501
        %v4536 = vunpack.c.l.b16 %v4502
        %v4537 = vunpack.c.l.b16 %v4503
        %v4538 = vunpack.c.l.b16 %v4504
        %v4539 = vunpack.c.l.b16 %v4505
        %v4540 = vunpack.c.l.b16 %v4506
        %v4541 = vunpack.c.l.b16 %v4507
        %v4542 = vunpack.c.l.b16 %v4508
        %v4543 = vunpack.c.l.b16 %v4509
        %v4544 = vunpack.c.l.b16 %v4510
        %v4545 = vunpack.c.l.b16 %v4511
        %v4546 = vunpack.c.l.b16 %v4512
        %v4547 = vpack.c.b16 %v4532, %v4531
        %v4548 = vpack.c.b16 %v4534, %v4533
        %v4549 = vpack.c.b16 %v4536, %v4535
        %v4550 = vpack.c.b16 %v4538, %v4537
        %v4551 = vpack.c.b16 %v4540, %v4539
        %v4552 = vpack.c.b16 %v4542, %v4541
        %v4553 = vpack.c.b16 %v4544, %v4543
        %v4554 = vpack.c.b16 %v4546, %v4545
        %4563 = vmatprep.subr.bf16.mxu0 0
        %4564 = vmatpush1.bf16.msra.mxu0 %v4554
        %4565 = vmatprep.subr.bf16.mxu0 0
        %4566 = vmatpush1.bf16.msra.mxu0 %v4553
        %4567 = vmatprep.subr.bf16.mxu0 0
        %4568 = vmatpush1.bf16.msra.mxu0 %v4552
        %4569 = vmatprep.subr.bf16.mxu0 0
        %4570 = vmatpush1.bf16.msra.mxu0 %v4551
        %4571 = vmatprep.subr.bf16.mxu0 0
        %4572 = vmatpush1.bf16.msra.mxu0 %v4550
        %4573 = vmatprep.subr.bf16.mxu0 0
        %4574 = vmatpush1.bf16.msra.mxu0 %v4549
        %4575 = vmatprep.subr.bf16.mxu0 0
        %4576 = vmatpush1.bf16.msra.mxu0 %v4548
        %4577 = vmatprep.subr.bf16.mxu0 0
        %4578 = vmatpush1.bf16.msra.mxu0 %v4547
        %4579 = vmatprep.subr.bf16.mxu0 0
        %4580 = vmatpush2.bf16.msra.mxu0 0
        %4581 = vmatprep.subr.bf16.mxu0 0
        %4582 = vmatpush2.bf16.msra.mxu0 0
        %4583 = vmatprep.subr.bf16.mxu0 0
        %4584 = vmatpush2.bf16.msra.mxu0 0
        %4585 = vmatprep.subr.bf16.mxu0 0
        %4586 = vmatpush2.bf16.msra.mxu0 0
        %4587 = vmatprep.subr.bf16.mxu0 0
        %4588 = vmatpush2.bf16.msra.mxu0 0
        %4589 = vmatprep.subr.bf16.mxu0 0
        %4590 = vmatpush2.bf16.msra.mxu0 0
        %4591 = vmatprep.subr.bf16.mxu0 0
        %4592 = vmatpush2.bf16.msra.mxu0 0
        %4593 = vmatprep.subr.bf16.mxu0 0
        %4594 = vmatpush2.bf16.msra.mxu0 0
        %4595 = vmatprep.mubr.bf16.mxu0 0
        %4596 = vmatmul.mubr.bf16.gmra.mxu0 %v4513
        %v4597 = vpop.f32.mrf.mxu0
        %v4598 = vadd.f32 0.0, %v4597
        %v4599 = vpop.f32.mrf.mxu0
        %v4600 = vpop.f32.mrf.mxu0
        %v4601 = vpop.f32.mrf.mxu0
        %4602 = vdwg.mxu0
        %v4603 = vadd.f32 %v4495, %v4598
        %v4604 = vld [vmem:[%s14] sm:$0x1]
        %v4605 = vadd.f32 %v4603, %v4604
        %v4606 = vmax.f32 %v4605, 0.0
        %4607 = vst [vmem:[%s497] sm:$0x1] %v4606
        %s4608 = sand.u32 %s362, 1
        %s4609 = scalar_lea.sflag [#allocation3], %s4608
        %s4610 = sand.u32 %s362, 1
        %s4611 = scalar_lea.vmem [#allocation2], %s4610
        // Predicated region
        $region81: #{fcombined_forward.1} parent=79 // pred_check
          %p4612 = pneg %p372
        $region82: #{fcombined_forward.1} parent=79 // pred_check_branch
          %4614 = sbr.rel (%p4612) target = $region84
        $region83: #{fcombined_forward.1} parent=79 // pred_region
          %s4616 = ssub.s32 16, 16
          %4617 = vsyncadd %s4609, %s4616
          %s4618 = smul.addr %s29, 16
          %s4619 = scalar_lea.hbm %s15, %s4618
          %s4621 = sshll.u32 %s4611, 4
          %s4622 = int_to_ptr.vmem [resolvable:$true] %s4621
          %4624 = dma.vmem_to_hbm [thread:$0]  %s4622, 16, %s4619, %s4609
        $region84: #{fcombined_forward.1} parent=79 // pred_fallthru
          _
      $region80: #{fcombined_forward.1} parent=5 // pred_fallthru
        _
      %p4625 = scmp.le.s32.totalorder 2, %s24
      // Predicated region
      $region85: #{fcombined_forward.1} parent=5 // pred_check
        %p4626 = pneg %p4625
      $region86: #{fcombined_forward.1} parent=5 // pred_check_branch
        %4628 = sbr.rel (%p4626) target = $region88
      $region87: #{fcombined_forward.1} parent=5 // pred_region
        %s4629 = ssub.s32 %s24, 2
        // Predicated region
        $region89: #{fcombined_forward.1} parent=87 // pred_check
          %p4630 = pneg %p378
        $region90: #{fcombined_forward.1} parent=87 // pred_check_branch
          %4632 = sbr.rel (%p4630) target = $region92
        $region91: #{fcombined_forward.1} parent=87 // pred_region
          %s4633 = sand.u32 %s363, 1
          %s4634 = scalar_lea.sflag [#allocation3], %s4633
          %s4635 = sand.u32 %s363, 1
          %s4636 = scalar_lea.vmem [#allocation2], %s4635
          %4637 = dma.done %s4634, 16
        $region92: #{fcombined_forward.1} parent=87 // pred_fallthru
          _
      $region88: #{fcombined_forward.1} parent=5 // pred_fallthru
        _
    $region6: #{fcombined_forward.1} parent=1 // loop_footer
      %s28 = sadd.s32 1, %s24
    $region7: #{fcombined_forward.1} parent=1 // loop_footer_branch
      %23 = sbr.rel target = $region3
    $region8: #{fcombined_forward.1} parent=1 // loop_exit
      _
    %4638 = vsyncpa [#allocation3], 1
    %s4639 = scalar_lea.sflag [#allocation3], 1
    %4640 = vsyncpa %s4639, 1

</llo_original>
